<compile_context>
chip_gen: v7x
topology: tpu7x:2x2x1
jax: 0.10.0
libtpu: 0.0.40
codegen_flags: <defaults>
</compile_context>

<pallas_src>
import jax
import jax.numpy as jnp
from jax import lax, random
from jax.experimental import pallas as pl
from jax.experimental.pallas import tpu as pltpu

DIM_EMB = 96
N_HEAD = 6
N_LAYER = 6
HEAD_SIZE = DIM_EMB // N_HEAD      # 16
LN_EPS = 1e-5                      # torch.nn.LayerNorm default
NEG_INF = -1e30                    # finite masked value (avoids exp(-inf - -inf) NaN)
APPROX_SOFTMAX_RECIP = True        # EUP approximate reciprocal (~1e-3 rel); False = exact divide


def _layer_norm(v, g, b):
    mu = jnp.mean(v, axis=-1, keepdims=True)
    var = jnp.mean((v - mu) ** 2, axis=-1, keepdims=True)
    return (v - mu) * lax.rsqrt(var + LN_EPS) * g + b


def make_kernel(B, T):
    """Kernel closure over the static batch/sequence sizes."""
    D, H, HS, BT = DIM_EMB, N_HEAD, HEAD_SIZE, B * T

    def kernel(goals_ref, obss_ref,               # (BT, G), (BT, O)
               wg_ref, wo_ref, bgo_ref, pos_ref,  # (G, D) bf16, (O, D) bf16, (1, D), (BT, D)
               ln1g_ref, ln1b_ref,                # (1, 1, D) x2
               wqkv_ref,                          # (1, D, 3D) bf16, cols = [Q(heads)|K|V], Q pre-scaled
               wp_ref, bp_ref,                    # (1, D, D) bf16, (1, 1, D)
               ln2g_ref, ln2b_ref,                # (1, 1, D) x2
               w1_ref, b1_ref,                    # (1, D, 4D) bf16, (1, 1, 4D)
               w2_ref, b2_ref,                    # (1, 4D, D) bf16, (1, 1, D)
               lnfg_ref, lnfb_ref,                # (1, D) x2
               wact_ref, bact_ref,                # (D, A) bf16, (1, A)
               out_ref,                           # (BT, A)
               x_ref):                            # VMEM scratch (BT, D) f32 — residual stream
        l = pl.program_id(0)

        # ---- embedding (only at the first layer step): [goal | obs] @ W_go + b + pos ----
        @pl.when(l == 0)
        def _embed():
            x_ref[...] = (
                jnp.dot(goals_ref[...], wg_ref[...], preferred_element_type=jnp.float32)
                + jnp.dot(obss_ref[...], wo_ref[...], preferred_element_type=jnp.float32)
                + bgo_ref[...] + pos_ref[...])

        # additive causal mask, built once per grid step (tiny)
        row = lax.broadcasted_iota(jnp.int32, (T, T), 0)
        col = lax.broadcasted_iota(jnp.int32, (T, T), 1)
        mask_add = jnp.where(row >= col, jnp.float32(0.0), jnp.float32(NEG_INF))

        x = x_ref[...]                                                    # (BT, D) f32

        # ---- multi-head self-attention (batched over B*H) ----
        y = _layer_norm(x, ln1g_ref[0], ln1b_ref[0])
        qkv = jnp.dot(y, wqkv_ref[0], preferred_element_type=jnp.float32)  # (BT, 3D)

        def split_heads(m):                     # (BT, D) -> (B*H, T, HS) via minor-2 swaps only
            m = m.reshape(B, T, D)
            m = jnp.swapaxes(m, -1, -2)         # (B, D, T)
            m = m.reshape(B * H, HS, T)
            return jnp.swapaxes(m, -1, -2)      # (B*H, T, HS)

        q = split_heads(qkv[:, :D])             # scale already folded into wq host-side
        k = split_heads(qkv[:, D:2 * D])
        v = split_heads(qkv[:, 2 * D:])

        s = jnp.einsum('bqd,bkd->bqk', q, k, preferred_element_type=jnp.float32)  # (BH, T, T)
        s = s + mask_add[None, :, :]
        s = s - jnp.max(s, axis=-1, keepdims=True)
        p = jnp.exp(s)
        denom = jnp.sum(p, axis=-1, keepdims=True)
        if APPROX_SOFTMAX_RECIP:
            p = p * pl.reciprocal(denom, approx=True)
        else:
            p = p / denom

        o = jnp.einsum('bqk,bkd->bqd', p, v, preferred_element_type=jnp.float32)  # (BH, T, HS)

        # merge heads back to (BT, D) = (B*T, H*HS)
        o = jnp.swapaxes(o, -1, -2)             # (BH, HS, T)
        o = o.reshape(B, D, T)
        o = jnp.swapaxes(o, -1, -2)             # (B, T, D)
        o = o.reshape(BT, D)

        x = x + jnp.dot(o, wp_ref[0], preferred_element_type=jnp.float32) + bp_ref[0]

        # ---- feed-forward ----
        y2 = _layer_norm(x, ln2g_ref[0], ln2b_ref[0])
        hid = jnp.dot(y2, w1_ref[0], preferred_element_type=jnp.float32) + b1_ref[0]
        hid = jnp.maximum(hid, 0.0)
        x = x + jnp.dot(hid, w2_ref[0], preferred_element_type=jnp.float32) + b2_ref[0]
        x_ref[...] = x

        # ---- final LayerNorm + action head (only at the last layer step) ----
        @pl.when(l == pl.num_programs(0) - 1)
        def _head():
            xf = _layer_norm(x_ref[...], lnfg_ref[...], lnfb_ref[...])
            out_ref[...] = (jnp.dot(xf, wact_ref[...], preferred_element_type=jnp.float32)
                            + bact_ref[...])

    return kernel


def fuse_params(params, dim_goal):
    """One-time host-side layout fusion: per-head weights -> per-layer GEMM weights,
    attention scale folded into wq, matmul weights cast to bf16."""
    L, H, D, HS = N_LAYER, N_HEAD, DIM_EMB, HEAD_SIZE
    scale = HS ** -0.5
    wq = jnp.transpose(params["wq"], (0, 2, 1, 3)).reshape(L, D, H * HS) * scale
    wk = jnp.transpose(params["wk"], (0, 2, 1, 3)).reshape(L, D, H * HS)
    wv = jnp.transpose(params["wv"], (0, 2, 1, 3)).reshape(L, D, H * HS)
    bf16 = lambda a: a.astype(jnp.bfloat16)
    row = lambda a: a.reshape(L, 1, a.shape[-1])   # (L, X) -> (L, 1, X) for per-layer BlockSpecs
    return dict(
        wg=bf16(params["w_go"][:dim_goal]),
        wo=bf16(params["w_go"][dim_goal:]),
        b_go=params["b_go"], pos=params["pos"],
        ln1_g=row(params["ln1_g"]), ln1_b=row(params["ln1_b"]),
        wqkv=bf16(jnp.concatenate([wq, wk, wv], axis=-1)),        # (L, D, 3D)
        wp=bf16(params["wp"].reshape(L, H * HS, D)),              # (L, D, D)
        bp=row(params["bp"]),
        ln2_g=row(params["ln2_g"]), ln2_b=row(params["ln2_b"]),
        w1=bf16(params["w1"]), b1=row(params["b1"]),
        w2=bf16(params["w2"]), b2=row(params["b2"]),
        lnf_g=params["lnf_g"], lnf_b=params["lnf_b"],
        w_act=bf16(params["w_act"]), b_act=params["b_act"],
    )


_LAYER_KEYS = ("ln1_g", "ln1_b", "wqkv", "wp", "bp",
               "ln2_g", "ln2_b", "w1", "b1", "w2", "b2")
_TAIL_KEYS = ("lnf_g", "lnf_b", "w_act", "b_act")


def actor_transformer_pallas(goals, obss, fused):
    B, T, dim_obs = obss.shape
    dim_goal = goals.shape[-1]
    dim_act = fused["w_act"].shape[-1]
    BT, D = B * T, DIM_EMB

    # wrapper-side layout work only (no compute hoisting): pre-repeat goals, pre-tile pos
    goals_rep = jnp.broadcast_to(goals.reshape(B, 1, dim_goal).astype(jnp.float32),
                                 (B, T, dim_goal)).reshape(BT, dim_goal)
    obss2d = obss.reshape(BT, dim_obs).astype(jnp.float32)
    pos_tiled = jnp.tile(fused["pos"], (B, 1))                     # (BT, D)

    const_arrays = [goals_rep, obss2d, fused["wg"], fused["wo"], fused["b_go"], pos_tiled]
    layer_arrays = [fused[k] for k in _LAYER_KEYS]
    tail_arrays = [fused[k] for k in _TAIL_KEYS]

    def const_spec(a):
        nd = a.ndim
        return pl.BlockSpec(a.shape, lambda l, _nd=nd: (0,) * _nd)

    def layer_spec(a):
        nd = a.ndim
        return pl.BlockSpec((1,) + a.shape[1:], lambda l, _nd=nd: (l,) + (0,) * (_nd - 1))

    in_specs = ([const_spec(a) for a in const_arrays]
                + [layer_spec(a) for a in layer_arrays]
                + [const_spec(a) for a in tail_arrays])

    out = pl.pallas_call(
        make_kernel(B, T),
        out_shape=jax.ShapeDtypeStruct((BT, dim_act), jnp.float32),
        grid_spec=pltpu.PrefetchScalarGridSpec(
            num_scalar_prefetch=0,
            grid=(N_LAYER,),
            in_specs=in_specs,
            out_specs=pl.BlockSpec((BT, dim_act), lambda l: (0, 0)),
            scratch_shapes=[pltpu.VMEM((BT, D), jnp.float32)],
        ),
        compiler_params=pltpu.CompilerParams(dimension_semantics=("arbitrary",)),
    )(*const_arrays, *layer_arrays, *tail_arrays)
    return out.reshape(B, T, dim_act)


def init_params(key, dim_goal, dim_obs, dim_act, history_size):
    """Deterministic synthetic init mirroring _init_weights: N(0, 0.02) weights, zero biases,
    LayerNorm gamma=1 beta=0, N(0, 0.02) position embedding."""
    D, L, H, HS = DIM_EMB, N_LAYER, N_HEAD, HEAD_SIZE
    keys = iter(random.split(key, 16))
    n = lambda shape: (0.02 * random.normal(next(keys), shape)).astype(jnp.float32)
    z = lambda shape: jnp.zeros(shape, jnp.float32)
    o = lambda shape: jnp.ones(shape, jnp.float32)
    return dict(
        w_go=n((dim_goal + dim_obs, D)), b_go=z((1, D)),
        pos=n((history_size, D)),
        ln1_g=o((L, D)), ln1_b=z((L, D)),
        wq=n((L, H, D, HS)), wk=n((L, H, D, HS)), wv=n((L, H, D, HS)),
        wp=n((L, H, HS, D)), bp=z((L, D)),
        ln2_g=o((L, D)), ln2_b=z((L, D)),
        w1=n((L, D, 4 * D)), b1=z((L, 4 * D)),
        w2=n((L, 4 * D, D)), b2=z((L, D)),
        lnf_g=o((1, D)), lnf_b=z((1, D)),
        w_act=n((D, dim_act)), b_act=z((1, dim_act)),
    )


def reference_forward(goals, obss, p):
    """Pure-JAX f32 reference with identical math (per-head) for a correctness check."""
    hp = lax.Precision.HIGHEST
    B, T, _ = obss.shape
    go = jnp.concatenate([jnp.broadcast_to(goals, (B, T, goals.shape[-1])), obss], -1)
    x = jnp.einsum("btf,fd->btd", go, p["w_go"], precision=hp) + p["b_go"] + p["pos"]
    mask = jnp.tril(jnp.ones((T, T), bool))

    def ln(v, g, b):
        mu = v.mean(-1, keepdims=True)
        var = ((v - mu) ** 2).mean(-1, keepdims=True)
        return (v - mu) / jnp.sqrt(var + LN_EPS) * g + b

    for l in range(N_LAYER):
        y = ln(x, p["ln1_g"][l], p["ln1_b"][l])
        attn = jnp.zeros_like(x)
        for h in range(N_HEAD):
            q = jnp.einsum("btd,dk->btk", y, p["wq"][l, h], precision=hp)
            k = jnp.einsum("btd,dk->btk", y, p["wk"][l, h], precision=hp)
            v = jnp.einsum("btd,dk->btk", y, p["wv"][l, h], precision=hp)
            wei = jnp.einsum("btk,bsk->bts", q, k, precision=hp) * HEAD_SIZE ** (-0.5)
            wei = jnp.where(mask, wei, -jnp.inf)
            wei = jax.nn.softmax(wei, axis=-1)
            o_h = jnp.einsum("bts,bsk->btk", wei, v, precision=hp)
            attn = attn + jnp.einsum("btk,kd->btd", o_h, p["wp"][l, h], precision=hp)
        x = x + attn + p["bp"][l]
        y2 = ln(x, p["ln2_g"][l], p["ln2_b"][l])
        hid = jax.nn.relu(jnp.einsum("btd,de->bte", y2, p["w1"][l], precision=hp) + p["b1"][l])
        x = x + jnp.einsum("bte,ed->btd", hid, p["w2"][l], precision=hp) + p["b2"][l]
    x = ln(x, p["lnf_g"][0], p["lnf_b"][0])
    return jnp.einsum("btd,da->bta", x, p["w_act"], precision=hp) + p["b_act"][0]


if __name__ == "__main__":
    B = 2
    dim_goal, dim_obs, dim_act = 5, 7, 3
    history_size, horizon_size = 8, 4   # horizon only used by the un-implemented branches

    key = random.PRNGKey(0)
    kp, kg, ko = random.split(key, 3)
    params = init_params(kp, dim_goal, dim_obs, dim_act, history_size)
    goals = random.normal(kg, (B, 1, dim_goal), jnp.float32)
    obss = random.normal(ko, (B, history_size, dim_obs), jnp.float32)

    fused = fuse_params(params, dim_goal)
    out = actor_transformer_pallas(goals, obss, fused)
    out = jax.block_until_ready(out)

    ref = reference_forward(goals, obss, params)
    assert out.shape == (B, history_size, dim_act), out.shape
    assert bool(jnp.all(jnp.isfinite(out)))
    max_err = float(jnp.max(jnp.abs(out - ref)))
    assert jnp.allclose(out, ref, atol=2e-2, rtol=2e-2), f"max_abs_err={max_err}"
    print("KERNEL_OK")
</pallas_src>

<mosaic_0001>
module attributes {stable_mosaic.version = 11 : i64} {
  func.func @kernel(%arg0: i32, %arg1: memref<16x5xf32, #tpu.memory_space<vmem>>, %arg2: memref<16x7xf32, #tpu.memory_space<vmem>>, %arg3: memref<5x96xbf16, #tpu.memory_space<vmem>>, %arg4: memref<7x96xbf16, #tpu.memory_space<vmem>>, %arg5: memref<1x96xf32, #tpu.memory_space<vmem>>, %arg6: memref<16x96xf32, #tpu.memory_space<vmem>>, %arg7: memref<1x1x96xf32, #tpu.memory_space<vmem>>, %arg8: memref<1x1x96xf32, #tpu.memory_space<vmem>>, %arg9: memref<1x96x288xbf16, #tpu.memory_space<vmem>>, %arg10: memref<1x96x96xbf16, #tpu.memory_space<vmem>>, %arg11: memref<1x1x96xf32, #tpu.memory_space<vmem>>, %arg12: memref<1x1x96xf32, #tpu.memory_space<vmem>>, %arg13: memref<1x1x96xf32, #tpu.memory_space<vmem>>, %arg14: memref<1x96x384xbf16, #tpu.memory_space<vmem>>, %arg15: memref<1x1x384xf32, #tpu.memory_space<vmem>>, %arg16: memref<1x384x96xbf16, #tpu.memory_space<vmem>>, %arg17: memref<1x1x96xf32, #tpu.memory_space<vmem>>, %arg18: memref<1x96xf32, #tpu.memory_space<vmem>>, %arg19: memref<1x96xf32, #tpu.memory_space<vmem>>, %arg20: memref<96x3xbf16, #tpu.memory_space<vmem>>, %arg21: memref<1x3xf32, #tpu.memory_space<vmem>>, %arg22: memref<16x3xf32, #tpu.memory_space<vmem>>, %arg23: memref<16x96xf32, #tpu.memory_space<vmem>>) attributes {dimension_semantics = [#tpu.dimension_semantics<arbitrary>], iteration_bounds = array<i64: 6>, scalar_prefetch = 0 : i64, scratch_operands = 1 : i64, tpu.core_type = #tpu.core_type<tc>, window_params = [{pipeline_mode = #tpu.pipeline_mode<synchronous>, transform_indices = @transform_0, window_bounds = array<i64: 16, 5>}, {pipeline_mode = #tpu.pipeline_mode<synchronous>, transform_indices = @transform_1, window_bounds = array<i64: 16, 7>}, {pipeline_mode = #tpu.pipeline_mode<synchronous>, transform_indices = @transform_2, window_bounds = array<i64: 5, 96>}, {pipeline_mode = #tpu.pipeline_mode<synchronous>, transform_indices = @transform_3, window_bounds = array<i64: 7, 96>}, {pipeline_mode = #tpu.pipeline_mode<synchronous>, transform_indices = @transform_4, window_bounds = array<i64: 1, 96>}, {pipeline_mode = #tpu.pipeline_mode<synchronous>, transform_indices = @transform_5, window_bounds = array<i64: 16, 96>}, {transform_indices = @transform_6, window_bounds = array<i64: 1, 1, 96>}, {transform_indices = @transform_7, window_bounds = array<i64: 1, 1, 96>}, {transform_indices = @transform_8, window_bounds = array<i64: 1, 96, 288>}, {transform_indices = @transform_9, window_bounds = array<i64: 1, 96, 96>}, {transform_indices = @transform_10, window_bounds = array<i64: 1, 1, 96>}, {transform_indices = @transform_11, window_bounds = array<i64: 1, 1, 96>}, {transform_indices = @transform_12, window_bounds = array<i64: 1, 1, 96>}, {transform_indices = @transform_13, window_bounds = array<i64: 1, 96, 384>}, {transform_indices = @transform_14, window_bounds = array<i64: 1, 1, 384>}, {transform_indices = @transform_15, window_bounds = array<i64: 1, 384, 96>}, {transform_indices = @transform_16, window_bounds = array<i64: 1, 1, 96>}, {pipeline_mode = #tpu.pipeline_mode<synchronous>, transform_indices = @transform_17, window_bounds = array<i64: 1, 96>}, {pipeline_mode = #tpu.pipeline_mode<synchronous>, transform_indices = @transform_18, window_bounds = array<i64: 1, 96>}, {pipeline_mode = #tpu.pipeline_mode<synchronous>, transform_indices = @transform_19, window_bounds = array<i64: 96, 3>}, {pipeline_mode = #tpu.pipeline_mode<synchronous>, transform_indices = @transform_20, window_bounds = array<i64: 1, 3>}, {pipeline_mode = #tpu.pipeline_mode<synchronous>, transform_indices = @transform_21, window_bounds = array<i64: 16, 3>}]} {
    %c0_i32 = arith.constant 0 : i32
    %0 = arith.cmpi eq, %arg0, %c0_i32 : i32
    %1 = arith.extui %0 : i1 to i32
    %c0_i32_0 = arith.constant 0 : i32
    %2 = arith.cmpi ne, %1, %c0_i32_0 : i32
    scf.if %2 {
      %c0_58 = arith.constant 0 : index
      %c0_59 = arith.constant 0 : index
      %128 = vector.load %arg1[%c0_58, %c0_59] : memref<16x5xf32, #tpu.memory_space<vmem>>, vector<16x5xf32>
      %c0_60 = arith.constant 0 : index
      %c0_61 = arith.constant 0 : index
      %129 = vector.load %arg3[%c0_60, %c0_61] : memref<5x96xbf16, #tpu.memory_space<vmem>>, vector<5x96xbf16>
      %cst_62 = arith.constant dense<0.000000e+00> : vector<16x96xf32>
      %130 = tpu.matmul %128, %129, %cst_62 {dimension_numbers = #tpu.dot_dimension_numbers<[1], [0], [0], [1], [0, 0, 1, 1], [], []>} : vector<16x5xf32>, vector<5x96xbf16>, vector<16x96xf32> -> vector<16x96xf32>
      %c0_63 = arith.constant 0 : index
      %c0_64 = arith.constant 0 : index
      %131 = vector.load %arg2[%c0_63, %c0_64] : memref<16x7xf32, #tpu.memory_space<vmem>>, vector<16x7xf32>
      %c0_65 = arith.constant 0 : index
      %c0_66 = arith.constant 0 : index
      %132 = vector.load %arg4[%c0_65, %c0_66] : memref<7x96xbf16, #tpu.memory_space<vmem>>, vector<7x96xbf16>
      %cst_67 = arith.constant dense<0.000000e+00> : vector<16x96xf32>
      %133 = tpu.matmul %131, %132, %cst_67 {dimension_numbers = #tpu.dot_dimension_numbers<[1], [0], [0], [1], [0, 0, 1, 1], [], []>} : vector<16x7xf32>, vector<7x96xbf16>, vector<16x96xf32> -> vector<16x96xf32>
      %134 = arith.addf %130, %133 : vector<16x96xf32>
      %c0_68 = arith.constant 0 : index
      %c0_69 = arith.constant 0 : index
      %135 = vector.load %arg5[%c0_68, %c0_69] : memref<1x96xf32, #tpu.memory_space<vmem>>, vector<1x96xf32>
      %136 = vector.broadcast %135 : vector<1x96xf32> to vector<16x96xf32>
      %137 = arith.addf %134, %136 : vector<16x96xf32>
      %c0_70 = arith.constant 0 : index
      %c0_71 = arith.constant 0 : index
      %138 = vector.load %arg6[%c0_70, %c0_71] : memref<16x96xf32, #tpu.memory_space<vmem>>, vector<16x96xf32>
      %139 = arith.addf %137, %138 : vector<16x96xf32>
      %c0_72 = arith.constant 0 : index
      %c0_73 = arith.constant 0 : index
      %140 = vector.load %arg23[%c0_72, %c0_73] : memref<16x96xf32, #tpu.memory_space<vmem>>, vector<16x96xf32>
      tpu.vector_store %arg23[%c0_72, %c0_73], %139 {strides = array<i32>} : memref<16x96xf32, #tpu.memory_space<vmem>>, vector<16x96xf32>,
    } else {
    }
    %3 = tpu.iota {dimensions = array<i32: 0>} : vector<8x8xi32>
    %4 = tpu.iota {dimensions = array<i32: 1>} : vector<8x8xi32>
    %5 = arith.cmpi sge, %3, %4 : vector<8x8xi32>
    %cst = arith.constant 0.000000e+00 : f32
    %cst_1 = arith.constant -1.000000e+30 : f32
    %6 = vector.broadcast %cst : f32 to vector<8x8xf32>
    %7 = vector.broadcast %cst_1 : f32 to vector<8x8xf32>
    %8 = arith.select %5, %6, %7 : vector<8x8xi1>, vector<8x8xf32>
    %c0 = arith.constant 0 : index
    %c0_2 = arith.constant 0 : index
    %9 = vector.load %arg23[%c0, %c0_2] : memref<16x96xf32, #tpu.memory_space<vmem>>, vector<16x96xf32>
    %c0_3 = arith.constant 0 : index
    %c0_4 = arith.constant 0 : index
    %c0_5 = arith.constant 0 : index
    %10 = vector.load %arg7[%c0_3, %c0_4, %c0_5] : memref<1x1x96xf32, #tpu.memory_space<vmem>>, vector<1x1x96xf32>
    %11 = vector.shape_cast %10 : vector<1x1x96xf32> to vector<1x96xf32>
    %c0_6 = arith.constant 0 : index
    %c0_7 = arith.constant 0 : index
    %c0_8 = arith.constant 0 : index
    %12 = vector.load %arg8[%c0_6, %c0_7, %c0_8] : memref<1x1x96xf32, #tpu.memory_space<vmem>>, vector<1x1x96xf32>
    %13 = vector.shape_cast %12 : vector<1x1x96xf32> to vector<1x96xf32>
    %cst_9 = arith.constant dense<0.000000e+00> : vector<16xf32>
    %14 = vector.multi_reduction <add>, %9, %cst_9 [1] : vector<16x96xf32> to vector<16xf32>
    %15 = vector.shape_cast %14 : vector<16xf32> to vector<16x1xf32>
    %cst_10 = arith.constant 9.600000e+01 : f32
    %16 = vector.broadcast %cst_10 : f32 to vector<16x1xf32>
    %17 = arith.divf %15, %16 : vector<16x1xf32>
    %18 = vector.broadcast %17 : vector<16x1xf32> to vector<16x96xf32>
    %19 = arith.subf %9, %18 : vector<16x96xf32>
    %20 = arith.mulf %19, %19 : vector<16x96xf32>
    %cst_11 = arith.constant dense<0.000000e+00> : vector<16xf32>
    %21 = vector.multi_reduction <add>, %20, %cst_11 [1] : vector<16x96xf32> to vector<16xf32>
    %22 = vector.shape_cast %21 : vector<16xf32> to vector<16x1xf32>
    %cst_12 = arith.constant 9.600000e+01 : f32
    %23 = vector.broadcast %cst_12 : f32 to vector<16x1xf32>
    %24 = arith.divf %22, %23 : vector<16x1xf32>
    %25 = vector.broadcast %17 : vector<16x1xf32> to vector<16x96xf32>
    %26 = arith.subf %9, %25 : vector<16x96xf32>
    %cst_13 = arith.constant 9.99999974E-6 : f32
    %27 = vector.broadcast %cst_13 : f32 to vector<16x1xf32>
    %28 = arith.addf %24, %27 : vector<16x1xf32>
    %29 = math.rsqrt %28 : vector<16x1xf32>
    %30 = vector.broadcast %29 : vector<16x1xf32> to vector<16x96xf32>
    %31 = arith.mulf %26, %30 : vector<16x96xf32>
    %32 = vector.broadcast %11 : vector<1x96xf32> to vector<16x96xf32>
    %33 = arith.mulf %31, %32 : vector<16x96xf32>
    %34 = vector.broadcast %13 : vector<1x96xf32> to vector<16x96xf32>
    %35 = arith.addf %33, %34 : vector<16x96xf32>
    %c0_14 = arith.constant 0 : index
    %c0_15 = arith.constant 0 : index
    %c0_16 = arith.constant 0 : index
    %36 = vector.load %arg9[%c0_14, %c0_15, %c0_16] : memref<1x96x288xbf16, #tpu.memory_space<vmem>>, vector<1x96x288xbf16>
    %37 = vector.shape_cast %36 : vector<1x96x288xbf16> to vector<96x288xbf16>
    %cst_17 = arith.constant dense<0.000000e+00> : vector<16x288xf32>
    %38 = tpu.matmul %35, %37, %cst_17 {dimension_numbers = #tpu.dot_dimension_numbers<[1], [0], [0], [1], [0, 0, 1, 1], [], []>} : vector<16x96xf32>, vector<96x288xbf16>, vector<16x288xf32> -> vector<16x288xf32>
    %39 = vector.extract_strided_slice %38 {offsets = [0, 0], sizes = [16, 96], strides = [1, 1]} : vector<16x288xf32> to vector<16x96xf32>
    %40 = vector.shape_cast %39 : vector<16x96xf32> to vector<2x8x96xf32>
    %41 = tpu.transpose %40, [0, 2, 1] : vector<2x8x96xf32> -> vector<2x96x8xf32>
    %42 = vector.shape_cast %41 : vector<2x96x8xf32> to vector<12x16x8xf32>
    %43 = tpu.transpose %42, [0, 2, 1] : vector<12x16x8xf32> -> vector<12x8x16xf32>
    %44 = vector.extract_strided_slice %38 {offsets = [0, 96], sizes = [16, 96], strides = [1, 1]} : vector<16x288xf32> to vector<16x96xf32>
    %45 = vector.shape_cast %44 : vector<16x96xf32> to vector<2x8x96xf32>
    %46 = tpu.transpose %45, [0, 2, 1] : vector<2x8x96xf32> -> vector<2x96x8xf32>
    %47 = vector.shape_cast %46 : vector<2x96x8xf32> to vector<12x16x8xf32>
    %48 = tpu.transpose %47, [0, 2, 1] : vector<12x16x8xf32> -> vector<12x8x16xf32>
    %49 = vector.extract_strided_slice %38 {offsets = [0, 192], sizes = [16, 96], strides = [1, 1]} : vector<16x288xf32> to vector<16x96xf32>
    %50 = vector.shape_cast %49 : vector<16x96xf32> to vector<2x8x96xf32>
    %51 = tpu.transpose %50, [0, 2, 1] : vector<2x8x96xf32> -> vector<2x96x8xf32>
    %52 = vector.shape_cast %51 : vector<2x96x8xf32> to vector<12x16x8xf32>
    %53 = tpu.transpose %52, [0, 2, 1] : vector<12x16x8xf32> -> vector<12x8x16xf32>
    "tpu.trace_start"() <{level = 10 : i32, message = "bqd,bkd->bqk"}> : () -> ()
    %cst_18 = arith.constant dense<0.000000e+00> : vector<12x8x8xf32>
    %54 = tpu.matmul %43, %48, %cst_18 {dimension_numbers = #tpu.dot_dimension_numbers<[2], [2], [1], [1], [0, 0, 0, 1, 1, 1], [0], [0]>} : vector<12x8x16xf32>, vector<12x8x16xf32>, vector<12x8x8xf32> -> vector<12x8x8xf32>
    "tpu.trace_stop"() : () -> ()
    %55 = vector.shape_cast %8 : vector<8x8xf32> to vector<1x8x8xf32>
    %56 = vector.broadcast %55 : vector<1x8x8xf32> to vector<12x8x8xf32>
    %57 = arith.addf %54, %56 : vector<12x8x8xf32>
    %cst_19 = arith.constant dense<0xFF800000> : vector<12x8xf32>
    %58 = vector.multi_reduction <maximumf>, %57, %cst_19 [2] : vector<12x8x8xf32> to vector<12x8xf32>
    %59 = vector.shape_cast %58 : vector<12x8xf32> to vector<12x8x1xf32>
    %60 = vector.broadcast %59 : vector<12x8x1xf32> to vector<12x8x8xf32>
    %61 = arith.subf %57, %60 : vector<12x8x8xf32>
    %62 = math.exp %61 : vector<12x8x8xf32>
    %cst_20 = arith.constant dense<0.000000e+00> : vector<12x8xf32>
    %63 = vector.multi_reduction <add>, %62, %cst_20 [2] : vector<12x8x8xf32> to vector<12x8xf32>
    %64 = vector.shape_cast %63 : vector<12x8xf32> to vector<12x8x1xf32>
    %65 = tpu.reciprocal %64 {approx = true} : vector<12x8x1xf32> -> vector<12x8x1xf32>
    %66 = vector.broadcast %65 : vector<12x8x1xf32> to vector<12x8x8xf32>
    %67 = arith.mulf %62, %66 : vector<12x8x8xf32>
    "tpu.trace_start"() <{level = 10 : i32, message = "bqk,bkd->bqd"}> : () -> ()
    %cst_21 = arith.constant dense<0.000000e+00> : vector<12x8x16xf32>
    %68 = tpu.matmul %67, %53, %cst_21 {dimension_numbers = #tpu.dot_dimension_numbers<[2], [1], [1], [2], [0, 0, 0, 1, 1, 2], [0], [0]>} : vector<12x8x8xf32>, vector<12x8x16xf32>, vector<12x8x16xf32> -> vector<12x8x16xf32>
    "tpu.trace_stop"() : () -> ()
    %69 = tpu.transpose %68, [0, 2, 1] : vector<12x8x16xf32> -> vector<12x16x8xf32>
    %70 = vector.shape_cast %69 : vector<12x16x8xf32> to vector<2x96x8xf32>
    %71 = tpu.transpose %70, [0, 2, 1] : vector<2x96x8xf32> -> vector<2x8x96xf32>
    %72 = vector.shape_cast %71 : vector<2x8x96xf32> to vector<16x96xf32>
    %c0_22 = arith.constant 0 : index
    %c0_23 = arith.constant 0 : index
    %c0_24 = arith.constant 0 : index
    %73 = vector.load %arg10[%c0_22, %c0_23, %c0_24] : memref<1x96x96xbf16, #tpu.memory_space<vmem>>, vector<1x96x96xbf16>
    %74 = vector.shape_cast %73 : vector<1x96x96xbf16> to vector<96x96xbf16>
    %cst_25 = arith.constant dense<0.000000e+00> : vector<16x96xf32>
    %75 = tpu.matmul %72, %74, %cst_25 {dimension_numbers = #tpu.dot_dimension_numbers<[1], [0], [0], [1], [0, 0, 1, 1], [], []>} : vector<16x96xf32>, vector<96x96xbf16>, vector<16x96xf32> -> vector<16x96xf32>
    %76 = arith.addf %9, %75 : vector<16x96xf32>
    %c0_26 = arith.constant 0 : index
    %c0_27 = arith.constant 0 : index
    %c0_28 = arith.constant 0 : index
    %77 = vector.load %arg11[%c0_26, %c0_27, %c0_28] : memref<1x1x96xf32, #tpu.memory_space<vmem>>, vector<1x1x96xf32>
    %78 = vector.shape_cast %77 : vector<1x1x96xf32> to vector<1x96xf32>
    %79 = vector.broadcast %78 : vector<1x96xf32> to vector<16x96xf32>
    %80 = arith.addf %76, %79 : vector<16x96xf32>
    %c0_29 = arith.constant 0 : index
    %c0_30 = arith.constant 0 : index
    %c0_31 = arith.constant 0 : index
    %81 = vector.load %arg12[%c0_29, %c0_30, %c0_31] : memref<1x1x96xf32, #tpu.memory_space<vmem>>, vector<1x1x96xf32>
    %82 = vector.shape_cast %81 : vector<1x1x96xf32> to vector<1x96xf32>
    %c0_32 = arith.constant 0 : index
    %c0_33 = arith.constant 0 : index
    %c0_34 = arith.constant 0 : index
    %83 = vector.load %arg13[%c0_32, %c0_33, %c0_34] : memref<1x1x96xf32, #tpu.memory_space<vmem>>, vector<1x1x96xf32>
    %84 = vector.shape_cast %83 : vector<1x1x96xf32> to vector<1x96xf32>
    %cst_35 = arith.constant dense<0.000000e+00> : vector<16xf32>
    %85 = vector.multi_reduction <add>, %80, %cst_35 [1] : vector<16x96xf32> to vector<16xf32>
    %86 = vector.shape_cast %85 : vector<16xf32> to vector<16x1xf32>
    %cst_36 = arith.constant 9.600000e+01 : f32
    %87 = vector.broadcast %cst_36 : f32 to vector<16x1xf32>
    %88 = arith.divf %86, %87 : vector<16x1xf32>
    %89 = vector.broadcast %88 : vector<16x1xf32> to vector<16x96xf32>
    %90 = arith.subf %80, %89 : vector<16x96xf32>
    %91 = arith.mulf %90, %90 : vector<16x96xf32>
    %cst_37 = arith.constant dense<0.000000e+00> : vector<16xf32>
    %92 = vector.multi_reduction <add>, %91, %cst_37 [1] : vector<16x96xf32> to vector<16xf32>
    %93 = vector.shape_cast %92 : vector<16xf32> to vector<16x1xf32>
    %cst_38 = arith.constant 9.600000e+01 : f32
    %94 = vector.broadcast %cst_38 : f32 to vector<16x1xf32>
    %95 = arith.divf %93, %94 : vector<16x1xf32>
    %96 = vector.broadcast %88 : vector<16x1xf32> to vector<16x96xf32>
    %97 = arith.subf %80, %96 : vector<16x96xf32>
    %cst_39 = arith.constant 9.99999974E-6 : f32
    %98 = vector.broadcast %cst_39 : f32 to vector<16x1xf32>
    %99 = arith.addf %95, %98 : vector<16x1xf32>
    %100 = math.rsqrt %99 : vector<16x1xf32>
    %101 = vector.broadcast %100 : vector<16x1xf32> to vector<16x96xf32>
    %102 = arith.mulf %97, %101 : vector<16x96xf32>
    %103 = vector.broadcast %82 : vector<1x96xf32> to vector<16x96xf32>
    %104 = arith.mulf %102, %103 : vector<16x96xf32>
    %105 = vector.broadcast %84 : vector<1x96xf32> to vector<16x96xf32>
    %106 = arith.addf %104, %105 : vector<16x96xf32>
    %c0_40 = arith.constant 0 : index
    %c0_41 = arith.constant 0 : index
    %c0_42 = arith.constant 0 : index
    %107 = vector.load %arg14[%c0_40, %c0_41, %c0_42] : memref<1x96x384xbf16, #tpu.memory_space<vmem>>, vector<1x96x384xbf16>
    %108 = vector.shape_cast %107 : vector<1x96x384xbf16> to vector<96x384xbf16>
    %cst_43 = arith.constant dense<0.000000e+00> : vector<16x384xf32>
    %109 = tpu.matmul %106, %108, %cst_43 {dimension_numbers = #tpu.dot_dimension_numbers<[1], [0], [0], [1], [0, 0, 1, 1], [], []>} : vector<16x96xf32>, vector<96x384xbf16>, vector<16x384xf32> -> vector<16x384xf32>
    %c0_44 = arith.constant 0 : index
    %c0_45 = arith.constant 0 : index
    %c0_46 = arith.constant 0 : index
    %110 = vector.load %arg15[%c0_44, %c0_45, %c0_46] : memref<1x1x384xf32, #tpu.memory_space<vmem>>, vector<1x1x384xf32>
    %111 = vector.shape_cast %110 : vector<1x1x384xf32> to vector<1x384xf32>
    %112 = vector.broadcast %111 : vector<1x384xf32> to vector<16x384xf32>
    %113 = arith.addf %109, %112 : vector<16x384xf32>
    %cst_47 = arith.constant 0.000000e+00 : f32
    %114 = vector.broadcast %cst_47 : f32 to vector<16x384xf32>
    %115 = arith.maximumf %113, %114 : vector<16x384xf32>
    %c0_48 = arith.constant 0 : index
    %c0_49 = arith.constant 0 : index
    %c0_50 = arith.constant 0 : index
    %116 = vector.load %arg16[%c0_48, %c0_49, %c0_50] : memref<1x384x96xbf16, #tpu.memory_space<vmem>>, vector<1x384x96xbf16>
    %117 = vector.shape_cast %116 : vector<1x384x96xbf16> to vector<384x96xbf16>
    %cst_51 = arith.constant dense<0.000000e+00> : vector<16x96xf32>
    %118 = tpu.matmul %115, %117, %cst_51 {dimension_numbers = #tpu.dot_dimension_numbers<[1], [0], [0], [1], [0, 0, 1, 1], [], []>} : vector<16x384xf32>, vector<384x96xbf16>, vector<16x96xf32> -> vector<16x96xf32>
    %119 = arith.addf %80, %118 : vector<16x96xf32>
    %c0_52 = arith.constant 0 : index
    %c0_53 = arith.constant 0 : index
    %c0_54 = arith.constant 0 : index
    %120 = vector.load %arg17[%c0_52, %c0_53, %c0_54] : memref<1x1x96xf32, #tpu.memory_space<vmem>>, vector<1x1x96xf32>
    %121 = vector.shape_cast %120 : vector<1x1x96xf32> to vector<1x96xf32>
    %122 = vector.broadcast %121 : vector<1x96xf32> to vector<16x96xf32>
    %123 = arith.addf %119, %122 : vector<16x96xf32>
    %c0_55 = arith.constant 0 : index
    %c0_56 = arith.constant 0 : index
    %124 = vector.load %arg23[%c0_55, %c0_56] : memref<16x96xf32, #tpu.memory_space<vmem>>, vector<16x96xf32>
    tpu.vector_store %arg23[%c0_55, %c0_56], %123 {strides = array<i32>} : memref<16x96xf32, #tpu.memory_space<vmem>>, vector<16x96xf32>,
    %c5_i32 = arith.constant 5 : i32
    %125 = arith.cmpi eq, %arg0, %c5_i32 : i32
    %126 = arith.extui %125 : i1 to i32
    %c0_i32_57 = arith.constant 0 : i32
    %127 = arith.cmpi ne, %126, %c0_i32_57 : i32
    scf.if %127 {
      %c0_58 = arith.constant 0 : index
      %c0_59 = arith.constant 0 : index
      %128 = vector.load %arg23[%c0_58, %c0_59] : memref<16x96xf32, #tpu.memory_space<vmem>>, vector<16x96xf32>
      %c0_60 = arith.constant 0 : index
      %c0_61 = arith.constant 0 : index
      %129 = vector.load %arg18[%c0_60, %c0_61] : memref<1x96xf32, #tpu.memory_space<vmem>>, vector<1x96xf32>
      %c0_62 = arith.constant 0 : index
      %c0_63 = arith.constant 0 : index
      %130 = vector.load %arg19[%c0_62, %c0_63] : memref<1x96xf32, #tpu.memory_space<vmem>>, vector<1x96xf32>
      %cst_64 = arith.constant dense<0.000000e+00> : vector<16xf32>
      %131 = vector.multi_reduction <add>, %128, %cst_64 [1] : vector<16x96xf32> to vector<16xf32>
      %132 = vector.shape_cast %131 : vector<16xf32> to vector<16x1xf32>
      %cst_65 = arith.constant 9.600000e+01 : f32
      %133 = vector.broadcast %cst_65 : f32 to vector<16x1xf32>
      %134 = arith.divf %132, %133 : vector<16x1xf32>
      %135 = vector.broadcast %134 : vector<16x1xf32> to vector<16x96xf32>
      %136 = arith.subf %128, %135 : vector<16x96xf32>
      %137 = arith.mulf %136, %136 : vector<16x96xf32>
      %cst_66 = arith.constant dense<0.000000e+00> : vector<16xf32>
      %138 = vector.multi_reduction <add>, %137, %cst_66 [1] : vector<16x96xf32> to vector<16xf32>
      %139 = vector.shape_cast %138 : vector<16xf32> to vector<16x1xf32>
      %cst_67 = arith.constant 9.600000e+01 : f32
      %140 = vector.broadcast %cst_67 : f32 to vector<16x1xf32>
      %141 = arith.divf %139, %140 : vector<16x1xf32>
      %142 = vector.broadcast %134 : vector<16x1xf32> to vector<16x96xf32>
      %143 = arith.subf %128, %142 : vector<16x96xf32>
      %cst_68 = arith.constant 9.99999974E-6 : f32
      %144 = vector.broadcast %cst_68 : f32 to vector<16x1xf32>
      %145 = arith.addf %141, %144 : vector<16x1xf32>
      %146 = math.rsqrt %145 : vector<16x1xf32>
      %147 = vector.broadcast %146 : vector<16x1xf32> to vector<16x96xf32>
      %148 = arith.mulf %143, %147 : vector<16x96xf32>
      %149 = vector.broadcast %129 : vector<1x96xf32> to vector<16x96xf32>
      %150 = arith.mulf %148, %149 : vector<16x96xf32>
      %151 = vector.broadcast %130 : vector<1x96xf32> to vector<16x96xf32>
      %152 = arith.addf %150, %151 : vector<16x96xf32>
      %c0_69 = arith.constant 0 : index
      %c0_70 = arith.constant 0 : index
      %153 = vector.load %arg20[%c0_69, %c0_70] : memref<96x3xbf16, #tpu.memory_space<vmem>>, vector<96x3xbf16>
      %cst_71 = arith.constant dense<0.000000e+00> : vector<16x3xf32>
      %154 = tpu.matmul %152, %153, %cst_71 {dimension_numbers = #tpu.dot_dimension_numbers<[1], [0], [0], [1], [0, 0, 1, 1], [], []>} : vector<16x96xf32>, vector<96x3xbf16>, vector<16x3xf32> -> vector<16x3xf32>
      %c0_72 = arith.constant 0 : index
      %c0_73 = arith.constant 0 : index
      %155 = vector.load %arg21[%c0_72, %c0_73] : memref<1x3xf32, #tpu.memory_space<vmem>>, vector<1x3xf32>
      %156 = vector.broadcast %155 : vector<1x3xf32> to vector<16x3xf32>
      %157 = arith.addf %154, %156 : vector<16x3xf32>
      %c0_74 = arith.constant 0 : index
      %c0_75 = arith.constant 0 : index
      %158 = vector.load %arg22[%c0_74, %c0_75] : memref<16x3xf32, #tpu.memory_space<vmem>>, vector<16x3xf32>
      tpu.vector_store %arg22[%c0_74, %c0_75], %157 {strides = array<i32>} : memref<16x3xf32, #tpu.memory_space<vmem>>, vector<16x3xf32>,
    } else {
    }
    return
  }
  func.func @transform_0(%arg0: i32) -> (i32, i32) {
    %c0_i32 = arith.constant 0 : i32
    %c0_i32_0 = arith.constant 0 : i32
    %c0_i32_1 = arith.constant 0 : i32
    return %c0_i32, %c0_i32_0 : i32, i32
  }
  func.func @transform_1(%arg0: i32) -> (i32, i32) {
    %c0_i32 = arith.constant 0 : i32
    %c0_i32_0 = arith.constant 0 : i32
    %c0_i32_1 = arith.constant 0 : i32
    return %c0_i32, %c0_i32_0 : i32, i32
  }
  func.func @transform_2(%arg0: i32) -> (i32, i32) {
    %c0_i32 = arith.constant 0 : i32
    %c0_i32_0 = arith.constant 0 : i32
    %c0_i32_1 = arith.constant 0 : i32
    return %c0_i32, %c0_i32_0 : i32, i32
  }
  func.func @transform_3(%arg0: i32) -> (i32, i32) {
    %c0_i32 = arith.constant 0 : i32
    %c0_i32_0 = arith.constant 0 : i32
    %c0_i32_1 = arith.constant 0 : i32
    return %c0_i32, %c0_i32_0 : i32, i32
  }
  func.func @transform_4(%arg0: i32) -> (i32, i32) {
    %c0_i32 = arith.constant 0 : i32
    %c0_i32_0 = arith.constant 0 : i32
    %c0_i32_1 = arith.constant 0 : i32
    return %c0_i32, %c0_i32_0 : i32, i32
  }
  func.func @transform_5(%arg0: i32) -> (i32, i32) {
    %c0_i32 = arith.constant 0 : i32
    %c0_i32_0 = arith.constant 0 : i32
    %c0_i32_1 = arith.constant 0 : i32
    return %c0_i32, %c0_i32_0 : i32, i32
  }
  func.func @transform_6(%arg0: i32) -> (i32, i32, i32) {
    %c0_i32 = arith.constant 0 : i32
    %c0_i32_0 = arith.constant 0 : i32
    %c0_i32_1 = arith.constant 0 : i32
    return %arg0, %c0_i32, %c0_i32_0 : i32, i32, i32
  }
  func.func @transform_7(%arg0: i32) -> (i32, i32, i32) {
    %c0_i32 = arith.constant 0 : i32
    %c0_i32_0 = arith.constant 0 : i32
    %c0_i32_1 = arith.constant 0 : i32
    return %arg0, %c0_i32, %c0_i32_0 : i32, i32, i32
  }
  func.func @transform_8(%arg0: i32) -> (i32, i32, i32) {
    %c0_i32 = arith.constant 0 : i32
    %c0_i32_0 = arith.constant 0 : i32
    %c0_i32_1 = arith.constant 0 : i32
    return %arg0, %c0_i32, %c0_i32_0 : i32, i32, i32
  }
  func.func @transform_9(%arg0: i32) -> (i32, i32, i32) {
    %c0_i32 = arith.constant 0 : i32
    %c0_i32_0 = arith.constant 0 : i32
    %c0_i32_1 = arith.constant 0 : i32
    return %arg0, %c0_i32, %c0_i32_0 : i32, i32, i32
  }
  func.func @transform_10(%arg0: i32) -> (i32, i32, i32) {
    %c0_i32 = arith.constant 0 : i32
    %c0_i32_0 = arith.constant 0 : i32
    %c0_i32_1 = arith.constant 0 : i32
    return %arg0, %c0_i32, %c0_i32_0 : i32, i32, i32
  }
  func.func @transform_11(%arg0: i32) -> (i32, i32, i32) {
    %c0_i32 = arith.constant 0 : i32
    %c0_i32_0 = arith.constant 0 : i32
    %c0_i32_1 = arith.constant 0 : i32
    return %arg0, %c0_i32, %c0_i32_0 : i32, i32, i32
  }
  func.func @transform_12(%arg0: i32) -> (i32, i32, i32) {
    %c0_i32 = arith.constant 0 : i32
    %c0_i32_0 = arith.constant 0 : i32
    %c0_i32_1 = arith.constant 0 : i32
    return %arg0, %c0_i32, %c0_i32_0 : i32, i32, i32
  }
  func.func @transform_13(%arg0: i32) -> (i32, i32, i32) {
    %c0_i32 = arith.constant 0 : i32
    %c0_i32_0 = arith.constant 0 : i32
    %c0_i32_1 = arith.constant 0 : i32
    return %arg0, %c0_i32, %c0_i32_0 : i32, i32, i32
  }
  func.func @transform_14(%arg0: i32) -> (i32, i32, i32) {
    %c0_i32 = arith.constant 0 : i32
    %c0_i32_0 = arith.constant 0 : i32
    %c0_i32_1 = arith.constant 0 : i32
    return %arg0, %c0_i32, %c0_i32_0 : i32, i32, i32
  }
  func.func @transform_15(%arg0: i32) -> (i32, i32, i32) {
    %c0_i32 = arith.constant 0 : i32
    %c0_i32_0 = arith.constant 0 : i32
    %c0_i32_1 = arith.constant 0 : i32
    return %arg0, %c0_i32, %c0_i32_0 : i32, i32, i32
  }
  func.func @transform_16(%arg0: i32) -> (i32, i32, i32) {
    %c0_i32 = arith.constant 0 : i32
    %c0_i32_0 = arith.constant 0 : i32
    %c0_i32_1 = arith.constant 0 : i32
    return %arg0, %c0_i32, %c0_i32_0 : i32, i32, i32
  }
  func.func @transform_17(%arg0: i32) -> (i32, i32) {
    %c0_i32 = arith.constant 0 : i32
    %c0_i32_0 = arith.constant 0 : i32
    %c0_i32_1 = arith.constant 0 : i32
    return %c0_i32, %c0_i32_0 : i32, i32
  }
  func.func @transform_18(%arg0: i32) -> (i32, i32) {
    %c0_i32 = arith.constant 0 : i32
    %c0_i32_0 = arith.constant 0 : i32
    %c0_i32_1 = arith.constant 0 : i32
    return %c0_i32, %c0_i32_0 : i32, i32
  }
  func.func @transform_19(%arg0: i32) -> (i32, i32) {
    %c0_i32 = arith.constant 0 : i32
    %c0_i32_0 = arith.constant 0 : i32
    %c0_i32_1 = arith.constant 0 : i32
    return %c0_i32, %c0_i32_0 : i32, i32
  }
  func.func @transform_20(%arg0: i32) -> (i32, i32) {
    %c0_i32 = arith.constant 0 : i32
    %c0_i32_0 = arith.constant 0 : i32
    %c0_i32_1 = arith.constant 0 : i32
    return %c0_i32, %c0_i32_0 : i32, i32
  }
  func.func @transform_21(%arg0: i32) -> (i32, i32) {
    %c0_i32 = arith.constant 0 : i32
    %c0_i32_0 = arith.constant 0 : i32
    %c0_i32_1 = arith.constant 0 : i32
    return %c0_i32, %c0_i32_0 : i32, i32
  }
}

</mosaic_0001>

<llo_original>
// kernel: tpu_custom_call.1
$region0: #{tpu_custom_call.1}
  #allocation0 [shape = 'u32[]', space=smem, size = 0x4, offset = 0x4, fixed_abs, tag = 'smem constant byte address 0x4 - core index']
  #allocation1 [shape = 'u32[144,128]{1,0:T(1,128)}', space=vmem, size = 0x12000, scoped, tag = 'internal scratch']
  #allocation2 [shape = 'f32[16,96]{1,0:T(8,128)}', space=vmem, size = 0x2000, scoped, tag = 'scratch operand']
  %s0 = inlined_call_operand.vmem [shape: f32[16,5], index: 0, kind: input, shape index: {}]
  %s1 = inlined_call_operand.vmem [shape: f32[16,7], index: 1, kind: input, shape index: {}]
  %s2 = inlined_call_operand.vmem [shape: bf16[5,96], index: 2, kind: input, shape index: {}]
  %s3 = inlined_call_operand.vmem [shape: bf16[7,96], index: 3, kind: input, shape index: {}]
  %s4 = inlined_call_operand.vmem [shape: f32[1,96], index: 4, kind: input, shape index: {}]
  %s5 = inlined_call_operand.vmem [shape: f32[16,96], index: 5, kind: input, shape index: {}]
  %s6 = inlined_call_operand.vmem [shape: f32[6,1,96], index: 6, kind: input, shape index: {}]
  %s7 = inlined_call_operand.vmem [shape: f32[6,1,96], index: 7, kind: input, shape index: {}]
  %s8 = inlined_call_operand.vmem [shape: bf16[6,96,288], index: 8, kind: input, shape index: {}]
  %s9 = inlined_call_operand.vmem [shape: bf16[6,96,96], index: 9, kind: input, shape index: {}]
  %s10 = inlined_call_operand.vmem [shape: f32[6,1,96], index: 10, kind: input, shape index: {}]
  %s11 = inlined_call_operand.vmem [shape: f32[6,1,96], index: 11, kind: input, shape index: {}]
  %s12 = inlined_call_operand.vmem [shape: f32[6,1,96], index: 12, kind: input, shape index: {}]
  %s13 = inlined_call_operand.vmem [shape: bf16[6,96,384], index: 13, kind: input, shape index: {}]
  %s14 = inlined_call_operand.vmem [shape: f32[6,1,384], index: 14, kind: input, shape index: {}]
  %s15 = inlined_call_operand.vmem [shape: bf16[6,384,96], index: 15, kind: input, shape index: {}]
  %s16 = inlined_call_operand.vmem [shape: f32[6,1,96], index: 16, kind: input, shape index: {}]
  %s17 = inlined_call_operand.vmem [shape: f32[1,96], index: 17, kind: input, shape index: {}]
  %s18 = inlined_call_operand.vmem [shape: f32[1,96], index: 18, kind: input, shape index: {}]
  %s19 = inlined_call_operand.vmem [shape: bf16[96,3], index: 19, kind: input, shape index: {}]
  %s20 = inlined_call_operand.vmem [shape: f32[1,3], index: 20, kind: input, shape index: {}]
  %s21 = inlined_call_operand.vmem [shape: f32[16,3], index: 21, kind: output, shape index: {}]
  %s22 = sld [smem:[#allocation0]]
  $region125: #{tpu_custom_call.1} parent=0
    _
  %s24 = ssub.s32 1, %s22
  %s25 = scalar_select 0, %s24, %s22
  loop: start=0, step=1, limit=8
  $region2: #{tpu_custom_call.1} parent=0 // loop_pre_header
    _
  $region3: #{tpu_custom_call.1} parent=0 // loop_header
    %s27 = sphi 0, %s31
    %p28 = scmp.ge.s32.totalorder %s27, 8
    %s35 = sphi 0, %s35
    %s37 = sphi 0, %s35
    %s38 = sphi 0, %s37
    %s52 = sphi 0, %s38
    %s56 = sphi 0, %s56
    %s58 = sphi 0, %s56
    %s59 = sphi 0, %s58
    %s73 = sphi 0, %s59
    %s77 = sphi 0, %s77
    %s79 = sphi 0, %s77
    %s80 = sphi 0, %s79
    %s94 = sphi 0, %s80
    %s98 = sphi 0, %s98
    %s100 = sphi 0, %s98
    %s101 = sphi 0, %s100
    %s115 = sphi 0, %s101
    %s119 = sphi 0, %s119
    %s121 = sphi 0, %s119
    %s122 = sphi 0, %s121
    %s136 = sphi 0, %s122
    %s140 = sphi 0, %s140
    %s142 = sphi 0, %s140
    %s143 = sphi 0, %s142
    %s157 = sphi 0, %s143
    %s163 = sphi 0, %s165
    %s166 = sphi 0, %s163
    %s167 = sphi 0, %s166
    %s183 = sphi 0, %s167
    %s189 = sphi 0, %s191
    %s192 = sphi 0, %s189
    %s193 = sphi 0, %s192
    %s209 = sphi 0, %s193
    %s215 = sphi 0, %s217
    %s218 = sphi 0, %s215
    %s219 = sphi 0, %s218
    %s235 = sphi 0, %s219
    %s241 = sphi 0, %s243
    %s244 = sphi 0, %s241
    %s245 = sphi 0, %s244
    %s261 = sphi 0, %s245
    %s267 = sphi 0, %s269
    %s270 = sphi 0, %s267
    %s271 = sphi 0, %s270
    %s287 = sphi 0, %s271
    %s293 = sphi 0, %s295
    %s296 = sphi 0, %s293
    %s297 = sphi 0, %s296
    %s313 = sphi 0, %s297
    %s319 = sphi 0, %s321
    %s322 = sphi 0, %s319
    %s323 = sphi 0, %s322
    %s339 = sphi 0, %s323
    %s345 = sphi 0, %s347
    %s348 = sphi 0, %s345
    %s349 = sphi 0, %s348
    %s365 = sphi 0, %s349
    %s371 = sphi 0, %s373
    %s374 = sphi 0, %s371
    %s375 = sphi 0, %s374
    %s391 = sphi 0, %s375
    %s397 = sphi 0, %s399
    %s400 = sphi 0, %s397
    %s401 = sphi 0, %s400
    %s417 = sphi 0, %s401
    %s423 = sphi 0, %s425
    %s426 = sphi 0, %s423
    %s427 = sphi 0, %s426
    %s443 = sphi 0, %s427
    %s447 = sphi 0, %s447
    %s449 = sphi 0, %s447
    %s450 = sphi 0, %s449
    %s464 = sphi 0, %s450
    %s468 = sphi 0, %s468
    %s470 = sphi 0, %s468
    %s471 = sphi 0, %s470
    %s485 = sphi 0, %s471
    %s489 = sphi 0, %s489
    %s491 = sphi 0, %s489
    %s492 = sphi 0, %s491
    %s506 = sphi 0, %s492
    %s510 = sphi 0, %s510
    %s512 = sphi 0, %s510
    %s513 = sphi 0, %s512
    %s527 = sphi 0, %s513
    %s531 = sphi 0, %s531
    %s533 = sphi 0, %s531
    %s534 = sphi 0, %s533
    %s548 = sphi 0, %s534
  $region4: #{tpu_custom_call.1} parent=0 // loop_header_branch
    %30 = sbr.rel (%p28) target = $region8
  $region5: #{tpu_custom_call.1} parent=0 // loop_body
    %s32 = ssub.s32 %s27, 1
    %s33 = ssub.s32 %s27, 2
    %s34 = sadd.s32 %s27, 1
    %s36 = sadd.s32 %s35, 1
    %p39 = scmp.eq.s32.totalorder %s27, 5
    %p40 = scmp.ne.s32.totalorder %s35, %s37
    %p41 = scmp.eq.s32.totalorder %s27, 0
    %p42 = por %p40, %p41
    %p43 = scmp.ne.s32.totalorder %s35, %s37
    %p44 = scmp.eq.s32.totalorder %s32, 5
    %p45 = por %p43, %p44
    %p46 = scmp.ne.s32.totalorder %s37, %s38
    %p47 = scmp.eq.s32.totalorder %s32, 0
    %p48 = por %p46, %p47
    %p49 = scmp.ne.s32.totalorder %s37, %s38
    %p50 = scmp.eq.s32.totalorder %s33, 5
    %p51 = por %p49, %p50
    %p53 = scmp.ne.s32.totalorder %s38, %s52
    %p54 = scmp.eq.s32.totalorder %s33, 0
    %p55 = por %p53, %p54
    %s57 = sadd.s32 %s56, 1
    %p60 = scmp.eq.s32.totalorder %s27, 5
    %p61 = scmp.ne.s32.totalorder %s56, %s58
    %p62 = scmp.eq.s32.totalorder %s27, 0
    %p63 = por %p61, %p62
    %p64 = scmp.ne.s32.totalorder %s56, %s58
    %p65 = scmp.eq.s32.totalorder %s32, 5
    %p66 = por %p64, %p65
    %p67 = scmp.ne.s32.totalorder %s58, %s59
    %p68 = scmp.eq.s32.totalorder %s32, 0
    %p69 = por %p67, %p68
    %p70 = scmp.ne.s32.totalorder %s58, %s59
    %p71 = scmp.eq.s32.totalorder %s33, 5
    %p72 = por %p70, %p71
    %p74 = scmp.ne.s32.totalorder %s59, %s73
    %p75 = scmp.eq.s32.totalorder %s33, 0
    %p76 = por %p74, %p75
    %s78 = sadd.s32 %s77, 1
    %p81 = scmp.eq.s32.totalorder %s27, 5
    %p82 = scmp.ne.s32.totalorder %s77, %s79
    %p83 = scmp.eq.s32.totalorder %s27, 0
    %p84 = por %p82, %p83
    %p85 = scmp.ne.s32.totalorder %s77, %s79
    %p86 = scmp.eq.s32.totalorder %s32, 5
    %p87 = por %p85, %p86
    %p88 = scmp.ne.s32.totalorder %s79, %s80
    %p89 = scmp.eq.s32.totalorder %s32, 0
    %p90 = por %p88, %p89
    %p91 = scmp.ne.s32.totalorder %s79, %s80
    %p92 = scmp.eq.s32.totalorder %s33, 5
    %p93 = por %p91, %p92
    %p95 = scmp.ne.s32.totalorder %s80, %s94
    %p96 = scmp.eq.s32.totalorder %s33, 0
    %p97 = por %p95, %p96
    %s99 = sadd.s32 %s98, 1
    %p102 = scmp.eq.s32.totalorder %s27, 5
    %p103 = scmp.ne.s32.totalorder %s98, %s100
    %p104 = scmp.eq.s32.totalorder %s27, 0
    %p105 = por %p103, %p104
    %p106 = scmp.ne.s32.totalorder %s98, %s100
    %p107 = scmp.eq.s32.totalorder %s32, 5
    %p108 = por %p106, %p107
    %p109 = scmp.ne.s32.totalorder %s100, %s101
    %p110 = scmp.eq.s32.totalorder %s32, 0
    %p111 = por %p109, %p110
    %p112 = scmp.ne.s32.totalorder %s100, %s101
    %p113 = scmp.eq.s32.totalorder %s33, 5
    %p114 = por %p112, %p113
    %p116 = scmp.ne.s32.totalorder %s101, %s115
    %p117 = scmp.eq.s32.totalorder %s33, 0
    %p118 = por %p116, %p117
    %s120 = sadd.s32 %s119, 1
    %p123 = scmp.eq.s32.totalorder %s27, 5
    %p124 = scmp.ne.s32.totalorder %s119, %s121
    %p125 = scmp.eq.s32.totalorder %s27, 0
    %p126 = por %p124, %p125
    %p127 = scmp.ne.s32.totalorder %s119, %s121
    %p128 = scmp.eq.s32.totalorder %s32, 5
    %p129 = por %p127, %p128
    %p130 = scmp.ne.s32.totalorder %s121, %s122
    %p131 = scmp.eq.s32.totalorder %s32, 0
    %p132 = por %p130, %p131
    %p133 = scmp.ne.s32.totalorder %s121, %s122
    %p134 = scmp.eq.s32.totalorder %s33, 5
    %p135 = por %p133, %p134
    %p137 = scmp.ne.s32.totalorder %s122, %s136
    %p138 = scmp.eq.s32.totalorder %s33, 0
    %p139 = por %p137, %p138
    %s141 = sadd.s32 %s140, 1
    %p144 = scmp.eq.s32.totalorder %s27, 5
    %p145 = scmp.ne.s32.totalorder %s140, %s142
    %p146 = scmp.eq.s32.totalorder %s27, 0
    %p147 = por %p145, %p146
    %p148 = scmp.ne.s32.totalorder %s140, %s142
    %p149 = scmp.eq.s32.totalorder %s32, 5
    %p150 = por %p148, %p149
    %p151 = scmp.ne.s32.totalorder %s142, %s143
    %p152 = scmp.eq.s32.totalorder %s32, 0
    %p153 = por %p151, %p152
    %p154 = scmp.ne.s32.totalorder %s142, %s143
    %p155 = scmp.eq.s32.totalorder %s33, 5
    %p156 = por %p154, %p155
    %p158 = scmp.ne.s32.totalorder %s143, %s157
    %p159 = scmp.eq.s32.totalorder %s33, 0
    %p160 = por %p158, %p159
    %s161 = ssub.s32 %s27, %s34
    %p162 = scmp.eq.s32.totalorder %s161, 0
    %s164 = sadd.s32 %s163, 1
    %s165 = scalar_select %p162, %s163, %s164
    %p168 = pneg %p162
    %p169 = scmp.eq.s32.totalorder %s27, 5
    %p170 = por %p168, %p169
    %p171 = scmp.ne.s32.totalorder %s163, %s166
    %p172 = scmp.eq.s32.totalorder %s27, 0
    %p173 = por %p171, %p172
    %p174 = scmp.ne.s32.totalorder %s163, %s166
    %p175 = scmp.eq.s32.totalorder %s32, 5
    %p176 = por %p174, %p175
    %p177 = scmp.ne.s32.totalorder %s166, %s167
    %p178 = scmp.eq.s32.totalorder %s32, 0
    %p179 = por %p177, %p178
    %p180 = scmp.ne.s32.totalorder %s166, %s167
    %p181 = scmp.eq.s32.totalorder %s33, 5
    %p182 = por %p180, %p181
    %p184 = scmp.ne.s32.totalorder %s167, %s183
    %p185 = scmp.eq.s32.totalorder %s33, 0
    %p186 = por %p184, %p185
    %s187 = ssub.s32 %s27, %s34
    %p188 = scmp.eq.s32.totalorder %s187, 0
    %s190 = sadd.s32 %s189, 1
    %s191 = scalar_select %p188, %s189, %s190
    %p194 = pneg %p188
    %p195 = scmp.eq.s32.totalorder %s27, 5
    %p196 = por %p194, %p195
    %p197 = scmp.ne.s32.totalorder %s189, %s192
    %p198 = scmp.eq.s32.totalorder %s27, 0
    %p199 = por %p197, %p198
    %p200 = scmp.ne.s32.totalorder %s189, %s192
    %p201 = scmp.eq.s32.totalorder %s32, 5
    %p202 = por %p200, %p201
    %p203 = scmp.ne.s32.totalorder %s192, %s193
    %p204 = scmp.eq.s32.totalorder %s32, 0
    %p205 = por %p203, %p204
    %p206 = scmp.ne.s32.totalorder %s192, %s193
    %p207 = scmp.eq.s32.totalorder %s33, 5
    %p208 = por %p206, %p207
    %p210 = scmp.ne.s32.totalorder %s193, %s209
    %p211 = scmp.eq.s32.totalorder %s33, 0
    %p212 = por %p210, %p211
    %s213 = ssub.s32 %s27, %s34
    %p214 = scmp.eq.s32.totalorder %s213, 0
    %s216 = sadd.s32 %s215, 1
    %s217 = scalar_select %p214, %s215, %s216
    %p220 = pneg %p214
    %p221 = scmp.eq.s32.totalorder %s27, 5
    %p222 = por %p220, %p221
    %p223 = scmp.ne.s32.totalorder %s215, %s218
    %p224 = scmp.eq.s32.totalorder %s27, 0
    %p225 = por %p223, %p224
    %p226 = scmp.ne.s32.totalorder %s215, %s218
    %p227 = scmp.eq.s32.totalorder %s32, 5
    %p228 = por %p226, %p227
    %p229 = scmp.ne.s32.totalorder %s218, %s219
    %p230 = scmp.eq.s32.totalorder %s32, 0
    %p231 = por %p229, %p230
    %p232 = scmp.ne.s32.totalorder %s218, %s219
    %p233 = scmp.eq.s32.totalorder %s33, 5
    %p234 = por %p232, %p233
    %p236 = scmp.ne.s32.totalorder %s219, %s235
    %p237 = scmp.eq.s32.totalorder %s33, 0
    %p238 = por %p236, %p237
    %s239 = ssub.s32 %s27, %s34
    %p240 = scmp.eq.s32.totalorder %s239, 0
    %s242 = sadd.s32 %s241, 1
    %s243 = scalar_select %p240, %s241, %s242
    %p246 = pneg %p240
    %p247 = scmp.eq.s32.totalorder %s27, 5
    %p248 = por %p246, %p247
    %p249 = scmp.ne.s32.totalorder %s241, %s244
    %p250 = scmp.eq.s32.totalorder %s27, 0
    %p251 = por %p249, %p250
    %p252 = scmp.ne.s32.totalorder %s241, %s244
    %p253 = scmp.eq.s32.totalorder %s32, 5
    %p254 = por %p252, %p253
    %p255 = scmp.ne.s32.totalorder %s244, %s245
    %p256 = scmp.eq.s32.totalorder %s32, 0
    %p257 = por %p255, %p256
    %p258 = scmp.ne.s32.totalorder %s244, %s245
    %p259 = scmp.eq.s32.totalorder %s33, 5
    %p260 = por %p258, %p259
    %p262 = scmp.ne.s32.totalorder %s245, %s261
    %p263 = scmp.eq.s32.totalorder %s33, 0
    %p264 = por %p262, %p263
    %s265 = ssub.s32 %s27, %s34
    %p266 = scmp.eq.s32.totalorder %s265, 0
    %s268 = sadd.s32 %s267, 1
    %s269 = scalar_select %p266, %s267, %s268
    %p272 = pneg %p266
    %p273 = scmp.eq.s32.totalorder %s27, 5
    %p274 = por %p272, %p273
    %p275 = scmp.ne.s32.totalorder %s267, %s270
    %p276 = scmp.eq.s32.totalorder %s27, 0
    %p277 = por %p275, %p276
    %p278 = scmp.ne.s32.totalorder %s267, %s270
    %p279 = scmp.eq.s32.totalorder %s32, 5
    %p280 = por %p278, %p279
    %p281 = scmp.ne.s32.totalorder %s270, %s271
    %p282 = scmp.eq.s32.totalorder %s32, 0
    %p283 = por %p281, %p282
    %p284 = scmp.ne.s32.totalorder %s270, %s271
    %p285 = scmp.eq.s32.totalorder %s33, 5
    %p286 = por %p284, %p285
    %p288 = scmp.ne.s32.totalorder %s271, %s287
    %p289 = scmp.eq.s32.totalorder %s33, 0
    %p290 = por %p288, %p289
    %s291 = ssub.s32 %s27, %s34
    %p292 = scmp.eq.s32.totalorder %s291, 0
    %s294 = sadd.s32 %s293, 1
    %s295 = scalar_select %p292, %s293, %s294
    %p298 = pneg %p292
    %p299 = scmp.eq.s32.totalorder %s27, 5
    %p300 = por %p298, %p299
    %p301 = scmp.ne.s32.totalorder %s293, %s296
    %p302 = scmp.eq.s32.totalorder %s27, 0
    %p303 = por %p301, %p302
    %p304 = scmp.ne.s32.totalorder %s293, %s296
    %p305 = scmp.eq.s32.totalorder %s32, 5
    %p306 = por %p304, %p305
    %p307 = scmp.ne.s32.totalorder %s296, %s297
    %p308 = scmp.eq.s32.totalorder %s32, 0
    %p309 = por %p307, %p308
    %p310 = scmp.ne.s32.totalorder %s296, %s297
    %p311 = scmp.eq.s32.totalorder %s33, 5
    %p312 = por %p310, %p311
    %p314 = scmp.ne.s32.totalorder %s297, %s313
    %p315 = scmp.eq.s32.totalorder %s33, 0
    %p316 = por %p314, %p315
    %s317 = ssub.s32 %s27, %s34
    %p318 = scmp.eq.s32.totalorder %s317, 0
    %s320 = sadd.s32 %s319, 1
    %s321 = scalar_select %p318, %s319, %s320
    %p324 = pneg %p318
    %p325 = scmp.eq.s32.totalorder %s27, 5
    %p326 = por %p324, %p325
    %p327 = scmp.ne.s32.totalorder %s319, %s322
    %p328 = scmp.eq.s32.totalorder %s27, 0
    %p329 = por %p327, %p328
    %p330 = scmp.ne.s32.totalorder %s319, %s322
    %p331 = scmp.eq.s32.totalorder %s32, 5
    %p332 = por %p330, %p331
    %p333 = scmp.ne.s32.totalorder %s322, %s323
    %p334 = scmp.eq.s32.totalorder %s32, 0
    %p335 = por %p333, %p334
    %p336 = scmp.ne.s32.totalorder %s322, %s323
    %p337 = scmp.eq.s32.totalorder %s33, 5
    %p338 = por %p336, %p337
    %p340 = scmp.ne.s32.totalorder %s323, %s339
    %p341 = scmp.eq.s32.totalorder %s33, 0
    %p342 = por %p340, %p341
    %s343 = ssub.s32 %s27, %s34
    %p344 = scmp.eq.s32.totalorder %s343, 0
    %s346 = sadd.s32 %s345, 1
    %s347 = scalar_select %p344, %s345, %s346
    %p350 = pneg %p344
    %p351 = scmp.eq.s32.totalorder %s27, 5
    %p352 = por %p350, %p351
    %p353 = scmp.ne.s32.totalorder %s345, %s348
    %p354 = scmp.eq.s32.totalorder %s27, 0
    %p355 = por %p353, %p354
    %p356 = scmp.ne.s32.totalorder %s345, %s348
    %p357 = scmp.eq.s32.totalorder %s32, 5
    %p358 = por %p356, %p357
    %p359 = scmp.ne.s32.totalorder %s348, %s349
    %p360 = scmp.eq.s32.totalorder %s32, 0
    %p361 = por %p359, %p360
    %p362 = scmp.ne.s32.totalorder %s348, %s349
    %p363 = scmp.eq.s32.totalorder %s33, 5
    %p364 = por %p362, %p363
    %p366 = scmp.ne.s32.totalorder %s349, %s365
    %p367 = scmp.eq.s32.totalorder %s33, 0
    %p368 = por %p366, %p367
    %s369 = ssub.s32 %s27, %s34
    %p370 = scmp.eq.s32.totalorder %s369, 0
    %s372 = sadd.s32 %s371, 1
    %s373 = scalar_select %p370, %s371, %s372
    %p376 = pneg %p370
    %p377 = scmp.eq.s32.totalorder %s27, 5
    %p378 = por %p376, %p377
    %p379 = scmp.ne.s32.totalorder %s371, %s374
    %p380 = scmp.eq.s32.totalorder %s27, 0
    %p381 = por %p379, %p380
    %p382 = scmp.ne.s32.totalorder %s371, %s374
    %p383 = scmp.eq.s32.totalorder %s32, 5
    %p384 = por %p382, %p383
    %p385 = scmp.ne.s32.totalorder %s374, %s375
    %p386 = scmp.eq.s32.totalorder %s32, 0
    %p387 = por %p385, %p386
    %p388 = scmp.ne.s32.totalorder %s374, %s375
    %p389 = scmp.eq.s32.totalorder %s33, 5
    %p390 = por %p388, %p389
    %p392 = scmp.ne.s32.totalorder %s375, %s391
    %p393 = scmp.eq.s32.totalorder %s33, 0
    %p394 = por %p392, %p393
    %s395 = ssub.s32 %s27, %s34
    %p396 = scmp.eq.s32.totalorder %s395, 0
    %s398 = sadd.s32 %s397, 1
    %s399 = scalar_select %p396, %s397, %s398
    %p402 = pneg %p396
    %p403 = scmp.eq.s32.totalorder %s27, 5
    %p404 = por %p402, %p403
    %p405 = scmp.ne.s32.totalorder %s397, %s400
    %p406 = scmp.eq.s32.totalorder %s27, 0
    %p407 = por %p405, %p406
    %p408 = scmp.ne.s32.totalorder %s397, %s400
    %p409 = scmp.eq.s32.totalorder %s32, 5
    %p410 = por %p408, %p409
    %p411 = scmp.ne.s32.totalorder %s400, %s401
    %p412 = scmp.eq.s32.totalorder %s32, 0
    %p413 = por %p411, %p412
    %p414 = scmp.ne.s32.totalorder %s400, %s401
    %p415 = scmp.eq.s32.totalorder %s33, 5
    %p416 = por %p414, %p415
    %p418 = scmp.ne.s32.totalorder %s401, %s417
    %p419 = scmp.eq.s32.totalorder %s33, 0
    %p420 = por %p418, %p419
    %s421 = ssub.s32 %s27, %s34
    %p422 = scmp.eq.s32.totalorder %s421, 0
    %s424 = sadd.s32 %s423, 1
    %s425 = scalar_select %p422, %s423, %s424
    %p428 = pneg %p422
    %p429 = scmp.eq.s32.totalorder %s27, 5
    %p430 = por %p428, %p429
    %p431 = scmp.ne.s32.totalorder %s423, %s426
    %p432 = scmp.eq.s32.totalorder %s27, 0
    %p433 = por %p431, %p432
    %p434 = scmp.ne.s32.totalorder %s423, %s426
    %p435 = scmp.eq.s32.totalorder %s32, 5
    %p436 = por %p434, %p435
    %p437 = scmp.ne.s32.totalorder %s426, %s427
    %p438 = scmp.eq.s32.totalorder %s32, 0
    %p439 = por %p437, %p438
    %p440 = scmp.ne.s32.totalorder %s426, %s427
    %p441 = scmp.eq.s32.totalorder %s33, 5
    %p442 = por %p440, %p441
    %p444 = scmp.ne.s32.totalorder %s427, %s443
    %p445 = scmp.eq.s32.totalorder %s33, 0
    %p446 = por %p444, %p445
    %s448 = sadd.s32 %s447, 1
    %p451 = scmp.eq.s32.totalorder %s27, 5
    %p452 = scmp.ne.s32.totalorder %s447, %s449
    %p453 = scmp.eq.s32.totalorder %s27, 0
    %p454 = por %p452, %p453
    %p455 = scmp.ne.s32.totalorder %s447, %s449
    %p456 = scmp.eq.s32.totalorder %s32, 5
    %p457 = por %p455, %p456
    %p458 = scmp.ne.s32.totalorder %s449, %s450
    %p459 = scmp.eq.s32.totalorder %s32, 0
    %p460 = por %p458, %p459
    %p461 = scmp.ne.s32.totalorder %s449, %s450
    %p462 = scmp.eq.s32.totalorder %s33, 5
    %p463 = por %p461, %p462
    %p465 = scmp.ne.s32.totalorder %s450, %s464
    %p466 = scmp.eq.s32.totalorder %s33, 0
    %p467 = por %p465, %p466
    %s469 = sadd.s32 %s468, 1
    %p472 = scmp.eq.s32.totalorder %s27, 5
    %p473 = scmp.ne.s32.totalorder %s468, %s470
    %p474 = scmp.eq.s32.totalorder %s27, 0
    %p475 = por %p473, %p474
    %p476 = scmp.ne.s32.totalorder %s468, %s470
    %p477 = scmp.eq.s32.totalorder %s32, 5
    %p478 = por %p476, %p477
    %p479 = scmp.ne.s32.totalorder %s470, %s471
    %p480 = scmp.eq.s32.totalorder %s32, 0
    %p481 = por %p479, %p480
    %p482 = scmp.ne.s32.totalorder %s470, %s471
    %p483 = scmp.eq.s32.totalorder %s33, 5
    %p484 = por %p482, %p483
    %p486 = scmp.ne.s32.totalorder %s471, %s485
    %p487 = scmp.eq.s32.totalorder %s33, 0
    %p488 = por %p486, %p487
    %s490 = sadd.s32 %s489, 1
    %p493 = scmp.eq.s32.totalorder %s27, 5
    %p494 = scmp.ne.s32.totalorder %s489, %s491
    %p495 = scmp.eq.s32.totalorder %s27, 0
    %p496 = por %p494, %p495
    %p497 = scmp.ne.s32.totalorder %s489, %s491
    %p498 = scmp.eq.s32.totalorder %s32, 5
    %p499 = por %p497, %p498
    %p500 = scmp.ne.s32.totalorder %s491, %s492
    %p501 = scmp.eq.s32.totalorder %s32, 0
    %p502 = por %p500, %p501
    %p503 = scmp.ne.s32.totalorder %s491, %s492
    %p504 = scmp.eq.s32.totalorder %s33, 5
    %p505 = por %p503, %p504
    %p507 = scmp.ne.s32.totalorder %s492, %s506
    %p508 = scmp.eq.s32.totalorder %s33, 0
    %p509 = por %p507, %p508
    %s511 = sadd.s32 %s510, 1
    %p514 = scmp.eq.s32.totalorder %s27, 5
    %p515 = scmp.ne.s32.totalorder %s510, %s512
    %p516 = scmp.eq.s32.totalorder %s27, 0
    %p517 = por %p515, %p516
    %p518 = scmp.ne.s32.totalorder %s510, %s512
    %p519 = scmp.eq.s32.totalorder %s32, 5
    %p520 = por %p518, %p519
    %p521 = scmp.ne.s32.totalorder %s512, %s513
    %p522 = scmp.eq.s32.totalorder %s32, 0
    %p523 = por %p521, %p522
    %p524 = scmp.ne.s32.totalorder %s512, %s513
    %p525 = scmp.eq.s32.totalorder %s33, 5
    %p526 = por %p524, %p525
    %p528 = scmp.ne.s32.totalorder %s513, %s527
    %p529 = scmp.eq.s32.totalorder %s33, 0
    %p530 = por %p528, %p529
    %s532 = sadd.s32 %s531, 1
    %p535 = scmp.eq.s32.totalorder %s27, 5
    %p536 = scmp.ne.s32.totalorder %s531, %s533
    %p537 = scmp.eq.s32.totalorder %s27, 0
    %p538 = por %p536, %p537
    %p539 = scmp.ne.s32.totalorder %s531, %s533
    %p540 = scmp.eq.s32.totalorder %s32, 5
    %p541 = por %p539, %p540
    %p542 = scmp.ne.s32.totalorder %s533, %s534
    %p543 = scmp.eq.s32.totalorder %s32, 0
    %p544 = por %p542, %p543
    %p545 = scmp.ne.s32.totalorder %s533, %s534
    %p546 = scmp.eq.s32.totalorder %s33, 5
    %p547 = por %p545, %p546
    %p549 = scmp.ne.s32.totalorder %s534, %s548
    %p550 = scmp.eq.s32.totalorder %s33, 0
    %p551 = por %p549, %p550
    %p552 = scmp.le.s32.totalorder 1, %s27
    %p553 = scmp.lt.s32.totalorder %s27, 7
    %p554 = pnand %p552, %p553
    %p555 = pneg %p554
    // Predicated region
    $region9: #{tpu_custom_call.1} parent=5 // pred_check
      _
    $region10: #{tpu_custom_call.1} parent=5 // pred_check_branch
      %557 = sbr.rel (%p554) target = $region12
    $region11: #{tpu_custom_call.1} parent=5 // pred_region
      %s558 = ssub.s32 %s27, 1
      // Predicated region
      $region13: #{tpu_custom_call.1} parent=11 // pred_check
        %p559 = pneg %p48
      $region14: #{tpu_custom_call.1} parent=11 // pred_check_branch
        %561 = sbr.rel (%p559) target = $region16
      $region15: #{tpu_custom_call.1} parent=11 // pred_region
        _
      $region16: #{tpu_custom_call.1} parent=11 // pred_fallthru
        _
      // Predicated region
      $region17: #{tpu_custom_call.1} parent=11 // pred_check
        %p562 = pneg %p69
      $region18: #{tpu_custom_call.1} parent=11 // pred_check_branch
        %564 = sbr.rel (%p562) target = $region20
      $region19: #{tpu_custom_call.1} parent=11 // pred_region
        _
      $region20: #{tpu_custom_call.1} parent=11 // pred_fallthru
        _
      // Predicated region
      $region21: #{tpu_custom_call.1} parent=11 // pred_check
        %p565 = pneg %p90
      $region22: #{tpu_custom_call.1} parent=11 // pred_check_branch
        %567 = sbr.rel (%p565) target = $region24
      $region23: #{tpu_custom_call.1} parent=11 // pred_region
        _
      $region24: #{tpu_custom_call.1} parent=11 // pred_fallthru
        _
      // Predicated region
      $region25: #{tpu_custom_call.1} parent=11 // pred_check
        %p568 = pneg %p111
      $region26: #{tpu_custom_call.1} parent=11 // pred_check_branch
        %570 = sbr.rel (%p568) target = $region28
      $region27: #{tpu_custom_call.1} parent=11 // pred_region
        _
      $region28: #{tpu_custom_call.1} parent=11 // pred_fallthru
        _
      // Predicated region
      $region29: #{tpu_custom_call.1} parent=11 // pred_check
        %p571 = pneg %p132
      $region30: #{tpu_custom_call.1} parent=11 // pred_check_branch
        %573 = sbr.rel (%p571) target = $region32
      $region31: #{tpu_custom_call.1} parent=11 // pred_region
        _
      $region32: #{tpu_custom_call.1} parent=11 // pred_fallthru
        _
      // Predicated region
      $region33: #{tpu_custom_call.1} parent=11 // pred_check
        %p574 = pneg %p153
      $region34: #{tpu_custom_call.1} parent=11 // pred_check_branch
        %576 = sbr.rel (%p574) target = $region36
      $region35: #{tpu_custom_call.1} parent=11 // pred_region
        _
      $region36: #{tpu_custom_call.1} parent=11 // pred_fallthru
        _
      // Predicated region
      $region37: #{tpu_custom_call.1} parent=11 // pred_check
        %p577 = pneg %p460
      $region38: #{tpu_custom_call.1} parent=11 // pred_check_branch
        %579 = sbr.rel (%p577) target = $region40
      $region39: #{tpu_custom_call.1} parent=11 // pred_region
        _
      $region40: #{tpu_custom_call.1} parent=11 // pred_fallthru
        _
      // Predicated region
      $region41: #{tpu_custom_call.1} parent=11 // pred_check
        %p580 = pneg %p481
      $region42: #{tpu_custom_call.1} parent=11 // pred_check_branch
        %582 = sbr.rel (%p580) target = $region44
      $region43: #{tpu_custom_call.1} parent=11 // pred_region
        _
      $region44: #{tpu_custom_call.1} parent=11 // pred_fallthru
        _
      // Predicated region
      $region45: #{tpu_custom_call.1} parent=11 // pred_check
        %p583 = pneg %p502
      $region46: #{tpu_custom_call.1} parent=11 // pred_check_branch
        %585 = sbr.rel (%p583) target = $region48
      $region47: #{tpu_custom_call.1} parent=11 // pred_region
        _
      $region48: #{tpu_custom_call.1} parent=11 // pred_fallthru
        _
      // Predicated region
      $region49: #{tpu_custom_call.1} parent=11 // pred_check
        %p586 = pneg %p523
      $region50: #{tpu_custom_call.1} parent=11 // pred_check_branch
        %588 = sbr.rel (%p586) target = $region52
      $region51: #{tpu_custom_call.1} parent=11 // pred_region
        _
      $region52: #{tpu_custom_call.1} parent=11 // pred_fallthru
        _
    $region12: #{tpu_custom_call.1} parent=5 // pred_fallthru
      _
    %p589 = scmp.lt.s32.totalorder %s27, 6
    // Predicated region
    $region53: #{tpu_custom_call.1} parent=5 // pred_check
      %p590 = pneg %p589
    $region54: #{tpu_custom_call.1} parent=5 // pred_check_branch
      %592 = sbr.rel (%p590) target = $region56
    $region55: #{tpu_custom_call.1} parent=5 // pred_region
      // Predicated region
      $region57: #{tpu_custom_call.1} parent=55 // pred_check
        %p593 = pneg %p173
      $region58: #{tpu_custom_call.1} parent=55 // pred_check_branch
        %595 = sbr.rel (%p593) target = $region60
      $region59: #{tpu_custom_call.1} parent=55 // pred_region
        %p596 = scmp.lt.s32.totalorder %s27, 5
        %s597 = scalar_select %p596, %s27, 5
        %s598 = scalar_lea.vmem %s6, %s597
      $region60: #{tpu_custom_call.1} parent=55 // pred_fallthru
        _
      // Predicated region
      $region61: #{tpu_custom_call.1} parent=55 // pred_check
        %p599 = pneg %p199
      $region62: #{tpu_custom_call.1} parent=55 // pred_check_branch
        %601 = sbr.rel (%p599) target = $region64
      $region63: #{tpu_custom_call.1} parent=55 // pred_region
        %p602 = scmp.lt.s32.totalorder %s27, 5
        %s603 = scalar_select %p602, %s27, 5
        %s604 = scalar_lea.vmem %s7, %s603
      $region64: #{tpu_custom_call.1} parent=55 // pred_fallthru
        _
      // Predicated region
      $region65: #{tpu_custom_call.1} parent=55 // pred_check
        %p605 = pneg %p225
      $region66: #{tpu_custom_call.1} parent=55 // pred_check_branch
        %607 = sbr.rel (%p605) target = $region68
      $region67: #{tpu_custom_call.1} parent=55 // pred_region
        %p608 = scmp.lt.s32.totalorder %s27, 5
        %s609 = scalar_select %p608, %s27, 5
        %s610 = smul.addr %s609, 36
        %s611 = smul.addr %s610, 4
        %s612 = scalar_lea.vmem %s8, %s611
      $region68: #{tpu_custom_call.1} parent=55 // pred_fallthru
        _
      // Predicated region
      $region69: #{tpu_custom_call.1} parent=55 // pred_check
        %p613 = pneg %p251
      $region70: #{tpu_custom_call.1} parent=55 // pred_check_branch
        %615 = sbr.rel (%p613) target = $region72
      $region71: #{tpu_custom_call.1} parent=55 // pred_region
        %p616 = scmp.lt.s32.totalorder %s27, 5
        %s617 = scalar_select %p616, %s27, 5
        %s618 = smul.addr %s617, 12
        %s619 = smul.addr %s618, 4
        %s620 = scalar_lea.vmem %s9, %s619
      $region72: #{tpu_custom_call.1} parent=55 // pred_fallthru
        _
      // Predicated region
      $region73: #{tpu_custom_call.1} parent=55 // pred_check
        %p621 = pneg %p277
      $region74: #{tpu_custom_call.1} parent=55 // pred_check_branch
        %623 = sbr.rel (%p621) target = $region76
      $region75: #{tpu_custom_call.1} parent=55 // pred_region
        %p624 = scmp.lt.s32.totalorder %s27, 5
        %s625 = scalar_select %p624, %s27, 5
        %s626 = scalar_lea.vmem %s10, %s625
      $region76: #{tpu_custom_call.1} parent=55 // pred_fallthru
        _
      // Predicated region
      $region77: #{tpu_custom_call.1} parent=55 // pred_check
        %p627 = pneg %p303
      $region78: #{tpu_custom_call.1} parent=55 // pred_check_branch
        %629 = sbr.rel (%p627) target = $region80
      $region79: #{tpu_custom_call.1} parent=55 // pred_region
        %p630 = scmp.lt.s32.totalorder %s27, 5
        %s631 = scalar_select %p630, %s27, 5
        %s632 = scalar_lea.vmem %s11, %s631
      $region80: #{tpu_custom_call.1} parent=55 // pred_fallthru
        _
      // Predicated region
      $region81: #{tpu_custom_call.1} parent=55 // pred_check
        %p633 = pneg %p329
      $region82: #{tpu_custom_call.1} parent=55 // pred_check_branch
        %635 = sbr.rel (%p633) target = $region84
      $region83: #{tpu_custom_call.1} parent=55 // pred_region
        %p636 = scmp.lt.s32.totalorder %s27, 5
        %s637 = scalar_select %p636, %s27, 5
        %s638 = scalar_lea.vmem %s12, %s637
      $region84: #{tpu_custom_call.1} parent=55 // pred_fallthru
        _
      // Predicated region
      $region85: #{tpu_custom_call.1} parent=55 // pred_check
        %p639 = pneg %p355
      $region86: #{tpu_custom_call.1} parent=55 // pred_check_branch
        %641 = sbr.rel (%p639) target = $region88
      $region87: #{tpu_custom_call.1} parent=55 // pred_region
        %p642 = scmp.lt.s32.totalorder %s27, 5
        %s643 = scalar_select %p642, %s27, 5
        %s644 = smul.addr %s643, 36
        %s645 = smul.addr %s644, 4
        %s646 = scalar_lea.vmem %s13, %s645
      $region88: #{tpu_custom_call.1} parent=55 // pred_fallthru
        _
      // Predicated region
      $region89: #{tpu_custom_call.1} parent=55 // pred_check
        %p647 = pneg %p381
      $region90: #{tpu_custom_call.1} parent=55 // pred_check_branch
        %649 = sbr.rel (%p647) target = $region92
      $region91: #{tpu_custom_call.1} parent=55 // pred_region
        %p650 = scmp.lt.s32.totalorder %s27, 5
        %s651 = scalar_select %p650, %s27, 5
        %s652 = smul.addr %s651, 3
        %s653 = scalar_lea.vmem %s14, %s652
      $region92: #{tpu_custom_call.1} parent=55 // pred_fallthru
        _
      // Predicated region
      $region93: #{tpu_custom_call.1} parent=55 // pred_check
        %p654 = pneg %p407
      $region94: #{tpu_custom_call.1} parent=55 // pred_check_branch
        %656 = sbr.rel (%p654) target = $region96
      $region95: #{tpu_custom_call.1} parent=55 // pred_region
        %p657 = scmp.lt.s32.totalorder %s27, 5
        %s658 = scalar_select %p657, %s27, 5
        %s659 = smul.addr %s658, 48
        %s660 = smul.addr %s659, 4
        %s661 = scalar_lea.vmem %s15, %s660
      $region96: #{tpu_custom_call.1} parent=55 // pred_fallthru
        _
      // Predicated region
      $region97: #{tpu_custom_call.1} parent=55 // pred_check
        %p662 = pneg %p433
      $region98: #{tpu_custom_call.1} parent=55 // pred_check_branch
        %664 = sbr.rel (%p662) target = $region100
      $region99: #{tpu_custom_call.1} parent=55 // pred_region
        %p665 = scmp.lt.s32.totalorder %s27, 5
        %s666 = scalar_select %p665, %s27, 5
        %s667 = scalar_lea.vmem %s16, %s666
      $region100: #{tpu_custom_call.1} parent=55 // pred_fallthru
        _
    $region56: #{tpu_custom_call.1} parent=5 // pred_fallthru
      _
    %p668 = scmp.le.s32.totalorder 1, %s27
    %p669 = scmp.lt.s32.totalorder %s27, 7
    %p670 = pnand %p668, %p669
    %p671 = pneg %p670
    // Predicated region
    $region101: #{tpu_custom_call.1} parent=5 // pred_check
      _
    $region102: #{tpu_custom_call.1} parent=5 // pred_check_branch
      %673 = sbr.rel (%p670) target = $region104
    $region103: #{tpu_custom_call.1} parent=5 // pred_region
      %s674 = ssub.s32 %s27, 1
      %p675 = pneg %p48
      %p676 = pneg %p45
      %p677 = pneg %p69
      %p678 = pneg %p66
      %p679 = pneg %p90
      %p680 = pneg %p87
      %p681 = pneg %p111
      %p682 = pneg %p108
      %p683 = pneg %p132
      %p684 = pneg %p129
      %p685 = pneg %p153
      %p686 = pneg %p150
      %p687 = scmp.lt.s32.totalorder %s32, 5
      %s688 = scalar_select %p687, %s32, 5
      %s689 = scalar_lea.vmem %s6, %s688
      %p690 = pneg %p179
      %p691 = pneg %p176
      %p692 = scmp.lt.s32.totalorder %s32, 5
      %s693 = scalar_select %p692, %s32, 5
      %s694 = scalar_lea.vmem %s7, %s693
      %p695 = pneg %p205
      %p696 = pneg %p202
      %p697 = scmp.lt.s32.totalorder %s32, 5
      %s698 = scalar_select %p697, %s32, 5
      %s699 = smul.addr %s698, 36
      %s700 = smul.addr %s699, 4
      %s701 = scalar_lea.vmem %s8, %s700
      %p702 = pneg %p231
      %p703 = pneg %p228
      %p704 = scmp.lt.s32.totalorder %s32, 5
      %s705 = scalar_select %p704, %s32, 5
      %s706 = smul.addr %s705, 12
      %s707 = smul.addr %s706, 4
      %s708 = scalar_lea.vmem %s9, %s707
      %p709 = pneg %p257
      %p710 = pneg %p254
      %p711 = scmp.lt.s32.totalorder %s32, 5
      %s712 = scalar_select %p711, %s32, 5
      %s713 = scalar_lea.vmem %s10, %s712
      %p714 = pneg %p283
      %p715 = pneg %p280
      %p716 = scmp.lt.s32.totalorder %s32, 5
      %s717 = scalar_select %p716, %s32, 5
      %s718 = scalar_lea.vmem %s11, %s717
      %p719 = pneg %p309
      %p720 = pneg %p306
      %p721 = scmp.lt.s32.totalorder %s32, 5
      %s722 = scalar_select %p721, %s32, 5
      %s723 = scalar_lea.vmem %s12, %s722
      %p724 = pneg %p335
      %p725 = pneg %p332
      %p726 = scmp.lt.s32.totalorder %s32, 5
      %s727 = scalar_select %p726, %s32, 5
      %s728 = smul.addr %s727, 36
      %s729 = smul.addr %s728, 4
      %s730 = scalar_lea.vmem %s13, %s729
      %p731 = pneg %p361
      %p732 = pneg %p358
      %p733 = scmp.lt.s32.totalorder %s32, 5
      %s734 = scalar_select %p733, %s32, 5
      %s735 = smul.addr %s734, 3
      %s736 = scalar_lea.vmem %s14, %s735
      %p737 = pneg %p387
      %p738 = pneg %p384
      %p739 = scmp.lt.s32.totalorder %s32, 5
      %s740 = scalar_select %p739, %s32, 5
      %s741 = smul.addr %s740, 48
      %s742 = smul.addr %s741, 4
      %s743 = scalar_lea.vmem %s15, %s742
      %p744 = pneg %p413
      %p745 = pneg %p410
      %p746 = scmp.lt.s32.totalorder %s32, 5
      %s747 = scalar_select %p746, %s32, 5
      %s748 = scalar_lea.vmem %s16, %s747
      %p749 = pneg %p439
      %p750 = pneg %p436
      %p751 = pneg %p460
      %p752 = pneg %p457
      %p753 = pneg %p481
      %p754 = pneg %p478
      %p755 = pneg %p502
      %p756 = pneg %p499
      %p757 = pneg %p523
      %p758 = pneg %p520
      %p759 = pneg %p544
      %p760 = pneg %p541
      %p761 = scmp.lt.s32.totalorder %s32, 5
      %s762 = scalar_select %p761, %s32, 5
      %s763 = scalar_lea.vmem %s6, %s762
      %p764 = scmp.lt.s32.totalorder %s32, 5
      %s765 = scalar_select %p764, %s32, 5
      %s766 = scalar_lea.vmem %s7, %s765
      %p767 = scmp.lt.s32.totalorder %s32, 5
      %s768 = scalar_select %p767, %s32, 5
      %s769 = smul.addr %s768, 36
      %s770 = smul.addr %s769, 4
      %s771 = scalar_lea.vmem %s8, %s770
      %p772 = scmp.lt.s32.totalorder %s32, 5
      %s773 = scalar_select %p772, %s32, 5
      %s774 = smul.addr %s773, 12
      %s775 = smul.addr %s774, 4
      %s776 = scalar_lea.vmem %s9, %s775
      %p777 = scmp.lt.s32.totalorder %s32, 5
      %s778 = scalar_select %p777, %s32, 5
      %s779 = scalar_lea.vmem %s10, %s778
      %p780 = scmp.lt.s32.totalorder %s32, 5
      %s781 = scalar_select %p780, %s32, 5
      %s782 = scalar_lea.vmem %s11, %s781
      %p783 = scmp.lt.s32.totalorder %s32, 5
      %s784 = scalar_select %p783, %s32, 5
      %s785 = scalar_lea.vmem %s12, %s784
      %p786 = scmp.lt.s32.totalorder %s32, 5
      %s787 = scalar_select %p786, %s32, 5
      %s788 = smul.addr %s787, 36
      %s789 = smul.addr %s788, 4
      %s790 = scalar_lea.vmem %s13, %s789
      %p791 = scmp.lt.s32.totalorder %s32, 5
      %s792 = scalar_select %p791, %s32, 5
      %s793 = smul.addr %s792, 3
      %s794 = scalar_lea.vmem %s14, %s793
      %p795 = scmp.lt.s32.totalorder %s32, 5
      %s796 = scalar_select %p795, %s32, 5
      %s797 = smul.addr %s796, 48
      %s798 = smul.addr %s797, 4
      %s799 = scalar_lea.vmem %s15, %s798
      %p800 = scmp.lt.s32.totalorder %s32, 5
      %s801 = scalar_select %p800, %s32, 5
      %s802 = scalar_lea.vmem %s16, %s801
      %p804 = scmp.eq.s32.totalorder %s32, 0
      // Predicated region
      $region105: #{tpu_custom_call.1} parent=103 // pred_check
        %p805 = pneg %p804
      $region106: #{tpu_custom_call.1} parent=103 // pred_check_branch
        %807 = sbr.rel (%p805) target = $region108
      $region107: #{tpu_custom_call.1} parent=103 // pred_region
        %v808 = vld [vmem:[%s0] sm:$0xff]
        %v809 = vld [vmem:[%s0 + $0x8] sm:$0xff]
        %v810 = vld [vmem:[%s2] sm:$0x7]
        %v811 = vld [vmem:[%s1] sm:$0xff]
        %v812 = vld [vmem:[%s1 + $0x8] sm:$0xff]
        %v813 = vld [vmem:[%s3] sm:$0xf]
        %vm814 = vcmask 56320
        %v816 = vsel %vm814, %v811, 0
        %v819 = vsel %vm814, %v812, 0
        %vm821 = vcmask 1042432
        %vm822 = vcmask 1043456
        %v823 = vsel %vm821, 4294967295, 65535
        %v824 = vsel %vm822, %v823, 0
        %v826 = vand.u32 %v813, %v824
        %828 = vmatprep.subr.bf16.mxu0 0
        %829 = vmatpush1.bf16.msra.mxu0 %v826
        %830 = vmatprep.subr.bf16.mxu0 0
        %831 = vmatpush1.bf16.msra.mxu0 0
        %832 = vmatprep.subr.bf16.mxu0 0
        %833 = vmatpush1.bf16.msra.mxu0 0
        %834 = vmatprep.subr.bf16.mxu0 0
        %835 = vmatpush1.bf16.msra.mxu0 0
        %836 = vmatprep.subr.bf16.mxu0 0
        %837 = vmatpush1.bf16.msra.mxu0 0
        %838 = vmatprep.subr.bf16.mxu0 0
        %839 = vmatpush1.bf16.msra.mxu0 0
        %840 = vmatprep.subr.bf16.mxu0 0
        %841 = vmatpush1.bf16.msra.mxu0 0
        %842 = vmatprep.subr.bf16.mxu0 0
        %843 = vmatpush1.bf16.msra.mxu0 0
        %844 = vmatprep.subr.bf16.mxu0 0
        %845 = vmatpush1.bf16.msra.mxu0 0
        %846 = vmatprep.subr.bf16.mxu0 0
        %847 = vmatpush1.bf16.msra.mxu0 0
        %848 = vmatprep.subr.bf16.mxu0 0
        %849 = vmatpush1.bf16.msra.mxu0 0
        %850 = vmatprep.subr.bf16.mxu0 0
        %851 = vmatpush1.bf16.msra.mxu0 0
        %852 = vmatprep.subr.bf16.mxu0 0
        %853 = vmatpush1.bf16.msra.mxu0 0
        %854 = vmatprep.subr.bf16.mxu0 0
        %855 = vmatpush1.bf16.msra.mxu0 0
        %856 = vmatprep.subr.bf16.mxu0 0
        %857 = vmatpush1.bf16.msra.mxu0 0
        %858 = vmatprep.subr.bf16.mxu0 0
        %859 = vmatpush1.bf16.msra.mxu0 0
        %860 = vmatprep.mubr.f32.mxu0 0.0
        %861 = vmatmul.mubr.f32.gmra.mrb[0].mxu0 %v816
        %v862 = vpop.f32.mrb[0].mxu0
        %v863 = vadd.f32 0.0, %v862
        %v864 = vpop.f32.mrb[0].mxu0
        %865 = vmatprep.mubr.f32.mxu0 0.0
        %866 = vmatmul.mubr.f32.gmra.mrb[0].mxu0 %v819
        %v867 = vpop.f32.mrb[0].mxu0
        %v868 = vadd.f32 0.0, %v867
        %v869 = vpop.f32.mrb[0].mxu0
        %870 = vdwg.mxu0
        %vm871 = vcmask 39936
        %v873 = vsel %vm871, %v808, 0
        %v876 = vsel %vm871, %v809, 0
        %vm878 = vcmask 1041408
        %v879 = vsel %vm878, 4294967295, 65535
        %v880 = vsel %vm821, %v879, 0
        %v882 = vand.u32 %v810, %v880
        %884 = vmatprep.subr.bf16.mxu0 0
        %885 = vmatpush1.bf16.msra.mxu0 %v882
        %886 = vmatprep.subr.bf16.mxu0 0
        %887 = vmatpush1.bf16.msra.mxu0 0
        %888 = vmatprep.subr.bf16.mxu0 0
        %889 = vmatpush1.bf16.msra.mxu0 0
        %890 = vmatprep.subr.bf16.mxu0 0
        %891 = vmatpush1.bf16.msra.mxu0 0
        %892 = vmatprep.subr.bf16.mxu0 0
        %893 = vmatpush1.bf16.msra.mxu0 0
        %894 = vmatprep.subr.bf16.mxu0 0
        %895 = vmatpush1.bf16.msra.mxu0 0
        %896 = vmatprep.subr.bf16.mxu0 0
        %897 = vmatpush1.bf16.msra.mxu0 0
        %898 = vmatprep.subr.bf16.mxu0 0
        %899 = vmatpush1.bf16.msra.mxu0 0
        %900 = vmatprep.subr.bf16.mxu0 0
        %901 = vmatpush1.bf16.msra.mxu0 0
        %902 = vmatprep.subr.bf16.mxu0 0
        %903 = vmatpush1.bf16.msra.mxu0 0
        %904 = vmatprep.subr.bf16.mxu0 0
        %905 = vmatpush1.bf16.msra.mxu0 0
        %906 = vmatprep.subr.bf16.mxu0 0
        %907 = vmatpush1.bf16.msra.mxu0 0
        %908 = vmatprep.subr.bf16.mxu0 0
        %909 = vmatpush1.bf16.msra.mxu0 0
        %910 = vmatprep.subr.bf16.mxu0 0
        %911 = vmatpush1.bf16.msra.mxu0 0
        %912 = vmatprep.subr.bf16.mxu0 0
        %913 = vmatpush1.bf16.msra.mxu0 0
        %914 = vmatprep.subr.bf16.mxu0 0
        %915 = vmatpush1.bf16.msra.mxu0 0
        %916 = vmatprep.mubr.f32.mxu0 0.0
        %917 = vmatmul.mubr.f32.gmra.mrb[0].mxu0 %v873
        %v918 = vpop.f32.mrb[0].mxu0
        %v919 = vadd.f32 %v863, %v918
        %v920 = vpop.f32.mrb[0].mxu0
        %921 = vmatprep.mubr.f32.mxu0 0.0
        %922 = vmatmul.mubr.f32.gmra.mrb[0].mxu0 %v876
        %v923 = vpop.f32.mrb[0].mxu0
        %v924 = vadd.f32 %v868, %v923
        %v925 = vpop.f32.mrb[0].mxu0
        %926 = vdwg.mxu0
        %v927 = vld [vmem:[%s4] sm:$0x1]
        %v929 = vlaneseq
        %v930 = vshrl.u32 %v929, 7
        %v931 = vsub.s32 0, %v930
        %v932 = vrot.slane %v927, %v931
        %v934 = vadd.f32 %v919, %v932
        %v935 = vadd.f32 %v924, %v932
        %v936 = vld [vmem:[%s5] sm:$0xff]
        %v937 = vld [vmem:[%s5 + $0x8] sm:$0xff]
        %v938 = vadd.f32 %v934, %v936
        %v939 = vadd.f32 %v935, %v937
        %vm940 = vcmask 785408
        %941 = vst.msk [vmem:[#allocation2] sm:$0xff] %vm940, %v938
        %942 = vst.msk [vmem:[#allocation2 + $0x8] sm:$0xff] %vm940, %v939
      $region108: #{tpu_custom_call.1} parent=103 // pred_fallthru
        _
      %v943 = vlaneseq
      %v944 = vshrl.u32 %v943, 7
      %v945 = vlaneseq
      %v946 = vand.u32 %v945, 127
      %vm947 = vcmp.ge.s32.totalorder %v944, %v946
      %v948 = vsel %vm947, 0.0, -1e+30
      %v949 = vld [vmem:[#allocation2] sm:$0xff]
      %v950 = vld [vmem:[#allocation2 + $0x8] sm:$0xff]
      %v951 = vld [vmem:[%s763] sm:$0x1]
      %v952 = vld [vmem:[%s766] sm:$0x1]
      %vm953 = vcmask 785408
      %v954 = vsel %vm953, %v949, 0.0
      %955 = vadd.xlane.f32.xlu0 %v954
      %v956 = vpop.xlane.xlu0 %955
      %v957 = vsel %vm953, %v950, 0.0
      %958 = vadd.xlane.f32.xlu0 %v957
      %v959 = vpop.xlane.xlu0 %958
      %v960 = vrcp.pop 96.0
      %v961 = vmul.f32 %v956, %v960
      %v962 = vmul.f32 %v959, %v960
      %v963 = vsub.f32 %v949, %v961
      %v964 = vsub.f32 %v950, %v962
      %v965 = vmul.f32 %v963, %v963
      %v966 = vmul.f32 %v964, %v964
      %v967 = vsel %vm953, %v965, 0.0
      %968 = vadd.xlane.f32.xlu0 %v967
      %v969 = vpop.xlane.xlu0 %968
      %v970 = vsel %vm953, %v966, 0.0
      %971 = vadd.xlane.f32.xlu0 %v970
      %v972 = vpop.xlane.xlu0 %971
      %v973 = vmul.f32 %v969, %v960
      %v974 = vmul.f32 %v972, %v960
      %v975 = vadd.f32 %v973, 1e-05
      %v976 = vadd.f32 %v974, 1e-05
      %v977 = vrsqrt.pop %v975
      %v978 = vrsqrt.pop %v976
      %v979 = vmul.f32 %v963, %v977
      %v980 = vmul.f32 %v964, %v978
      %v982 = vlaneseq
      %v983 = vshrl.u32 %v982, 7
      %v984 = vsub.s32 0, %v983
      %v985 = vrot.slane %v951, %v984
      %v987 = vmul.f32 %v979, %v985
      %v988 = vmul.f32 %v980, %v985
      %v990 = vlaneseq
      %v991 = vshrl.u32 %v990, 7
      %v992 = vsub.s32 0, %v991
      %v993 = vrot.slane %v952, %v992
      %v995 = vadd.f32 %v987, %v993
      %v996 = vadd.f32 %v988, %v993
      %v997 = vld [vmem:[%s771] sm:$0xff]
      %v998 = vld [vmem:[%s771 + $0x8] sm:$0xf]
      %v999 = vld [vmem:[%s771 + $0xc] sm:$0xff]
      %v1000 = vld [vmem:[%s771 + $0x14] sm:$0xf]
      %v1001 = vld [vmem:[%s771 + $0x18] sm:$0xff]
      %v1002 = vld [vmem:[%s771 + $0x20] sm:$0xf]
      %v1003 = vld [vmem:[%s771 + $0x24] sm:$0xff]
      %v1004 = vld [vmem:[%s771 + $0x2c] sm:$0xf]
      %v1005 = vld [vmem:[%s771 + $0x30] sm:$0xff]
      %v1006 = vld [vmem:[%s771 + $0x38] sm:$0xf]
      %v1007 = vld [vmem:[%s771 + $0x3c] sm:$0xff]
      %v1008 = vld [vmem:[%s771 + $0x44] sm:$0xf]
      %v1009 = vld [vmem:[%s771 + $0x48] sm:$0xff]
      %v1010 = vld [vmem:[%s771 + $0x50] sm:$0xf]
      %v1011 = vld [vmem:[%s771 + $0x54] sm:$0xff]
      %v1012 = vld [vmem:[%s771 + $0x5c] sm:$0xf]
      %v1013 = vld [vmem:[%s771 + $0x60] sm:$0xff]
      %v1014 = vld [vmem:[%s771 + $0x68] sm:$0xf]
      %v1015 = vld [vmem:[%s771 + $0x6c] sm:$0xff]
      %v1016 = vld [vmem:[%s771 + $0x74] sm:$0xf]
      %v1017 = vld [vmem:[%s771 + $0x78] sm:$0xff]
      %v1018 = vld [vmem:[%s771 + $0x80] sm:$0xf]
      %v1019 = vld [vmem:[%s771 + $0x84] sm:$0xff]
      %v1020 = vld [vmem:[%s771 + $0x8c] sm:$0xf]
      %v1045 = vunpack.c.l.b16 %v997
      %v1046 = vunpack.c.h.b16 %v997
      %v1047 = vunpack.c.l.b16 %v998
      %v1048 = vunpack.c.l.b16 %v999
      %v1049 = vunpack.c.h.b16 %v999
      %v1050 = vunpack.c.l.b16 %v1000
      %v1051 = vunpack.c.l.b16 %v1001
      %v1052 = vunpack.c.h.b16 %v1001
      %v1053 = vunpack.c.l.b16 %v1002
      %v1054 = vunpack.c.l.b16 %v1003
      %v1055 = vunpack.c.h.b16 %v1003
      %v1056 = vunpack.c.l.b16 %v1004
      %v1057 = vunpack.c.l.b16 %v1005
      %v1058 = vunpack.c.h.b16 %v1005
      %v1059 = vunpack.c.l.b16 %v1006
      %v1060 = vunpack.c.l.b16 %v1007
      %v1061 = vunpack.c.h.b16 %v1007
      %v1062 = vunpack.c.l.b16 %v1008
      %v1063 = vunpack.c.l.b16 %v1009
      %v1064 = vunpack.c.h.b16 %v1009
      %v1065 = vunpack.c.l.b16 %v1010
      %v1066 = vunpack.c.l.b16 %v1011
      %v1067 = vunpack.c.h.b16 %v1011
      %v1068 = vunpack.c.l.b16 %v1012
      %v1069 = vunpack.c.l.b16 %v1013
      %v1070 = vunpack.c.h.b16 %v1013
      %v1071 = vunpack.c.l.b16 %v1014
      %v1072 = vunpack.c.l.b16 %v1015
      %v1073 = vunpack.c.h.b16 %v1015
      %v1074 = vunpack.c.l.b16 %v1016
      %v1075 = vunpack.c.l.b16 %v1017
      %v1076 = vunpack.c.h.b16 %v1017
      %v1077 = vunpack.c.l.b16 %v1018
      %v1078 = vunpack.c.l.b16 %v1019
      %v1079 = vunpack.c.h.b16 %v1019
      %v1080 = vunpack.c.l.b16 %v1020
      %v1081 = vpack.c.b16 %v1048, %v1045
      %v1082 = vpack.c.b16 %v1049, %v1046
      %v1083 = vpack.c.b16 %v1050, %v1047
      %v1084 = vpack.c.b16 %v1054, %v1051
      %v1085 = vpack.c.b16 %v1055, %v1052
      %v1086 = vpack.c.b16 %v1056, %v1053
      %v1087 = vpack.c.b16 %v1060, %v1057
      %v1088 = vpack.c.b16 %v1061, %v1058
      %v1089 = vpack.c.b16 %v1062, %v1059
      %v1090 = vpack.c.b16 %v1066, %v1063
      %v1091 = vpack.c.b16 %v1067, %v1064
      %v1092 = vpack.c.b16 %v1068, %v1065
      %v1093 = vpack.c.b16 %v1072, %v1069
      %v1094 = vpack.c.b16 %v1073, %v1070
      %v1095 = vpack.c.b16 %v1074, %v1071
      %v1096 = vpack.c.b16 %v1078, %v1075
      %v1097 = vpack.c.b16 %v1079, %v1076
      %v1098 = vpack.c.b16 %v1080, %v1077
      %v1118 = vsel %vm953, %v995, 0
      %v1121 = vsel %vm953, %v996, 0
      %1123 = vmatprep.subr.bf16.mxu0 %v1082
      %1124 = vmatpush1.bf16.msra.mxu0 %v1081
      %1125 = vmatprep.subr.bf16.mxu0 %v1085
      %1126 = vmatpush1.bf16.msra.mxu0 %v1084
      %1127 = vmatprep.subr.bf16.mxu0 %v1088
      %1128 = vmatpush1.bf16.msra.mxu0 %v1087
      %1129 = vmatprep.subr.bf16.mxu0 %v1091
      %1130 = vmatpush1.bf16.msra.mxu0 %v1090
      %1131 = vmatprep.subr.bf16.mxu0 %v1094
      %1132 = vmatpush1.bf16.msra.mxu0 %v1093
      %1133 = vmatprep.subr.bf16.mxu0 %v1097
      %1134 = vmatpush1.bf16.msra.mxu0 %v1096
      %1135 = vmatprep.subr.bf16.mxu0 0
      %1136 = vmatpush1.bf16.msra.mxu0 0
      %1137 = vmatprep.subr.bf16.mxu0 0
      %1138 = vmatpush1.bf16.msra.mxu0 0
      %1139 = vmatprep.subr.bf16.mxu0 0
      %1140 = vmatpush1.bf16.msra.mxu0 0
      %1141 = vmatprep.subr.bf16.mxu0 0
      %1142 = vmatpush1.bf16.msra.mxu0 0
      %1143 = vmatprep.subr.bf16.mxu0 0
      %1144 = vmatpush1.bf16.msra.mxu0 0
      %1145 = vmatprep.subr.bf16.mxu0 0
      %1146 = vmatpush1.bf16.msra.mxu0 0
      %1147 = vmatprep.subr.bf16.mxu0 0
      %1148 = vmatpush1.bf16.msra.mxu0 0
      %1149 = vmatprep.subr.bf16.mxu0 0
      %1150 = vmatpush1.bf16.msra.mxu0 0
      %1151 = vmatprep.subr.bf16.mxu0 0
      %1152 = vmatpush1.bf16.msra.mxu0 0
      %1153 = vmatprep.subr.bf16.mxu0 0
      %1154 = vmatpush1.bf16.msra.mxu0 0
      %1155 = vmatprep.mubr.f32.mxu0 0.0
      %1156 = vmatmul.mubr.f32.gmra.mrb[0].mxu0 %v1118
      %v1157 = vpop.f32.mrb[0].mxu0
      %v1158 = vadd.f32 0.0, %v1157
      %v1159 = vpop.f32.mrb[0].mxu0
      %v1160 = vadd.f32 0.0, %v1159
      %1161 = vmatprep.mubr.f32.mxu0 0.0
      %1162 = vmatmul.mubr.f32.gmra.mrb[0].mxu0 %v1121
      %v1163 = vpop.f32.mrb[0].mxu0
      %v1164 = vadd.f32 0.0, %v1163
      %v1165 = vpop.f32.mrb[0].mxu0
      %v1166 = vadd.f32 0.0, %v1165
      %1167 = vdwg.mxu0
      %1168 = vmatprep.subr.bf16.mxu0 0
      %1169 = vmatpush1.bf16.msra.mxu0 %v1083
      %1170 = vmatprep.subr.bf16.mxu0 0
      %1171 = vmatpush1.bf16.msra.mxu0 %v1086
      %1172 = vmatprep.subr.bf16.mxu0 0
      %1173 = vmatpush1.bf16.msra.mxu0 %v1089
      %1174 = vmatprep.subr.bf16.mxu0 0
      %1175 = vmatpush1.bf16.msra.mxu0 %v1092
      %1176 = vmatprep.subr.bf16.mxu0 0
      %1177 = vmatpush1.bf16.msra.mxu0 %v1095
      %1178 = vmatprep.subr.bf16.mxu0 0
      %1179 = vmatpush1.bf16.msra.mxu0 %v1098
      %1180 = vmatprep.subr.bf16.mxu0 0
      %1181 = vmatpush1.bf16.msra.mxu0 0
      %1182 = vmatprep.subr.bf16.mxu0 0
      %1183 = vmatpush1.bf16.msra.mxu0 0
      %1184 = vmatprep.subr.bf16.mxu0 0
      %1185 = vmatpush1.bf16.msra.mxu0 0
      %1186 = vmatprep.subr.bf16.mxu0 0
      %1187 = vmatpush1.bf16.msra.mxu0 0
      %1188 = vmatprep.subr.bf16.mxu0 0
      %1189 = vmatpush1.bf16.msra.mxu0 0
      %1190 = vmatprep.subr.bf16.mxu0 0
      %1191 = vmatpush1.bf16.msra.mxu0 0
      %1192 = vmatprep.subr.bf16.mxu0 0
      %1193 = vmatpush1.bf16.msra.mxu0 0
      %1194 = vmatprep.subr.bf16.mxu0 0
      %1195 = vmatpush1.bf16.msra.mxu0 0
      %1196 = vmatprep.subr.bf16.mxu0 0
      %1197 = vmatpush1.bf16.msra.mxu0 0
      %1198 = vmatprep.subr.bf16.mxu0 0
      %1199 = vmatpush1.bf16.msra.mxu0 0
      %1200 = vmatprep.mubr.f32.mxu0 0.0
      %1201 = vmatmul.mubr.f32.gmra.mrb[0].mxu0 %v1118
      %v1202 = vpop.f32.mrb[0].mxu0
      %v1203 = vadd.f32 0.0, %v1202
      %v1204 = vpop.f32.mrb[0].mxu0
      %1205 = vmatprep.mubr.f32.mxu0 0.0
      %1206 = vmatmul.mubr.f32.gmra.mrb[0].mxu0 %v1121
      %v1207 = vpop.f32.mrb[0].mxu0
      %v1208 = vadd.f32 0.0, %v1207
      %v1209 = vpop.f32.mrb[0].mxu0
      %1210 = vdwg.mxu0
      %1211 = vxpose.xlu0.b32.start [1/16] %v1158, 128
      %1212 = vxpose.xlu0.b32.cont [2/16] 0.0, 128
      %1213 = vxpose.xlu0.b32.cont [3/16] 0.0, 128
      %1214 = vxpose.xlu0.b32.cont [4/16] 0.0, 128
      %1215 = vxpose.xlu0.b32.cont [5/16] 0.0, 128
      %1216 = vxpose.xlu0.b32.cont [6/16] 0.0, 128
      %1217 = vxpose.xlu0.b32.cont [7/16] 0.0, 128
      %1218 = vxpose.xlu0.b32.cont [8/16] 0.0, 128
      %1219 = vxpose.xlu0.b32.cont [9/16] 0.0, 128
      %1220 = vxpose.xlu0.b32.cont [10/16] 0.0, 128
      %1221 = vxpose.xlu0.b32.cont [11/16] 0.0, 128
      %1222 = vxpose.xlu0.b32.cont [12/16] 0.0, 128
      %1223 = vxpose.xlu0.b32.cont [13/16] 0.0, 128
      %1224 = vxpose.xlu0.b32.cont [14/16] 0.0, 128
      %1225 = vxpose.xlu0.b32.cont [15/16] 0.0, 128
      %1226 = vxpose.xlu0.b32.end [16/16] 0.0, 128
      %v1227 = vpop.trf.xlu0
      %v1228 = vpop.trf.xlu0
      %v1229 = vpop.trf.xlu0
      %v1230 = vpop.trf.xlu0
      %v1231 = vpop.trf.xlu0
      %v1232 = vpop.trf.xlu0
      %v1233 = vpop.trf.xlu0
      %v1234 = vpop.trf.xlu0
      %v1235 = vpop.trf.xlu0
      %v1236 = vpop.trf.xlu0
      %v1237 = vpop.trf.xlu0
      %v1238 = vpop.trf.xlu0
      %v1239 = vpop.trf.xlu0
      %v1240 = vpop.trf.xlu0
      %v1241 = vpop.trf.xlu0
      %v1242 = vpop.trf.xlu0
      %1243 = vxpose.xlu0.b32.start [1/16] %v1164, 128
      %1244 = vxpose.xlu0.b32.cont [2/16] 0.0, 128
      %1245 = vxpose.xlu0.b32.cont [3/16] 0.0, 128
      %1246 = vxpose.xlu0.b32.cont [4/16] 0.0, 128
      %1247 = vxpose.xlu0.b32.cont [5/16] 0.0, 128
      %1248 = vxpose.xlu0.b32.cont [6/16] 0.0, 128
      %1249 = vxpose.xlu0.b32.cont [7/16] 0.0, 128
      %1250 = vxpose.xlu0.b32.cont [8/16] 0.0, 128
      %1251 = vxpose.xlu0.b32.cont [9/16] 0.0, 128
      %1252 = vxpose.xlu0.b32.cont [10/16] 0.0, 128
      %1253 = vxpose.xlu0.b32.cont [11/16] 0.0, 128
      %1254 = vxpose.xlu0.b32.cont [12/16] 0.0, 128
      %1255 = vxpose.xlu0.b32.cont [13/16] 0.0, 128
      %1256 = vxpose.xlu0.b32.cont [14/16] 0.0, 128
      %1257 = vxpose.xlu0.b32.cont [15/16] 0.0, 128
      %1258 = vxpose.xlu0.b32.end [16/16] 0.0, 128
      %v1259 = vpop.trf.xlu0
      %v1260 = vpop.trf.xlu0
      %v1261 = vpop.trf.xlu0
      %v1262 = vpop.trf.xlu0
      %v1263 = vpop.trf.xlu0
      %v1264 = vpop.trf.xlu0
      %v1265 = vpop.trf.xlu0
      %v1266 = vpop.trf.xlu0
      %v1267 = vpop.trf.xlu0
      %v1268 = vpop.trf.xlu0
      %v1269 = vpop.trf.xlu0
      %v1270 = vpop.trf.xlu0
      %v1271 = vpop.trf.xlu0
      %v1272 = vpop.trf.xlu0
      %v1273 = vpop.trf.xlu0
      %v1274 = vpop.trf.xlu0
      %1275 = vxpose.xlu0.b32.start [1/16] %v1227, 128
      %1276 = vxpose.xlu0.b32.cont [2/16] %v1228, 128
      %1277 = vxpose.xlu0.b32.cont [3/16] 0.0, 128
      %1278 = vxpose.xlu0.b32.cont [4/16] 0.0, 128
      %1279 = vxpose.xlu0.b32.cont [5/16] 0.0, 128
      %1280 = vxpose.xlu0.b32.cont [6/16] 0.0, 128
      %1281 = vxpose.xlu0.b32.cont [7/16] 0.0, 128
      %1282 = vxpose.xlu0.b32.cont [8/16] 0.0, 128
      %1283 = vxpose.xlu0.b32.cont [9/16] 0.0, 128
      %1284 = vxpose.xlu0.b32.cont [10/16] 0.0, 128
      %1285 = vxpose.xlu0.b32.cont [11/16] 0.0, 128
      %1286 = vxpose.xlu0.b32.cont [12/16] 0.0, 128
      %1287 = vxpose.xlu0.b32.cont [13/16] 0.0, 128
      %1288 = vxpose.xlu0.b32.cont [14/16] 0.0, 128
      %1289 = vxpose.xlu0.b32.cont [15/16] 0.0, 128
      %1290 = vxpose.xlu0.b32.end [16/16] 0.0, 128
      %v1291 = vpop.trf.xlu0
      %v1292 = vpop.trf.xlu0
      %v1293 = vpop.trf.xlu0
      %v1294 = vpop.trf.xlu0
      %v1295 = vpop.trf.xlu0
      %v1296 = vpop.trf.xlu0
      %v1297 = vpop.trf.xlu0
      %v1298 = vpop.trf.xlu0
      %v1299 = vpop.trf.xlu0
      %v1300 = vpop.trf.xlu0
      %v1301 = vpop.trf.xlu0
      %v1302 = vpop.trf.xlu0
      %v1303 = vpop.trf.xlu0
      %v1304 = vpop.trf.xlu0
      %v1305 = vpop.trf.xlu0
      %v1306 = vpop.trf.xlu0
      %1307 = vxpose.xlu0.b32.start [1/16] %v1229, 128
      %1308 = vxpose.xlu0.b32.cont [2/16] %v1230, 128
      %1309 = vxpose.xlu0.b32.cont [3/16] 0.0, 128
      %1310 = vxpose.xlu0.b32.cont [4/16] 0.0, 128
      %1311 = vxpose.xlu0.b32.cont [5/16] 0.0, 128
      %1312 = vxpose.xlu0.b32.cont [6/16] 0.0, 128
      %1313 = vxpose.xlu0.b32.cont [7/16] 0.0, 128
      %1314 = vxpose.xlu0.b32.cont [8/16] 0.0, 128
      %1315 = vxpose.xlu0.b32.cont [9/16] 0.0, 128
      %1316 = vxpose.xlu0.b32.cont [10/16] 0.0, 128
      %1317 = vxpose.xlu0.b32.cont [11/16] 0.0, 128
      %1318 = vxpose.xlu0.b32.cont [12/16] 0.0, 128
      %1319 = vxpose.xlu0.b32.cont [13/16] 0.0, 128
      %1320 = vxpose.xlu0.b32.cont [14/16] 0.0, 128
      %1321 = vxpose.xlu0.b32.cont [15/16] 0.0, 128
      %1322 = vxpose.xlu0.b32.end [16/16] 0.0, 128
      %v1323 = vpop.trf.xlu0
      %v1324 = vpop.trf.xlu0
      %v1325 = vpop.trf.xlu0
      %v1326 = vpop.trf.xlu0
      %v1327 = vpop.trf.xlu0
      %v1328 = vpop.trf.xlu0
      %v1329 = vpop.trf.xlu0
      %v1330 = vpop.trf.xlu0
      %v1331 = vpop.trf.xlu0
      %v1332 = vpop.trf.xlu0
      %v1333 = vpop.trf.xlu0
      %v1334 = vpop.trf.xlu0
      %v1335 = vpop.trf.xlu0
      %v1336 = vpop.trf.xlu0
      %v1337 = vpop.trf.xlu0
      %v1338 = vpop.trf.xlu0
      %1339 = vxpose.xlu0.b32.start [1/16] %v1231, 128
      %1340 = vxpose.xlu0.b32.cont [2/16] %v1232, 128
      %1341 = vxpose.xlu0.b32.cont [3/16] 0.0, 128
      %1342 = vxpose.xlu0.b32.cont [4/16] 0.0, 128
      %1343 = vxpose.xlu0.b32.cont [5/16] 0.0, 128
      %1344 = vxpose.xlu0.b32.cont [6/16] 0.0, 128
      %1345 = vxpose.xlu0.b32.cont [7/16] 0.0, 128
      %1346 = vxpose.xlu0.b32.cont [8/16] 0.0, 128
      %1347 = vxpose.xlu0.b32.cont [9/16] 0.0, 128
      %1348 = vxpose.xlu0.b32.cont [10/16] 0.0, 128
      %1349 = vxpose.xlu0.b32.cont [11/16] 0.0, 128
      %1350 = vxpose.xlu0.b32.cont [12/16] 0.0, 128
      %1351 = vxpose.xlu0.b32.cont [13/16] 0.0, 128
      %1352 = vxpose.xlu0.b32.cont [14/16] 0.0, 128
      %1353 = vxpose.xlu0.b32.cont [15/16] 0.0, 128
      %1354 = vxpose.xlu0.b32.end [16/16] 0.0, 128
      %v1355 = vpop.trf.xlu0
      %v1356 = vpop.trf.xlu0
      %v1357 = vpop.trf.xlu0
      %v1358 = vpop.trf.xlu0
      %v1359 = vpop.trf.xlu0
      %v1360 = vpop.trf.xlu0
      %v1361 = vpop.trf.xlu0
      %v1362 = vpop.trf.xlu0
      %v1363 = vpop.trf.xlu0
      %v1364 = vpop.trf.xlu0
      %v1365 = vpop.trf.xlu0
      %v1366 = vpop.trf.xlu0
      %v1367 = vpop.trf.xlu0
      %v1368 = vpop.trf.xlu0
      %v1369 = vpop.trf.xlu0
      %v1370 = vpop.trf.xlu0
      %1371 = vxpose.xlu0.b32.start [1/16] %v1233, 128
      %1372 = vxpose.xlu0.b32.cont [2/16] %v1234, 128
      %1373 = vxpose.xlu0.b32.cont [3/16] 0.0, 128
      %1374 = vxpose.xlu0.b32.cont [4/16] 0.0, 128
      %1375 = vxpose.xlu0.b32.cont [5/16] 0.0, 128
      %1376 = vxpose.xlu0.b32.cont [6/16] 0.0, 128
      %1377 = vxpose.xlu0.b32.cont [7/16] 0.0, 128
      %1378 = vxpose.xlu0.b32.cont [8/16] 0.0, 128
      %1379 = vxpose.xlu0.b32.cont [9/16] 0.0, 128
      %1380 = vxpose.xlu0.b32.cont [10/16] 0.0, 128
      %1381 = vxpose.xlu0.b32.cont [11/16] 0.0, 128
      %1382 = vxpose.xlu0.b32.cont [12/16] 0.0, 128
      %1383 = vxpose.xlu0.b32.cont [13/16] 0.0, 128
      %1384 = vxpose.xlu0.b32.cont [14/16] 0.0, 128
      %1385 = vxpose.xlu0.b32.cont [15/16] 0.0, 128
      %1386 = vxpose.xlu0.b32.end [16/16] 0.0, 128
      %v1387 = vpop.trf.xlu0
      %v1388 = vpop.trf.xlu0
      %v1389 = vpop.trf.xlu0
      %v1390 = vpop.trf.xlu0
      %v1391 = vpop.trf.xlu0
      %v1392 = vpop.trf.xlu0
      %v1393 = vpop.trf.xlu0
      %v1394 = vpop.trf.xlu0
      %v1395 = vpop.trf.xlu0
      %v1396 = vpop.trf.xlu0
      %v1397 = vpop.trf.xlu0
      %v1398 = vpop.trf.xlu0
      %v1399 = vpop.trf.xlu0
      %v1400 = vpop.trf.xlu0
      %v1401 = vpop.trf.xlu0
      %v1402 = vpop.trf.xlu0
      %1403 = vxpose.xlu0.b32.start [1/16] %v1235, 128
      %1404 = vxpose.xlu0.b32.cont [2/16] %v1236, 128
      %1405 = vxpose.xlu0.b32.cont [3/16] 0.0, 128
      %1406 = vxpose.xlu0.b32.cont [4/16] 0.0, 128
      %1407 = vxpose.xlu0.b32.cont [5/16] 0.0, 128
      %1408 = vxpose.xlu0.b32.cont [6/16] 0.0, 128
      %1409 = vxpose.xlu0.b32.cont [7/16] 0.0, 128
      %1410 = vxpose.xlu0.b32.cont [8/16] 0.0, 128
      %1411 = vxpose.xlu0.b32.cont [9/16] 0.0, 128
      %1412 = vxpose.xlu0.b32.cont [10/16] 0.0, 128
      %1413 = vxpose.xlu0.b32.cont [11/16] 0.0, 128
      %1414 = vxpose.xlu0.b32.cont [12/16] 0.0, 128
      %1415 = vxpose.xlu0.b32.cont [13/16] 0.0, 128
      %1416 = vxpose.xlu0.b32.cont [14/16] 0.0, 128
      %1417 = vxpose.xlu0.b32.cont [15/16] 0.0, 128
      %1418 = vxpose.xlu0.b32.end [16/16] 0.0, 128
      %v1419 = vpop.trf.xlu0
      %v1420 = vpop.trf.xlu0
      %v1421 = vpop.trf.xlu0
      %v1422 = vpop.trf.xlu0
      %v1423 = vpop.trf.xlu0
      %v1424 = vpop.trf.xlu0
      %v1425 = vpop.trf.xlu0
      %v1426 = vpop.trf.xlu0
      %v1427 = vpop.trf.xlu0
      %v1428 = vpop.trf.xlu0
      %v1429 = vpop.trf.xlu0
      %v1430 = vpop.trf.xlu0
      %v1431 = vpop.trf.xlu0
      %v1432 = vpop.trf.xlu0
      %v1433 = vpop.trf.xlu0
      %v1434 = vpop.trf.xlu0
      %1435 = vxpose.xlu0.b32.start [1/16] %v1237, 128
      %1436 = vxpose.xlu0.b32.cont [2/16] %v1238, 128
      %1437 = vxpose.xlu0.b32.cont [3/16] 0.0, 128
      %1438 = vxpose.xlu0.b32.cont [4/16] 0.0, 128
      %1439 = vxpose.xlu0.b32.cont [5/16] 0.0, 128
      %1440 = vxpose.xlu0.b32.cont [6/16] 0.0, 128
      %1441 = vxpose.xlu0.b32.cont [7/16] 0.0, 128
      %1442 = vxpose.xlu0.b32.cont [8/16] 0.0, 128
      %1443 = vxpose.xlu0.b32.cont [9/16] 0.0, 128
      %1444 = vxpose.xlu0.b32.cont [10/16] 0.0, 128
      %1445 = vxpose.xlu0.b32.cont [11/16] 0.0, 128
      %1446 = vxpose.xlu0.b32.cont [12/16] 0.0, 128
      %1447 = vxpose.xlu0.b32.cont [13/16] 0.0, 128
      %1448 = vxpose.xlu0.b32.cont [14/16] 0.0, 128
      %1449 = vxpose.xlu0.b32.cont [15/16] 0.0, 128
      %1450 = vxpose.xlu0.b32.end [16/16] 0.0, 128
      %v1451 = vpop.trf.xlu0
      %v1452 = vpop.trf.xlu0
      %v1453 = vpop.trf.xlu0
      %v1454 = vpop.trf.xlu0
      %v1455 = vpop.trf.xlu0
      %v1456 = vpop.trf.xlu0
      %v1457 = vpop.trf.xlu0
      %v1458 = vpop.trf.xlu0
      %v1459 = vpop.trf.xlu0
      %v1460 = vpop.trf.xlu0
      %v1461 = vpop.trf.xlu0
      %v1462 = vpop.trf.xlu0
      %v1463 = vpop.trf.xlu0
      %v1464 = vpop.trf.xlu0
      %v1465 = vpop.trf.xlu0
      %v1466 = vpop.trf.xlu0
      %1467 = vxpose.xlu0.b32.start [1/16] %v1259, 128
      %1468 = vxpose.xlu0.b32.cont [2/16] %v1260, 128
      %1469 = vxpose.xlu0.b32.cont [3/16] 0.0, 128
      %1470 = vxpose.xlu0.b32.cont [4/16] 0.0, 128
      %1471 = vxpose.xlu0.b32.cont [5/16] 0.0, 128
      %1472 = vxpose.xlu0.b32.cont [6/16] 0.0, 128
      %1473 = vxpose.xlu0.b32.cont [7/16] 0.0, 128
      %1474 = vxpose.xlu0.b32.cont [8/16] 0.0, 128
      %1475 = vxpose.xlu0.b32.cont [9/16] 0.0, 128
      %1476 = vxpose.xlu0.b32.cont [10/16] 0.0, 128
      %1477 = vxpose.xlu0.b32.cont [11/16] 0.0, 128
      %1478 = vxpose.xlu0.b32.cont [12/16] 0.0, 128
      %1479 = vxpose.xlu0.b32.cont [13/16] 0.0, 128
      %1480 = vxpose.xlu0.b32.cont [14/16] 0.0, 128
      %1481 = vxpose.xlu0.b32.cont [15/16] 0.0, 128
      %1482 = vxpose.xlu0.b32.end [16/16] 0.0, 128
      %v1483 = vpop.trf.xlu0
      %v1484 = vpop.trf.xlu0
      %v1485 = vpop.trf.xlu0
      %v1486 = vpop.trf.xlu0
      %v1487 = vpop.trf.xlu0
      %v1488 = vpop.trf.xlu0
      %v1489 = vpop.trf.xlu0
      %v1490 = vpop.trf.xlu0
      %v1491 = vpop.trf.xlu0
      %v1492 = vpop.trf.xlu0
      %v1493 = vpop.trf.xlu0
      %v1494 = vpop.trf.xlu0
      %v1495 = vpop.trf.xlu0
      %v1496 = vpop.trf.xlu0
      %v1497 = vpop.trf.xlu0
      %v1498 = vpop.trf.xlu0
      %1499 = vxpose.xlu0.b32.start [1/16] %v1261, 128
      %1500 = vxpose.xlu0.b32.cont [2/16] %v1262, 128
      %1501 = vxpose.xlu0.b32.cont [3/16] 0.0, 128
      %1502 = vxpose.xlu0.b32.cont [4/16] 0.0, 128
      %1503 = vxpose.xlu0.b32.cont [5/16] 0.0, 128
      %1504 = vxpose.xlu0.b32.cont [6/16] 0.0, 128
      %1505 = vxpose.xlu0.b32.cont [7/16] 0.0, 128
      %1506 = vxpose.xlu0.b32.cont [8/16] 0.0, 128
      %1507 = vxpose.xlu0.b32.cont [9/16] 0.0, 128
      %1508 = vxpose.xlu0.b32.cont [10/16] 0.0, 128
      %1509 = vxpose.xlu0.b32.cont [11/16] 0.0, 128
      %1510 = vxpose.xlu0.b32.cont [12/16] 0.0, 128
      %1511 = vxpose.xlu0.b32.cont [13/16] 0.0, 128
      %1512 = vxpose.xlu0.b32.cont [14/16] 0.0, 128
      %1513 = vxpose.xlu0.b32.cont [15/16] 0.0, 128
      %1514 = vxpose.xlu0.b32.end [16/16] 0.0, 128
      %v1515 = vpop.trf.xlu0
      %v1516 = vpop.trf.xlu0
      %v1517 = vpop.trf.xlu0
      %v1518 = vpop.trf.xlu0
      %v1519 = vpop.trf.xlu0
      %v1520 = vpop.trf.xlu0
      %v1521 = vpop.trf.xlu0
      %v1522 = vpop.trf.xlu0
      %v1523 = vpop.trf.xlu0
      %v1524 = vpop.trf.xlu0
      %v1525 = vpop.trf.xlu0
      %v1526 = vpop.trf.xlu0
      %v1527 = vpop.trf.xlu0
      %v1528 = vpop.trf.xlu0
      %v1529 = vpop.trf.xlu0
      %v1530 = vpop.trf.xlu0
      %1531 = vxpose.xlu0.b32.start [1/16] %v1263, 128
      %1532 = vxpose.xlu0.b32.cont [2/16] %v1264, 128
      %1533 = vxpose.xlu0.b32.cont [3/16] 0.0, 128
      %1534 = vxpose.xlu0.b32.cont [4/16] 0.0, 128
      %1535 = vxpose.xlu0.b32.cont [5/16] 0.0, 128
      %1536 = vxpose.xlu0.b32.cont [6/16] 0.0, 128
      %1537 = vxpose.xlu0.b32.cont [7/16] 0.0, 128
      %1538 = vxpose.xlu0.b32.cont [8/16] 0.0, 128
      %1539 = vxpose.xlu0.b32.cont [9/16] 0.0, 128
      %1540 = vxpose.xlu0.b32.cont [10/16] 0.0, 128
      %1541 = vxpose.xlu0.b32.cont [11/16] 0.0, 128
      %1542 = vxpose.xlu0.b32.cont [12/16] 0.0, 128
      %1543 = vxpose.xlu0.b32.cont [13/16] 0.0, 128
      %1544 = vxpose.xlu0.b32.cont [14/16] 0.0, 128
      %1545 = vxpose.xlu0.b32.cont [15/16] 0.0, 128
      %1546 = vxpose.xlu0.b32.end [16/16] 0.0, 128
      %v1547 = vpop.trf.xlu0
      %v1548 = vpop.trf.xlu0
      %v1549 = vpop.trf.xlu0
      %v1550 = vpop.trf.xlu0
      %v1551 = vpop.trf.xlu0
      %v1552 = vpop.trf.xlu0
      %v1553 = vpop.trf.xlu0
      %v1554 = vpop.trf.xlu0
      %v1555 = vpop.trf.xlu0
      %v1556 = vpop.trf.xlu0
      %v1557 = vpop.trf.xlu0
      %v1558 = vpop.trf.xlu0
      %v1559 = vpop.trf.xlu0
      %v1560 = vpop.trf.xlu0
      %v1561 = vpop.trf.xlu0
      %v1562 = vpop.trf.xlu0
      %1563 = vxpose.xlu0.b32.start [1/16] %v1265, 128
      %1564 = vxpose.xlu0.b32.cont [2/16] %v1266, 128
      %1565 = vxpose.xlu0.b32.cont [3/16] 0.0, 128
      %1566 = vxpose.xlu0.b32.cont [4/16] 0.0, 128
      %1567 = vxpose.xlu0.b32.cont [5/16] 0.0, 128
      %1568 = vxpose.xlu0.b32.cont [6/16] 0.0, 128
      %1569 = vxpose.xlu0.b32.cont [7/16] 0.0, 128
      %1570 = vxpose.xlu0.b32.cont [8/16] 0.0, 128
      %1571 = vxpose.xlu0.b32.cont [9/16] 0.0, 128
      %1572 = vxpose.xlu0.b32.cont [10/16] 0.0, 128
      %1573 = vxpose.xlu0.b32.cont [11/16] 0.0, 128
      %1574 = vxpose.xlu0.b32.cont [12/16] 0.0, 128
      %1575 = vxpose.xlu0.b32.cont [13/16] 0.0, 128
      %1576 = vxpose.xlu0.b32.cont [14/16] 0.0, 128
      %1577 = vxpose.xlu0.b32.cont [15/16] 0.0, 128
      %1578 = vxpose.xlu0.b32.end [16/16] 0.0, 128
      %v1579 = vpop.trf.xlu0
      %v1580 = vpop.trf.xlu0
      %v1581 = vpop.trf.xlu0
      %v1582 = vpop.trf.xlu0
      %v1583 = vpop.trf.xlu0
      %v1584 = vpop.trf.xlu0
      %v1585 = vpop.trf.xlu0
      %v1586 = vpop.trf.xlu0
      %v1587 = vpop.trf.xlu0
      %v1588 = vpop.trf.xlu0
      %v1589 = vpop.trf.xlu0
      %v1590 = vpop.trf.xlu0
      %v1591 = vpop.trf.xlu0
      %v1592 = vpop.trf.xlu0
      %v1593 = vpop.trf.xlu0
      %v1594 = vpop.trf.xlu0
      %1595 = vxpose.xlu0.b32.start [1/16] %v1267, 128
      %1596 = vxpose.xlu0.b32.cont [2/16] %v1268, 128
      %1597 = vxpose.xlu0.b32.cont [3/16] 0.0, 128
      %1598 = vxpose.xlu0.b32.cont [4/16] 0.0, 128
      %1599 = vxpose.xlu0.b32.cont [5/16] 0.0, 128
      %1600 = vxpose.xlu0.b32.cont [6/16] 0.0, 128
      %1601 = vxpose.xlu0.b32.cont [7/16] 0.0, 128
      %1602 = vxpose.xlu0.b32.cont [8/16] 0.0, 128
      %1603 = vxpose.xlu0.b32.cont [9/16] 0.0, 128
      %1604 = vxpose.xlu0.b32.cont [10/16] 0.0, 128
      %1605 = vxpose.xlu0.b32.cont [11/16] 0.0, 128
      %1606 = vxpose.xlu0.b32.cont [12/16] 0.0, 128
      %1607 = vxpose.xlu0.b32.cont [13/16] 0.0, 128
      %1608 = vxpose.xlu0.b32.cont [14/16] 0.0, 128
      %1609 = vxpose.xlu0.b32.cont [15/16] 0.0, 128
      %1610 = vxpose.xlu0.b32.end [16/16] 0.0, 128
      %v1611 = vpop.trf.xlu0
      %v1612 = vpop.trf.xlu0
      %v1613 = vpop.trf.xlu0
      %v1614 = vpop.trf.xlu0
      %v1615 = vpop.trf.xlu0
      %v1616 = vpop.trf.xlu0
      %v1617 = vpop.trf.xlu0
      %v1618 = vpop.trf.xlu0
      %v1619 = vpop.trf.xlu0
      %v1620 = vpop.trf.xlu0
      %v1621 = vpop.trf.xlu0
      %v1622 = vpop.trf.xlu0
      %v1623 = vpop.trf.xlu0
      %v1624 = vpop.trf.xlu0
      %v1625 = vpop.trf.xlu0
      %v1626 = vpop.trf.xlu0
      %1627 = vxpose.xlu0.b32.start [1/16] %v1269, 128
      %1628 = vxpose.xlu0.b32.cont [2/16] %v1270, 128
      %1629 = vxpose.xlu0.b32.cont [3/16] 0.0, 128
      %1630 = vxpose.xlu0.b32.cont [4/16] 0.0, 128
      %1631 = vxpose.xlu0.b32.cont [5/16] 0.0, 128
      %1632 = vxpose.xlu0.b32.cont [6/16] 0.0, 128
      %1633 = vxpose.xlu0.b32.cont [7/16] 0.0, 128
      %1634 = vxpose.xlu0.b32.cont [8/16] 0.0, 128
      %1635 = vxpose.xlu0.b32.cont [9/16] 0.0, 128
      %1636 = vxpose.xlu0.b32.cont [10/16] 0.0, 128
      %1637 = vxpose.xlu0.b32.cont [11/16] 0.0, 128
      %1638 = vxpose.xlu0.b32.cont [12/16] 0.0, 128
      %1639 = vxpose.xlu0.b32.cont [13/16] 0.0, 128
      %1640 = vxpose.xlu0.b32.cont [14/16] 0.0, 128
      %1641 = vxpose.xlu0.b32.cont [15/16] 0.0, 128
      %1642 = vxpose.xlu0.b32.end [16/16] 0.0, 128
      %v1643 = vpop.trf.xlu0
      %v1644 = vpop.trf.xlu0
      %v1645 = vpop.trf.xlu0
      %v1646 = vpop.trf.xlu0
      %v1647 = vpop.trf.xlu0
      %v1648 = vpop.trf.xlu0
      %v1649 = vpop.trf.xlu0
      %v1650 = vpop.trf.xlu0
      %v1651 = vpop.trf.xlu0
      %v1652 = vpop.trf.xlu0
      %v1653 = vpop.trf.xlu0
      %v1654 = vpop.trf.xlu0
      %v1655 = vpop.trf.xlu0
      %v1656 = vpop.trf.xlu0
      %v1657 = vpop.trf.xlu0
      %v1658 = vpop.trf.xlu0
      %1663 = vrot.lane.b32.xlu0 %v1158, 32
      %v1664 = vpop.permute.xlu0 %1663
      %1665 = vrot.lane.b32.xlu0 %v1160, 32
      %v1666 = vpop.permute.xlu0 %1665
      %1667 = vrot.lane.b32.xlu0 %v1164, 32
      %v1668 = vpop.permute.xlu0 %1667
      %1669 = vrot.lane.b32.xlu0 %v1166, 32
      %v1670 = vpop.permute.xlu0 %1669
      %vm1671 = vcmask 261120
      %v1672 = vsel %vm1671, %v1664, %v1666
      %v1673 = vsel %vm1671, %v1668, %v1670
      %1676 = vxpose.xlu0.b32.start [1/16] %v1672, 128
      %1677 = vxpose.xlu0.b32.cont [2/16] 0.0, 128
      %1678 = vxpose.xlu0.b32.cont [3/16] 0.0, 128
      %1679 = vxpose.xlu0.b32.cont [4/16] 0.0, 128
      %1680 = vxpose.xlu0.b32.cont [5/16] 0.0, 128
      %1681 = vxpose.xlu0.b32.cont [6/16] 0.0, 128
      %1682 = vxpose.xlu0.b32.cont [7/16] 0.0, 128
      %1683 = vxpose.xlu0.b32.cont [8/16] 0.0, 128
      %1684 = vxpose.xlu0.b32.cont [9/16] 0.0, 128
      %1685 = vxpose.xlu0.b32.cont [10/16] 0.0, 128
      %1686 = vxpose.xlu0.b32.cont [11/16] 0.0, 128
      %1687 = vxpose.xlu0.b32.cont [12/16] 0.0, 128
      %1688 = vxpose.xlu0.b32.cont [13/16] 0.0, 128
      %1689 = vxpose.xlu0.b32.cont [14/16] 0.0, 128
      %1690 = vxpose.xlu0.b32.cont [15/16] 0.0, 128
      %1691 = vxpose.xlu0.b32.end [16/16] 0.0, 128
      %v1692 = vpop.trf.xlu0
      %v1693 = vpop.trf.xlu0
      %v1694 = vpop.trf.xlu0
      %v1695 = vpop.trf.xlu0
      %v1696 = vpop.trf.xlu0
      %v1697 = vpop.trf.xlu0
      %v1698 = vpop.trf.xlu0
      %v1699 = vpop.trf.xlu0
      %v1700 = vpop.trf.xlu0
      %v1701 = vpop.trf.xlu0
      %v1702 = vpop.trf.xlu0
      %v1703 = vpop.trf.xlu0
      %v1704 = vpop.trf.xlu0
      %v1705 = vpop.trf.xlu0
      %v1706 = vpop.trf.xlu0
      %v1707 = vpop.trf.xlu0
      %1708 = vxpose.xlu0.b32.start [1/16] %v1673, 128
      %1709 = vxpose.xlu0.b32.cont [2/16] 0.0, 128
      %1710 = vxpose.xlu0.b32.cont [3/16] 0.0, 128
      %1711 = vxpose.xlu0.b32.cont [4/16] 0.0, 128
      %1712 = vxpose.xlu0.b32.cont [5/16] 0.0, 128
      %1713 = vxpose.xlu0.b32.cont [6/16] 0.0, 128
      %1714 = vxpose.xlu0.b32.cont [7/16] 0.0, 128
      %1715 = vxpose.xlu0.b32.cont [8/16] 0.0, 128
      %1716 = vxpose.xlu0.b32.cont [9/16] 0.0, 128
      %1717 = vxpose.xlu0.b32.cont [10/16] 0.0, 128
      %1718 = vxpose.xlu0.b32.cont [11/16] 0.0, 128
      %1719 = vxpose.xlu0.b32.cont [12/16] 0.0, 128
      %1720 = vxpose.xlu0.b32.cont [13/16] 0.0, 128
      %1721 = vxpose.xlu0.b32.cont [14/16] 0.0, 128
      %1722 = vxpose.xlu0.b32.cont [15/16] 0.0, 128
      %1723 = vxpose.xlu0.b32.end [16/16] 0.0, 128
      %v1724 = vpop.trf.xlu0
      %v1725 = vpop.trf.xlu0
      %v1726 = vpop.trf.xlu0
      %v1727 = vpop.trf.xlu0
      %v1728 = vpop.trf.xlu0
      %v1729 = vpop.trf.xlu0
      %v1730 = vpop.trf.xlu0
      %v1731 = vpop.trf.xlu0
      %v1732 = vpop.trf.xlu0
      %v1733 = vpop.trf.xlu0
      %v1734 = vpop.trf.xlu0
      %v1735 = vpop.trf.xlu0
      %v1736 = vpop.trf.xlu0
      %v1737 = vpop.trf.xlu0
      %v1738 = vpop.trf.xlu0
      %v1739 = vpop.trf.xlu0
      %1742 = vrot.lane.b32.xlu0 %v1160, 64
      %v1743 = vpop.permute.xlu0 %1742
      %1744 = vrot.lane.b32.xlu0 %v1203, 64
      %v1745 = vpop.permute.xlu0 %1744
      %1746 = vrot.lane.b32.xlu0 %v1166, 64
      %v1747 = vpop.permute.xlu0 %1746
      %1748 = vrot.lane.b32.xlu0 %v1208, 64
      %v1749 = vpop.permute.xlu0 %1748
      %vm1750 = vcmask 523264
      %v1751 = vsel %vm1750, %v1743, %v1745
      %v1752 = vsel %vm1750, %v1747, %v1749
      %1755 = vxpose.xlu0.b32.start [1/16] %v1751, 128
      %1756 = vxpose.xlu0.b32.cont [2/16] 0.0, 128
      %1757 = vxpose.xlu0.b32.cont [3/16] 0.0, 128
      %1758 = vxpose.xlu0.b32.cont [4/16] 0.0, 128
      %1759 = vxpose.xlu0.b32.cont [5/16] 0.0, 128
      %1760 = vxpose.xlu0.b32.cont [6/16] 0.0, 128
      %1761 = vxpose.xlu0.b32.cont [7/16] 0.0, 128
      %1762 = vxpose.xlu0.b32.cont [8/16] 0.0, 128
      %1763 = vxpose.xlu0.b32.cont [9/16] 0.0, 128
      %1764 = vxpose.xlu0.b32.cont [10/16] 0.0, 128
      %1765 = vxpose.xlu0.b32.cont [11/16] 0.0, 128
      %1766 = vxpose.xlu0.b32.cont [12/16] 0.0, 128
      %1767 = vxpose.xlu0.b32.cont [13/16] 0.0, 128
      %1768 = vxpose.xlu0.b32.cont [14/16] 0.0, 128
      %1769 = vxpose.xlu0.b32.cont [15/16] 0.0, 128
      %1770 = vxpose.xlu0.b32.end [16/16] 0.0, 128
      %v1771 = vpop.trf.xlu0
      %v1772 = vpop.trf.xlu0
      %v1773 = vpop.trf.xlu0
      %v1774 = vpop.trf.xlu0
      %v1775 = vpop.trf.xlu0
      %v1776 = vpop.trf.xlu0
      %v1777 = vpop.trf.xlu0
      %v1778 = vpop.trf.xlu0
      %v1779 = vpop.trf.xlu0
      %v1780 = vpop.trf.xlu0
      %v1781 = vpop.trf.xlu0
      %v1782 = vpop.trf.xlu0
      %v1783 = vpop.trf.xlu0
      %v1784 = vpop.trf.xlu0
      %v1785 = vpop.trf.xlu0
      %v1786 = vpop.trf.xlu0
      %1787 = vxpose.xlu0.b32.start [1/16] %v1752, 128
      %1788 = vxpose.xlu0.b32.cont [2/16] 0.0, 128
      %1789 = vxpose.xlu0.b32.cont [3/16] 0.0, 128
      %1790 = vxpose.xlu0.b32.cont [4/16] 0.0, 128
      %1791 = vxpose.xlu0.b32.cont [5/16] 0.0, 128
      %1792 = vxpose.xlu0.b32.cont [6/16] 0.0, 128
      %1793 = vxpose.xlu0.b32.cont [7/16] 0.0, 128
      %1794 = vxpose.xlu0.b32.cont [8/16] 0.0, 128
      %1795 = vxpose.xlu0.b32.cont [9/16] 0.0, 128
      %1796 = vxpose.xlu0.b32.cont [10/16] 0.0, 128
      %1797 = vxpose.xlu0.b32.cont [11/16] 0.0, 128
      %1798 = vxpose.xlu0.b32.cont [12/16] 0.0, 128
      %1799 = vxpose.xlu0.b32.cont [13/16] 0.0, 128
      %1800 = vxpose.xlu0.b32.cont [14/16] 0.0, 128
      %1801 = vxpose.xlu0.b32.cont [15/16] 0.0, 128
      %1802 = vxpose.xlu0.b32.end [16/16] 0.0, 128
      %v1803 = vpop.trf.xlu0
      %v1804 = vpop.trf.xlu0
      %v1805 = vpop.trf.xlu0
      %v1806 = vpop.trf.xlu0
      %v1807 = vpop.trf.xlu0
      %v1808 = vpop.trf.xlu0
      %v1809 = vpop.trf.xlu0
      %v1810 = vpop.trf.xlu0
      %v1811 = vpop.trf.xlu0
      %v1812 = vpop.trf.xlu0
      %v1813 = vpop.trf.xlu0
      %v1814 = vpop.trf.xlu0
      %v1815 = vpop.trf.xlu0
      %v1816 = vpop.trf.xlu0
      %v1817 = vpop.trf.xlu0
      %v1818 = vpop.trf.xlu0
      %vm1819 = vcmask 130048
      %v1821 = vsel %vm1819, %v1291, 0
      %1823 = vmatprep.subr.mxu0 0.0
      %1824 = vmatpush1.msra.mxu0 %v1692
      %1825 = vmatprep.subr.mxu0 0.0
      %1826 = vmatpush1.msra.mxu0 %v1693
      %1827 = vmatprep.subr.mxu0 0.0
      %1828 = vmatpush1.msra.mxu0 0.0
      %1829 = vmatprep.subr.mxu0 0.0
      %1830 = vmatpush1.msra.mxu0 0.0
      %1831 = vmatprep.subr.mxu0 0.0
      %1832 = vmatpush1.msra.mxu0 0.0
      %1833 = vmatprep.subr.mxu0 0.0
      %1834 = vmatpush1.msra.mxu0 0.0
      %1835 = vmatprep.subr.mxu0 0.0
      %1836 = vmatpush1.msra.mxu0 0.0
      %1837 = vmatprep.subr.mxu0 0.0
      %1838 = vmatpush1.msra.mxu0 0.0
      %1839 = vmatprep.subr.mxu0 0.0
      %1840 = vmatpush1.msra.mxu0 0.0
      %1841 = vmatprep.subr.mxu0 0.0
      %1842 = vmatpush1.msra.mxu0 0.0
      %1843 = vmatprep.subr.mxu0 0.0
      %1844 = vmatpush1.msra.mxu0 0.0
      %1845 = vmatprep.subr.mxu0 0.0
      %1846 = vmatpush1.msra.mxu0 0.0
      %1847 = vmatprep.subr.mxu0 0.0
      %1848 = vmatpush1.msra.mxu0 0.0
      %1849 = vmatprep.subr.mxu0 0.0
      %1850 = vmatpush1.msra.mxu0 0.0
      %1851 = vmatprep.subr.mxu0 0.0
      %1852 = vmatpush1.msra.mxu0 0.0
      %1853 = vmatprep.subr.mxu0 0.0
      %1854 = vmatpush1.msra.mxu0 0.0
      %1855 = vmatprep.subr.mxu0 0.0
      %1856 = vmatpush1.msra.mxu0 0.0
      %1857 = vmatprep.subr.mxu0 0.0
      %1858 = vmatpush1.msra.mxu0 0.0
      %1859 = vmatprep.subr.mxu0 0.0
      %1860 = vmatpush1.msra.mxu0 0.0
      %1861 = vmatprep.subr.mxu0 0.0
      %1862 = vmatpush1.msra.mxu0 0.0
      %1863 = vmatprep.subr.mxu0 0.0
      %1864 = vmatpush1.msra.mxu0 0.0
      %1865 = vmatprep.subr.mxu0 0.0
      %1866 = vmatpush1.msra.mxu0 0.0
      %1867 = vmatprep.subr.mxu0 0.0
      %1868 = vmatpush1.msra.mxu0 0.0
      %1869 = vmatprep.subr.mxu0 0.0
      %1870 = vmatpush1.msra.mxu0 0.0
      %1871 = vmatprep.subr.mxu0 0.0
      %1872 = vmatpush1.msra.mxu0 0.0
      %1873 = vmatprep.subr.mxu0 0.0
      %1874 = vmatpush1.msra.mxu0 0.0
      %1875 = vmatprep.subr.mxu0 0.0
      %1876 = vmatpush1.msra.mxu0 0.0
      %1877 = vmatprep.subr.mxu0 0.0
      %1878 = vmatpush1.msra.mxu0 0.0
      %1879 = vmatprep.subr.mxu0 0.0
      %1880 = vmatpush1.msra.mxu0 0.0
      %1881 = vmatprep.subr.mxu0 0.0
      %1882 = vmatpush1.msra.mxu0 0.0
      %1883 = vmatprep.subr.mxu0 0.0
      %1884 = vmatpush1.msra.mxu0 0.0
      %1885 = vmatprep.subr.mxu0 0.0
      %1886 = vmatpush1.msra.mxu0 0.0
      %1887 = vmatprep.mubr.f32.mxu0 0.0
      %1888 = vmatmul.mubr.f32.gmra.mrb[0].mxu0 %v1821
      %v1889 = vpop.f32.mrb[0].mxu0
      %v1890 = vadd.f32 %v948, %v1889
      %v1891 = vpop.f32.mrb[0].mxu0
      %1892 = vdwg.mxu0
      %v1894 = vsel %vm1819, %v1323, 0
      %1896 = vmatprep.subr.mxu0 0.0
      %1897 = vmatpush1.msra.mxu0 %v1694
      %1898 = vmatprep.subr.mxu0 0.0
      %1899 = vmatpush1.msra.mxu0 %v1695
      %1900 = vmatprep.subr.mxu0 0.0
      %1901 = vmatpush1.msra.mxu0 0.0
      %1902 = vmatprep.subr.mxu0 0.0
      %1903 = vmatpush1.msra.mxu0 0.0
      %1904 = vmatprep.subr.mxu0 0.0
      %1905 = vmatpush1.msra.mxu0 0.0
      %1906 = vmatprep.subr.mxu0 0.0
      %1907 = vmatpush1.msra.mxu0 0.0
      %1908 = vmatprep.subr.mxu0 0.0
      %1909 = vmatpush1.msra.mxu0 0.0
      %1910 = vmatprep.subr.mxu0 0.0
      %1911 = vmatpush1.msra.mxu0 0.0
      %1912 = vmatprep.subr.mxu0 0.0
      %1913 = vmatpush1.msra.mxu0 0.0
      %1914 = vmatprep.subr.mxu0 0.0
      %1915 = vmatpush1.msra.mxu0 0.0
      %1916 = vmatprep.subr.mxu0 0.0
      %1917 = vmatpush1.msra.mxu0 0.0
      %1918 = vmatprep.subr.mxu0 0.0
      %1919 = vmatpush1.msra.mxu0 0.0
      %1920 = vmatprep.subr.mxu0 0.0
      %1921 = vmatpush1.msra.mxu0 0.0
      %1922 = vmatprep.subr.mxu0 0.0
      %1923 = vmatpush1.msra.mxu0 0.0
      %1924 = vmatprep.subr.mxu0 0.0
      %1925 = vmatpush1.msra.mxu0 0.0
      %1926 = vmatprep.subr.mxu0 0.0
      %1927 = vmatpush1.msra.mxu0 0.0
      %1928 = vmatprep.subr.mxu0 0.0
      %1929 = vmatpush1.msra.mxu0 0.0
      %1930 = vmatprep.subr.mxu0 0.0
      %1931 = vmatpush1.msra.mxu0 0.0
      %1932 = vmatprep.subr.mxu0 0.0
      %1933 = vmatpush1.msra.mxu0 0.0
      %1934 = vmatprep.subr.mxu0 0.0
      %1935 = vmatpush1.msra.mxu0 0.0
      %1936 = vmatprep.subr.mxu0 0.0
      %1937 = vmatpush1.msra.mxu0 0.0
      %1938 = vmatprep.subr.mxu0 0.0
      %1939 = vmatpush1.msra.mxu0 0.0
      %1940 = vmatprep.subr.mxu0 0.0
      %1941 = vmatpush1.msra.mxu0 0.0
      %1942 = vmatprep.subr.mxu0 0.0
      %1943 = vmatpush1.msra.mxu0 0.0
      %1944 = vmatprep.subr.mxu0 0.0
      %1945 = vmatpush1.msra.mxu0 0.0
      %1946 = vmatprep.subr.mxu0 0.0
      %1947 = vmatpush1.msra.mxu0 0.0
      %1948 = vmatprep.subr.mxu0 0.0
      %1949 = vmatpush1.msra.mxu0 0.0
      %1950 = vmatprep.subr.mxu0 0.0
      %1951 = vmatpush1.msra.mxu0 0.0
      %1952 = vmatprep.subr.mxu0 0.0
      %1953 = vmatpush1.msra.mxu0 0.0
      %1954 = vmatprep.subr.mxu0 0.0
      %1955 = vmatpush1.msra.mxu0 0.0
      %1956 = vmatprep.subr.mxu0 0.0
      %1957 = vmatpush1.msra.mxu0 0.0
      %1958 = vmatprep.subr.mxu0 0.0
      %1959 = vmatpush1.msra.mxu0 0.0
      %1960 = vmatprep.mubr.f32.mxu0 0.0
      %1961 = vmatmul.mubr.f32.gmra.mrb[0].mxu0 %v1894
      %v1962 = vpop.f32.mrb[0].mxu0
      %v1963 = vadd.f32 %v948, %v1962
      %v1964 = vpop.f32.mrb[0].mxu0
      %1965 = vdwg.mxu0
      %v1967 = vsel %vm1819, %v1355, 0
      %1969 = vmatprep.subr.mxu0 0.0
      %1970 = vmatpush1.msra.mxu0 %v1696
      %1971 = vmatprep.subr.mxu0 0.0
      %1972 = vmatpush1.msra.mxu0 %v1697
      %1973 = vmatprep.subr.mxu0 0.0
      %1974 = vmatpush1.msra.mxu0 0.0
      %1975 = vmatprep.subr.mxu0 0.0
      %1976 = vmatpush1.msra.mxu0 0.0
      %1977 = vmatprep.subr.mxu0 0.0
      %1978 = vmatpush1.msra.mxu0 0.0
      %1979 = vmatprep.subr.mxu0 0.0
      %1980 = vmatpush1.msra.mxu0 0.0
      %1981 = vmatprep.subr.mxu0 0.0
      %1982 = vmatpush1.msra.mxu0 0.0
      %1983 = vmatprep.subr.mxu0 0.0
      %1984 = vmatpush1.msra.mxu0 0.0
      %1985 = vmatprep.subr.mxu0 0.0
      %1986 = vmatpush1.msra.mxu0 0.0
      %1987 = vmatprep.subr.mxu0 0.0
      %1988 = vmatpush1.msra.mxu0 0.0
      %1989 = vmatprep.subr.mxu0 0.0
      %1990 = vmatpush1.msra.mxu0 0.0
      %1991 = vmatprep.subr.mxu0 0.0
      %1992 = vmatpush1.msra.mxu0 0.0
      %1993 = vmatprep.subr.mxu0 0.0
      %1994 = vmatpush1.msra.mxu0 0.0
      %1995 = vmatprep.subr.mxu0 0.0
      %1996 = vmatpush1.msra.mxu0 0.0
      %1997 = vmatprep.subr.mxu0 0.0
      %1998 = vmatpush1.msra.mxu0 0.0
      %1999 = vmatprep.subr.mxu0 0.0
      %2000 = vmatpush1.msra.mxu0 0.0
      %2001 = vmatprep.subr.mxu0 0.0
      %2002 = vmatpush1.msra.mxu0 0.0
      %2003 = vmatprep.subr.mxu0 0.0
      %2004 = vmatpush1.msra.mxu0 0.0
      %2005 = vmatprep.subr.mxu0 0.0
      %2006 = vmatpush1.msra.mxu0 0.0
      %2007 = vmatprep.subr.mxu0 0.0
      %2008 = vmatpush1.msra.mxu0 0.0
      %2009 = vmatprep.subr.mxu0 0.0
      %2010 = vmatpush1.msra.mxu0 0.0
      %2011 = vmatprep.subr.mxu0 0.0
      %2012 = vmatpush1.msra.mxu0 0.0
      %2013 = vmatprep.subr.mxu0 0.0
      %2014 = vmatpush1.msra.mxu0 0.0
      %2015 = vmatprep.subr.mxu0 0.0
      %2016 = vmatpush1.msra.mxu0 0.0
      %2017 = vmatprep.subr.mxu0 0.0
      %2018 = vmatpush1.msra.mxu0 0.0
      %2019 = vmatprep.subr.mxu0 0.0
      %2020 = vmatpush1.msra.mxu0 0.0
      %2021 = vmatprep.subr.mxu0 0.0
      %2022 = vmatpush1.msra.mxu0 0.0
      %2023 = vmatprep.subr.mxu0 0.0
      %2024 = vmatpush1.msra.mxu0 0.0
      %2025 = vmatprep.subr.mxu0 0.0
      %2026 = vmatpush1.msra.mxu0 0.0
      %2027 = vmatprep.subr.mxu0 0.0
      %2028 = vmatpush1.msra.mxu0 0.0
      %2029 = vmatprep.subr.mxu0 0.0
      %2030 = vmatpush1.msra.mxu0 0.0
      %2031 = vmatprep.subr.mxu0 0.0
      %2032 = vmatpush1.msra.mxu0 0.0
      %2033 = vmatprep.mubr.f32.mxu0 0.0
      %2034 = vmatmul.mubr.f32.gmra.mrb[0].mxu0 %v1967
      %v2035 = vpop.f32.mrb[0].mxu0
      %v2036 = vadd.f32 %v948, %v2035
      %v2037 = vpop.f32.mrb[0].mxu0
      %2038 = vdwg.mxu0
      %v2040 = vsel %vm1819, %v1387, 0
      %2042 = vmatprep.subr.mxu0 0.0
      %2043 = vmatpush1.msra.mxu0 %v1698
      %2044 = vmatprep.subr.mxu0 0.0
      %2045 = vmatpush1.msra.mxu0 %v1699
      %2046 = vmatprep.subr.mxu0 0.0
      %2047 = vmatpush1.msra.mxu0 0.0
      %2048 = vmatprep.subr.mxu0 0.0
      %2049 = vmatpush1.msra.mxu0 0.0
      %2050 = vmatprep.subr.mxu0 0.0
      %2051 = vmatpush1.msra.mxu0 0.0
      %2052 = vmatprep.subr.mxu0 0.0
      %2053 = vmatpush1.msra.mxu0 0.0
      %2054 = vmatprep.subr.mxu0 0.0
      %2055 = vmatpush1.msra.mxu0 0.0
      %2056 = vmatprep.subr.mxu0 0.0
      %2057 = vmatpush1.msra.mxu0 0.0
      %2058 = vmatprep.subr.mxu0 0.0
      %2059 = vmatpush1.msra.mxu0 0.0
      %2060 = vmatprep.subr.mxu0 0.0
      %2061 = vmatpush1.msra.mxu0 0.0
      %2062 = vmatprep.subr.mxu0 0.0
      %2063 = vmatpush1.msra.mxu0 0.0
      %2064 = vmatprep.subr.mxu0 0.0
      %2065 = vmatpush1.msra.mxu0 0.0
      %2066 = vmatprep.subr.mxu0 0.0
      %2067 = vmatpush1.msra.mxu0 0.0
      %2068 = vmatprep.subr.mxu0 0.0
      %2069 = vmatpush1.msra.mxu0 0.0
      %2070 = vmatprep.subr.mxu0 0.0
      %2071 = vmatpush1.msra.mxu0 0.0
      %2072 = vmatprep.subr.mxu0 0.0
      %2073 = vmatpush1.msra.mxu0 0.0
      %2074 = vmatprep.subr.mxu0 0.0
      %2075 = vmatpush1.msra.mxu0 0.0
      %2076 = vmatprep.subr.mxu0 0.0
      %2077 = vmatpush1.msra.mxu0 0.0
      %2078 = vmatprep.subr.mxu0 0.0
      %2079 = vmatpush1.msra.mxu0 0.0
      %2080 = vmatprep.subr.mxu0 0.0
      %2081 = vmatpush1.msra.mxu0 0.0
      %2082 = vmatprep.subr.mxu0 0.0
      %2083 = vmatpush1.msra.mxu0 0.0
      %2084 = vmatprep.subr.mxu0 0.0
      %2085 = vmatpush1.msra.mxu0 0.0
      %2086 = vmatprep.subr.mxu0 0.0
      %2087 = vmatpush1.msra.mxu0 0.0
      %2088 = vmatprep.subr.mxu0 0.0
      %2089 = vmatpush1.msra.mxu0 0.0
      %2090 = vmatprep.subr.mxu0 0.0
      %2091 = vmatpush1.msra.mxu0 0.0
      %2092 = vmatprep.subr.mxu0 0.0
      %2093 = vmatpush1.msra.mxu0 0.0
      %2094 = vmatprep.subr.mxu0 0.0
      %2095 = vmatpush1.msra.mxu0 0.0
      %2096 = vmatprep.subr.mxu0 0.0
      %2097 = vmatpush1.msra.mxu0 0.0
      %2098 = vmatprep.subr.mxu0 0.0
      %2099 = vmatpush1.msra.mxu0 0.0
      %2100 = vmatprep.subr.mxu0 0.0
      %2101 = vmatpush1.msra.mxu0 0.0
      %2102 = vmatprep.subr.mxu0 0.0
      %2103 = vmatpush1.msra.mxu0 0.0
      %2104 = vmatprep.subr.mxu0 0.0
      %2105 = vmatpush1.msra.mxu0 0.0
      %2106 = vmatprep.mubr.f32.mxu0 0.0
      %2107 = vmatmul.mubr.f32.gmra.mrb[0].mxu0 %v2040
      %v2108 = vpop.f32.mrb[0].mxu0
      %v2109 = vadd.f32 %v948, %v2108
      %v2110 = vpop.f32.mrb[0].mxu0
      %2111 = vdwg.mxu0
      %v2113 = vsel %vm1819, %v1419, 0
      %2115 = vmatprep.subr.mxu0 0.0
      %2116 = vmatpush1.msra.mxu0 %v1700
      %2117 = vmatprep.subr.mxu0 0.0
      %2118 = vmatpush1.msra.mxu0 %v1701
      %2119 = vmatprep.subr.mxu0 0.0
      %2120 = vmatpush1.msra.mxu0 0.0
      %2121 = vmatprep.subr.mxu0 0.0
      %2122 = vmatpush1.msra.mxu0 0.0
      %2123 = vmatprep.subr.mxu0 0.0
      %2124 = vmatpush1.msra.mxu0 0.0
      %2125 = vmatprep.subr.mxu0 0.0
      %2126 = vmatpush1.msra.mxu0 0.0
      %2127 = vmatprep.subr.mxu0 0.0
      %2128 = vmatpush1.msra.mxu0 0.0
      %2129 = vmatprep.subr.mxu0 0.0
      %2130 = vmatpush1.msra.mxu0 0.0
      %2131 = vmatprep.subr.mxu0 0.0
      %2132 = vmatpush1.msra.mxu0 0.0
      %2133 = vmatprep.subr.mxu0 0.0
      %2134 = vmatpush1.msra.mxu0 0.0
      %2135 = vmatprep.subr.mxu0 0.0
      %2136 = vmatpush1.msra.mxu0 0.0
      %2137 = vmatprep.subr.mxu0 0.0
      %2138 = vmatpush1.msra.mxu0 0.0
      %2139 = vmatprep.subr.mxu0 0.0
      %2140 = vmatpush1.msra.mxu0 0.0
      %2141 = vmatprep.subr.mxu0 0.0
      %2142 = vmatpush1.msra.mxu0 0.0
      %2143 = vmatprep.subr.mxu0 0.0
      %2144 = vmatpush1.msra.mxu0 0.0
      %2145 = vmatprep.subr.mxu0 0.0
      %2146 = vmatpush1.msra.mxu0 0.0
      %2147 = vmatprep.subr.mxu0 0.0
      %2148 = vmatpush1.msra.mxu0 0.0
      %2149 = vmatprep.subr.mxu0 0.0
      %2150 = vmatpush1.msra.mxu0 0.0
      %2151 = vmatprep.subr.mxu0 0.0
      %2152 = vmatpush1.msra.mxu0 0.0
      %2153 = vmatprep.subr.mxu0 0.0
      %2154 = vmatpush1.msra.mxu0 0.0
      %2155 = vmatprep.subr.mxu0 0.0
      %2156 = vmatpush1.msra.mxu0 0.0
      %2157 = vmatprep.subr.mxu0 0.0
      %2158 = vmatpush1.msra.mxu0 0.0
      %2159 = vmatprep.subr.mxu0 0.0
      %2160 = vmatpush1.msra.mxu0 0.0
      %2161 = vmatprep.subr.mxu0 0.0
      %2162 = vmatpush1.msra.mxu0 0.0
      %2163 = vmatprep.subr.mxu0 0.0
      %2164 = vmatpush1.msra.mxu0 0.0
      %2165 = vmatprep.subr.mxu0 0.0
      %2166 = vmatpush1.msra.mxu0 0.0
      %2167 = vmatprep.subr.mxu0 0.0
      %2168 = vmatpush1.msra.mxu0 0.0
      %2169 = vmatprep.subr.mxu0 0.0
      %2170 = vmatpush1.msra.mxu0 0.0
      %2171 = vmatprep.subr.mxu0 0.0
      %2172 = vmatpush1.msra.mxu0 0.0
      %2173 = vmatprep.subr.mxu0 0.0
      %2174 = vmatpush1.msra.mxu0 0.0
      %2175 = vmatprep.subr.mxu0 0.0
      %2176 = vmatpush1.msra.mxu0 0.0
      %2177 = vmatprep.subr.mxu0 0.0
      %2178 = vmatpush1.msra.mxu0 0.0
      %2179 = vmatprep.mubr.f32.mxu0 0.0
      %2180 = vmatmul.mubr.f32.gmra.mrb[0].mxu0 %v2113
      %v2181 = vpop.f32.mrb[0].mxu0
      %v2182 = vadd.f32 %v948, %v2181
      %v2183 = vpop.f32.mrb[0].mxu0
      %2184 = vdwg.mxu0
      %v2186 = vsel %vm1819, %v1451, 0
      %2188 = vmatprep.subr.mxu0 0.0
      %2189 = vmatpush1.msra.mxu0 %v1702
      %2190 = vmatprep.subr.mxu0 0.0
      %2191 = vmatpush1.msra.mxu0 %v1703
      %2192 = vmatprep.subr.mxu0 0.0
      %2193 = vmatpush1.msra.mxu0 0.0
      %2194 = vmatprep.subr.mxu0 0.0
      %2195 = vmatpush1.msra.mxu0 0.0
      %2196 = vmatprep.subr.mxu0 0.0
      %2197 = vmatpush1.msra.mxu0 0.0
      %2198 = vmatprep.subr.mxu0 0.0
      %2199 = vmatpush1.msra.mxu0 0.0
      %2200 = vmatprep.subr.mxu0 0.0
      %2201 = vmatpush1.msra.mxu0 0.0
      %2202 = vmatprep.subr.mxu0 0.0
      %2203 = vmatpush1.msra.mxu0 0.0
      %2204 = vmatprep.subr.mxu0 0.0
      %2205 = vmatpush1.msra.mxu0 0.0
      %2206 = vmatprep.subr.mxu0 0.0
      %2207 = vmatpush1.msra.mxu0 0.0
      %2208 = vmatprep.subr.mxu0 0.0
      %2209 = vmatpush1.msra.mxu0 0.0
      %2210 = vmatprep.subr.mxu0 0.0
      %2211 = vmatpush1.msra.mxu0 0.0
      %2212 = vmatprep.subr.mxu0 0.0
      %2213 = vmatpush1.msra.mxu0 0.0
      %2214 = vmatprep.subr.mxu0 0.0
      %2215 = vmatpush1.msra.mxu0 0.0
      %2216 = vmatprep.subr.mxu0 0.0
      %2217 = vmatpush1.msra.mxu0 0.0
      %2218 = vmatprep.subr.mxu0 0.0
      %2219 = vmatpush1.msra.mxu0 0.0
      %2220 = vmatprep.subr.mxu0 0.0
      %2221 = vmatpush1.msra.mxu0 0.0
      %2222 = vmatprep.subr.mxu0 0.0
      %2223 = vmatpush1.msra.mxu0 0.0
      %2224 = vmatprep.subr.mxu0 0.0
      %2225 = vmatpush1.msra.mxu0 0.0
      %2226 = vmatprep.subr.mxu0 0.0
      %2227 = vmatpush1.msra.mxu0 0.0
      %2228 = vmatprep.subr.mxu0 0.0
      %2229 = vmatpush1.msra.mxu0 0.0
      %2230 = vmatprep.subr.mxu0 0.0
      %2231 = vmatpush1.msra.mxu0 0.0
      %2232 = vmatprep.subr.mxu0 0.0
      %2233 = vmatpush1.msra.mxu0 0.0
      %2234 = vmatprep.subr.mxu0 0.0
      %2235 = vmatpush1.msra.mxu0 0.0
      %2236 = vmatprep.subr.mxu0 0.0
      %2237 = vmatpush1.msra.mxu0 0.0
      %2238 = vmatprep.subr.mxu0 0.0
      %2239 = vmatpush1.msra.mxu0 0.0
      %2240 = vmatprep.subr.mxu0 0.0
      %2241 = vmatpush1.msra.mxu0 0.0
      %2242 = vmatprep.subr.mxu0 0.0
      %2243 = vmatpush1.msra.mxu0 0.0
      %2244 = vmatprep.subr.mxu0 0.0
      %2245 = vmatpush1.msra.mxu0 0.0
      %2246 = vmatprep.subr.mxu0 0.0
      %2247 = vmatpush1.msra.mxu0 0.0
      %2248 = vmatprep.subr.mxu0 0.0
      %2249 = vmatpush1.msra.mxu0 0.0
      %2250 = vmatprep.subr.mxu0 0.0
      %2251 = vmatpush1.msra.mxu0 0.0
      %2252 = vmatprep.mubr.f32.mxu0 0.0
      %2253 = vmatmul.mubr.f32.gmra.mrb[0].mxu0 %v2186
      %v2254 = vpop.f32.mrb[0].mxu0
      %v2255 = vadd.f32 %v948, %v2254
      %v2256 = vpop.f32.mrb[0].mxu0
      %2257 = vdwg.mxu0
      %v2259 = vsel %vm1819, %v1483, 0
      %2261 = vmatprep.subr.mxu0 0.0
      %2262 = vmatpush1.msra.mxu0 %v1724
      %2263 = vmatprep.subr.mxu0 0.0
      %2264 = vmatpush1.msra.mxu0 %v1725
      %2265 = vmatprep.subr.mxu0 0.0
      %2266 = vmatpush1.msra.mxu0 0.0
      %2267 = vmatprep.subr.mxu0 0.0
      %2268 = vmatpush1.msra.mxu0 0.0
      %2269 = vmatprep.subr.mxu0 0.0
      %2270 = vmatpush1.msra.mxu0 0.0
      %2271 = vmatprep.subr.mxu0 0.0
      %2272 = vmatpush1.msra.mxu0 0.0
      %2273 = vmatprep.subr.mxu0 0.0
      %2274 = vmatpush1.msra.mxu0 0.0
      %2275 = vmatprep.subr.mxu0 0.0
      %2276 = vmatpush1.msra.mxu0 0.0
      %2277 = vmatprep.subr.mxu0 0.0
      %2278 = vmatpush1.msra.mxu0 0.0
      %2279 = vmatprep.subr.mxu0 0.0
      %2280 = vmatpush1.msra.mxu0 0.0
      %2281 = vmatprep.subr.mxu0 0.0
      %2282 = vmatpush1.msra.mxu0 0.0
      %2283 = vmatprep.subr.mxu0 0.0
      %2284 = vmatpush1.msra.mxu0 0.0
      %2285 = vmatprep.subr.mxu0 0.0
      %2286 = vmatpush1.msra.mxu0 0.0
      %2287 = vmatprep.subr.mxu0 0.0
      %2288 = vmatpush1.msra.mxu0 0.0
      %2289 = vmatprep.subr.mxu0 0.0
      %2290 = vmatpush1.msra.mxu0 0.0
      %2291 = vmatprep.subr.mxu0 0.0
      %2292 = vmatpush1.msra.mxu0 0.0
      %2293 = vmatprep.subr.mxu0 0.0
      %2294 = vmatpush1.msra.mxu0 0.0
      %2295 = vmatprep.subr.mxu0 0.0
      %2296 = vmatpush1.msra.mxu0 0.0
      %2297 = vmatprep.subr.mxu0 0.0
      %2298 = vmatpush1.msra.mxu0 0.0
      %2299 = vmatprep.subr.mxu0 0.0
      %2300 = vmatpush1.msra.mxu0 0.0
      %2301 = vmatprep.subr.mxu0 0.0
      %2302 = vmatpush1.msra.mxu0 0.0
      %2303 = vmatprep.subr.mxu0 0.0
      %2304 = vmatpush1.msra.mxu0 0.0
      %2305 = vmatprep.subr.mxu0 0.0
      %2306 = vmatpush1.msra.mxu0 0.0
      %2307 = vmatprep.subr.mxu0 0.0
      %2308 = vmatpush1.msra.mxu0 0.0
      %2309 = vmatprep.subr.mxu0 0.0
      %2310 = vmatpush1.msra.mxu0 0.0
      %2311 = vmatprep.subr.mxu0 0.0
      %2312 = vmatpush1.msra.mxu0 0.0
      %2313 = vmatprep.subr.mxu0 0.0
      %2314 = vmatpush1.msra.mxu0 0.0
      %2315 = vmatprep.subr.mxu0 0.0
      %2316 = vmatpush1.msra.mxu0 0.0
      %2317 = vmatprep.subr.mxu0 0.0
      %2318 = vmatpush1.msra.mxu0 0.0
      %2319 = vmatprep.subr.mxu0 0.0
      %2320 = vmatpush1.msra.mxu0 0.0
      %2321 = vmatprep.subr.mxu0 0.0
      %2322 = vmatpush1.msra.mxu0 0.0
      %2323 = vmatprep.subr.mxu0 0.0
      %2324 = vmatpush1.msra.mxu0 0.0
      %2325 = vmatprep.mubr.f32.mxu0 0.0
      %2326 = vmatmul.mubr.f32.gmra.mrb[0].mxu0 %v2259
      %v2327 = vpop.f32.mrb[0].mxu0
      %v2328 = vadd.f32 %v948, %v2327
      %v2329 = vpop.f32.mrb[0].mxu0
      %2330 = vdwg.mxu0
      %v2332 = vsel %vm1819, %v1515, 0
      %2334 = vmatprep.subr.mxu0 0.0
      %2335 = vmatpush1.msra.mxu0 %v1726
      %2336 = vmatprep.subr.mxu0 0.0
      %2337 = vmatpush1.msra.mxu0 %v1727
      %2338 = vmatprep.subr.mxu0 0.0
      %2339 = vmatpush1.msra.mxu0 0.0
      %2340 = vmatprep.subr.mxu0 0.0
      %2341 = vmatpush1.msra.mxu0 0.0
      %2342 = vmatprep.subr.mxu0 0.0
      %2343 = vmatpush1.msra.mxu0 0.0
      %2344 = vmatprep.subr.mxu0 0.0
      %2345 = vmatpush1.msra.mxu0 0.0
      %2346 = vmatprep.subr.mxu0 0.0
      %2347 = vmatpush1.msra.mxu0 0.0
      %2348 = vmatprep.subr.mxu0 0.0
      %2349 = vmatpush1.msra.mxu0 0.0
      %2350 = vmatprep.subr.mxu0 0.0
      %2351 = vmatpush1.msra.mxu0 0.0
      %2352 = vmatprep.subr.mxu0 0.0
      %2353 = vmatpush1.msra.mxu0 0.0
      %2354 = vmatprep.subr.mxu0 0.0
      %2355 = vmatpush1.msra.mxu0 0.0
      %2356 = vmatprep.subr.mxu0 0.0
      %2357 = vmatpush1.msra.mxu0 0.0
      %2358 = vmatprep.subr.mxu0 0.0
      %2359 = vmatpush1.msra.mxu0 0.0
      %2360 = vmatprep.subr.mxu0 0.0
      %2361 = vmatpush1.msra.mxu0 0.0
      %2362 = vmatprep.subr.mxu0 0.0
      %2363 = vmatpush1.msra.mxu0 0.0
      %2364 = vmatprep.subr.mxu0 0.0
      %2365 = vmatpush1.msra.mxu0 0.0
      %2366 = vmatprep.subr.mxu0 0.0
      %2367 = vmatpush1.msra.mxu0 0.0
      %2368 = vmatprep.subr.mxu0 0.0
      %2369 = vmatpush1.msra.mxu0 0.0
      %2370 = vmatprep.subr.mxu0 0.0
      %2371 = vmatpush1.msra.mxu0 0.0
      %2372 = vmatprep.subr.mxu0 0.0
      %2373 = vmatpush1.msra.mxu0 0.0
      %2374 = vmatprep.subr.mxu0 0.0
      %2375 = vmatpush1.msra.mxu0 0.0
      %2376 = vmatprep.subr.mxu0 0.0
      %2377 = vmatpush1.msra.mxu0 0.0
      %2378 = vmatprep.subr.mxu0 0.0
      %2379 = vmatpush1.msra.mxu0 0.0
      %2380 = vmatprep.subr.mxu0 0.0
      %2381 = vmatpush1.msra.mxu0 0.0
      %2382 = vmatprep.subr.mxu0 0.0
      %2383 = vmatpush1.msra.mxu0 0.0
      %2384 = vmatprep.subr.mxu0 0.0
      %2385 = vmatpush1.msra.mxu0 0.0
      %2386 = vmatprep.subr.mxu0 0.0
      %2387 = vmatpush1.msra.mxu0 0.0
      %2388 = vmatprep.subr.mxu0 0.0
      %2389 = vmatpush1.msra.mxu0 0.0
      %2390 = vmatprep.subr.mxu0 0.0
      %2391 = vmatpush1.msra.mxu0 0.0
      %2392 = vmatprep.subr.mxu0 0.0
      %2393 = vmatpush1.msra.mxu0 0.0
      %2394 = vmatprep.subr.mxu0 0.0
      %2395 = vmatpush1.msra.mxu0 0.0
      %2396 = vmatprep.subr.mxu0 0.0
      %2397 = vmatpush1.msra.mxu0 0.0
      %2398 = vmatprep.mubr.f32.mxu0 0.0
      %2399 = vmatmul.mubr.f32.gmra.mrb[0].mxu0 %v2332
      %v2400 = vpop.f32.mrb[0].mxu0
      %v2401 = vadd.f32 %v948, %v2400
      %v2402 = vpop.f32.mrb[0].mxu0
      %2403 = vdwg.mxu0
      %v2405 = vsel %vm1819, %v1547, 0
      %2407 = vmatprep.subr.mxu0 0.0
      %2408 = vmatpush1.msra.mxu0 %v1728
      %2409 = vmatprep.subr.mxu0 0.0
      %2410 = vmatpush1.msra.mxu0 %v1729
      %2411 = vmatprep.subr.mxu0 0.0
      %2412 = vmatpush1.msra.mxu0 0.0
      %2413 = vmatprep.subr.mxu0 0.0
      %2414 = vmatpush1.msra.mxu0 0.0
      %2415 = vmatprep.subr.mxu0 0.0
      %2416 = vmatpush1.msra.mxu0 0.0
      %2417 = vmatprep.subr.mxu0 0.0
      %2418 = vmatpush1.msra.mxu0 0.0
      %2419 = vmatprep.subr.mxu0 0.0
      %2420 = vmatpush1.msra.mxu0 0.0
      %2421 = vmatprep.subr.mxu0 0.0
      %2422 = vmatpush1.msra.mxu0 0.0
      %2423 = vmatprep.subr.mxu0 0.0
      %2424 = vmatpush1.msra.mxu0 0.0
      %2425 = vmatprep.subr.mxu0 0.0
      %2426 = vmatpush1.msra.mxu0 0.0
      %2427 = vmatprep.subr.mxu0 0.0
      %2428 = vmatpush1.msra.mxu0 0.0
      %2429 = vmatprep.subr.mxu0 0.0
      %2430 = vmatpush1.msra.mxu0 0.0
      %2431 = vmatprep.subr.mxu0 0.0
      %2432 = vmatpush1.msra.mxu0 0.0
      %2433 = vmatprep.subr.mxu0 0.0
      %2434 = vmatpush1.msra.mxu0 0.0
      %2435 = vmatprep.subr.mxu0 0.0
      %2436 = vmatpush1.msra.mxu0 0.0
      %2437 = vmatprep.subr.mxu0 0.0
      %2438 = vmatpush1.msra.mxu0 0.0
      %2439 = vmatprep.subr.mxu0 0.0
      %2440 = vmatpush1.msra.mxu0 0.0
      %2441 = vmatprep.subr.mxu0 0.0
      %2442 = vmatpush1.msra.mxu0 0.0
      %2443 = vmatprep.subr.mxu0 0.0
      %2444 = vmatpush1.msra.mxu0 0.0
      %2445 = vmatprep.subr.mxu0 0.0
      %2446 = vmatpush1.msra.mxu0 0.0
      %2447 = vmatprep.subr.mxu0 0.0
      %2448 = vmatpush1.msra.mxu0 0.0
      %2449 = vmatprep.subr.mxu0 0.0
      %2450 = vmatpush1.msra.mxu0 0.0
      %2451 = vmatprep.subr.mxu0 0.0
      %2452 = vmatpush1.msra.mxu0 0.0
      %2453 = vmatprep.subr.mxu0 0.0
      %2454 = vmatpush1.msra.mxu0 0.0
      %2455 = vmatprep.subr.mxu0 0.0
      %2456 = vmatpush1.msra.mxu0 0.0
      %2457 = vmatprep.subr.mxu0 0.0
      %2458 = vmatpush1.msra.mxu0 0.0
      %2459 = vmatprep.subr.mxu0 0.0
      %2460 = vmatpush1.msra.mxu0 0.0
      %2461 = vmatprep.subr.mxu0 0.0
      %2462 = vmatpush1.msra.mxu0 0.0
      %2463 = vmatprep.subr.mxu0 0.0
      %2464 = vmatpush1.msra.mxu0 0.0
      %2465 = vmatprep.subr.mxu0 0.0
      %2466 = vmatpush1.msra.mxu0 0.0
      %2467 = vmatprep.subr.mxu0 0.0
      %2468 = vmatpush1.msra.mxu0 0.0
      %2469 = vmatprep.subr.mxu0 0.0
      %2470 = vmatpush1.msra.mxu0 0.0
      %2471 = vmatprep.mubr.f32.mxu0 0.0
      %2472 = vmatmul.mubr.f32.gmra.mrb[0].mxu0 %v2405
      %v2473 = vpop.f32.mrb[0].mxu0
      %v2474 = vadd.f32 %v948, %v2473
      %v2475 = vpop.f32.mrb[0].mxu0
      %2476 = vdwg.mxu0
      %v2478 = vsel %vm1819, %v1579, 0
      %2480 = vmatprep.subr.mxu0 0.0
      %2481 = vmatpush1.msra.mxu0 %v1730
      %2482 = vmatprep.subr.mxu0 0.0
      %2483 = vmatpush1.msra.mxu0 %v1731
      %2484 = vmatprep.subr.mxu0 0.0
      %2485 = vmatpush1.msra.mxu0 0.0
      %2486 = vmatprep.subr.mxu0 0.0
      %2487 = vmatpush1.msra.mxu0 0.0
      %2488 = vmatprep.subr.mxu0 0.0
      %2489 = vmatpush1.msra.mxu0 0.0
      %2490 = vmatprep.subr.mxu0 0.0
      %2491 = vmatpush1.msra.mxu0 0.0
      %2492 = vmatprep.subr.mxu0 0.0
      %2493 = vmatpush1.msra.mxu0 0.0
      %2494 = vmatprep.subr.mxu0 0.0
      %2495 = vmatpush1.msra.mxu0 0.0
      %2496 = vmatprep.subr.mxu0 0.0
      %2497 = vmatpush1.msra.mxu0 0.0
      %2498 = vmatprep.subr.mxu0 0.0
      %2499 = vmatpush1.msra.mxu0 0.0
      %2500 = vmatprep.subr.mxu0 0.0
      %2501 = vmatpush1.msra.mxu0 0.0
      %2502 = vmatprep.subr.mxu0 0.0
      %2503 = vmatpush1.msra.mxu0 0.0
      %2504 = vmatprep.subr.mxu0 0.0
      %2505 = vmatpush1.msra.mxu0 0.0
      %2506 = vmatprep.subr.mxu0 0.0
      %2507 = vmatpush1.msra.mxu0 0.0
      %2508 = vmatprep.subr.mxu0 0.0
      %2509 = vmatpush1.msra.mxu0 0.0
      %2510 = vmatprep.subr.mxu0 0.0
      %2511 = vmatpush1.msra.mxu0 0.0
      %2512 = vmatprep.subr.mxu0 0.0
      %2513 = vmatpush1.msra.mxu0 0.0
      %2514 = vmatprep.subr.mxu0 0.0
      %2515 = vmatpush1.msra.mxu0 0.0
      %2516 = vmatprep.subr.mxu0 0.0
      %2517 = vmatpush1.msra.mxu0 0.0
      %2518 = vmatprep.subr.mxu0 0.0
      %2519 = vmatpush1.msra.mxu0 0.0
      %2520 = vmatprep.subr.mxu0 0.0
      %2521 = vmatpush1.msra.mxu0 0.0
      %2522 = vmatprep.subr.mxu0 0.0
      %2523 = vmatpush1.msra.mxu0 0.0
      %2524 = vmatprep.subr.mxu0 0.0
      %2525 = vmatpush1.msra.mxu0 0.0
      %2526 = vmatprep.subr.mxu0 0.0
      %2527 = vmatpush1.msra.mxu0 0.0
      %2528 = vmatprep.subr.mxu0 0.0
      %2529 = vmatpush1.msra.mxu0 0.0
      %2530 = vmatprep.subr.mxu0 0.0
      %2531 = vmatpush1.msra.mxu0 0.0
      %2532 = vmatprep.subr.mxu0 0.0
      %2533 = vmatpush1.msra.mxu0 0.0
      %2534 = vmatprep.subr.mxu0 0.0
      %2535 = vmatpush1.msra.mxu0 0.0
      %2536 = vmatprep.subr.mxu0 0.0
      %2537 = vmatpush1.msra.mxu0 0.0
      %2538 = vmatprep.subr.mxu0 0.0
      %2539 = vmatpush1.msra.mxu0 0.0
      %2540 = vmatprep.subr.mxu0 0.0
      %2541 = vmatpush1.msra.mxu0 0.0
      %2542 = vmatprep.subr.mxu0 0.0
      %2543 = vmatpush1.msra.mxu0 0.0
      %2544 = vmatprep.mubr.f32.mxu0 0.0
      %2545 = vmatmul.mubr.f32.gmra.mrb[0].mxu0 %v2478
      %v2546 = vpop.f32.mrb[0].mxu0
      %v2547 = vadd.f32 %v948, %v2546
      %v2548 = vpop.f32.mrb[0].mxu0
      %2549 = vdwg.mxu0
      %v2551 = vsel %vm1819, %v1611, 0
      %2553 = vmatprep.subr.mxu0 0.0
      %2554 = vmatpush1.msra.mxu0 %v1732
      %2555 = vmatprep.subr.mxu0 0.0
      %2556 = vmatpush1.msra.mxu0 %v1733
      %2557 = vmatprep.subr.mxu0 0.0
      %2558 = vmatpush1.msra.mxu0 0.0
      %2559 = vmatprep.subr.mxu0 0.0
      %2560 = vmatpush1.msra.mxu0 0.0
      %2561 = vmatprep.subr.mxu0 0.0
      %2562 = vmatpush1.msra.mxu0 0.0
      %2563 = vmatprep.subr.mxu0 0.0
      %2564 = vmatpush1.msra.mxu0 0.0
      %2565 = vmatprep.subr.mxu0 0.0
      %2566 = vmatpush1.msra.mxu0 0.0
      %2567 = vmatprep.subr.mxu0 0.0
      %2568 = vmatpush1.msra.mxu0 0.0
      %2569 = vmatprep.subr.mxu0 0.0
      %2570 = vmatpush1.msra.mxu0 0.0
      %2571 = vmatprep.subr.mxu0 0.0
      %2572 = vmatpush1.msra.mxu0 0.0
      %2573 = vmatprep.subr.mxu0 0.0
      %2574 = vmatpush1.msra.mxu0 0.0
      %2575 = vmatprep.subr.mxu0 0.0
      %2576 = vmatpush1.msra.mxu0 0.0
      %2577 = vmatprep.subr.mxu0 0.0
      %2578 = vmatpush1.msra.mxu0 0.0
      %2579 = vmatprep.subr.mxu0 0.0
      %2580 = vmatpush1.msra.mxu0 0.0
      %2581 = vmatprep.subr.mxu0 0.0
      %2582 = vmatpush1.msra.mxu0 0.0
      %2583 = vmatprep.subr.mxu0 0.0
      %2584 = vmatpush1.msra.mxu0 0.0
      %2585 = vmatprep.subr.mxu0 0.0
      %2586 = vmatpush1.msra.mxu0 0.0
      %2587 = vmatprep.subr.mxu0 0.0
      %2588 = vmatpush1.msra.mxu0 0.0
      %2589 = vmatprep.subr.mxu0 0.0
      %2590 = vmatpush1.msra.mxu0 0.0
      %2591 = vmatprep.subr.mxu0 0.0
      %2592 = vmatpush1.msra.mxu0 0.0
      %2593 = vmatprep.subr.mxu0 0.0
      %2594 = vmatpush1.msra.mxu0 0.0
      %2595 = vmatprep.subr.mxu0 0.0
      %2596 = vmatpush1.msra.mxu0 0.0
      %2597 = vmatprep.subr.mxu0 0.0
      %2598 = vmatpush1.msra.mxu0 0.0
      %2599 = vmatprep.subr.mxu0 0.0
      %2600 = vmatpush1.msra.mxu0 0.0
      %2601 = vmatprep.subr.mxu0 0.0
      %2602 = vmatpush1.msra.mxu0 0.0
      %2603 = vmatprep.subr.mxu0 0.0
      %2604 = vmatpush1.msra.mxu0 0.0
      %2605 = vmatprep.subr.mxu0 0.0
      %2606 = vmatpush1.msra.mxu0 0.0
      %2607 = vmatprep.subr.mxu0 0.0
      %2608 = vmatpush1.msra.mxu0 0.0
      %2609 = vmatprep.subr.mxu0 0.0
      %2610 = vmatpush1.msra.mxu0 0.0
      %2611 = vmatprep.subr.mxu0 0.0
      %2612 = vmatpush1.msra.mxu0 0.0
      %2613 = vmatprep.subr.mxu0 0.0
      %2614 = vmatpush1.msra.mxu0 0.0
      %2615 = vmatprep.subr.mxu0 0.0
      %2616 = vmatpush1.msra.mxu0 0.0
      %2617 = vmatprep.mubr.f32.mxu0 0.0
      %2618 = vmatmul.mubr.f32.gmra.mrb[0].mxu0 %v2551
      %v2619 = vpop.f32.mrb[0].mxu0
      %v2620 = vadd.f32 %v948, %v2619
      %v2621 = vpop.f32.mrb[0].mxu0
      %2622 = vdwg.mxu0
      %v2624 = vsel %vm1819, %v1643, 0
      %2626 = vmatprep.subr.mxu0 0.0
      %2627 = vmatpush1.msra.mxu0 %v1734
      %2628 = vmatprep.subr.mxu0 0.0
      %2629 = vmatpush1.msra.mxu0 %v1735
      %2630 = vmatprep.subr.mxu0 0.0
      %2631 = vmatpush1.msra.mxu0 0.0
      %2632 = vmatprep.subr.mxu0 0.0
      %2633 = vmatpush1.msra.mxu0 0.0
      %2634 = vmatprep.subr.mxu0 0.0
      %2635 = vmatpush1.msra.mxu0 0.0
      %2636 = vmatprep.subr.mxu0 0.0
      %2637 = vmatpush1.msra.mxu0 0.0
      %2638 = vmatprep.subr.mxu0 0.0
      %2639 = vmatpush1.msra.mxu0 0.0
      %2640 = vmatprep.subr.mxu0 0.0
      %2641 = vmatpush1.msra.mxu0 0.0
      %2642 = vmatprep.subr.mxu0 0.0
      %2643 = vmatpush1.msra.mxu0 0.0
      %2644 = vmatprep.subr.mxu0 0.0
      %2645 = vmatpush1.msra.mxu0 0.0
      %2646 = vmatprep.subr.mxu0 0.0
      %2647 = vmatpush1.msra.mxu0 0.0
      %2648 = vmatprep.subr.mxu0 0.0
      %2649 = vmatpush1.msra.mxu0 0.0
      %2650 = vmatprep.subr.mxu0 0.0
      %2651 = vmatpush1.msra.mxu0 0.0
      %2652 = vmatprep.subr.mxu0 0.0
      %2653 = vmatpush1.msra.mxu0 0.0
      %2654 = vmatprep.subr.mxu0 0.0
      %2655 = vmatpush1.msra.mxu0 0.0
      %2656 = vmatprep.subr.mxu0 0.0
      %2657 = vmatpush1.msra.mxu0 0.0
      %2658 = vmatprep.subr.mxu0 0.0
      %2659 = vmatpush1.msra.mxu0 0.0
      %2660 = vmatprep.subr.mxu0 0.0
      %2661 = vmatpush1.msra.mxu0 0.0
      %2662 = vmatprep.subr.mxu0 0.0
      %2663 = vmatpush1.msra.mxu0 0.0
      %2664 = vmatprep.subr.mxu0 0.0
      %2665 = vmatpush1.msra.mxu0 0.0
      %2666 = vmatprep.subr.mxu0 0.0
      %2667 = vmatpush1.msra.mxu0 0.0
      %2668 = vmatprep.subr.mxu0 0.0
      %2669 = vmatpush1.msra.mxu0 0.0
      %2670 = vmatprep.subr.mxu0 0.0
      %2671 = vmatpush1.msra.mxu0 0.0
      %2672 = vmatprep.subr.mxu0 0.0
      %2673 = vmatpush1.msra.mxu0 0.0
      %2674 = vmatprep.subr.mxu0 0.0
      %2675 = vmatpush1.msra.mxu0 0.0
      %2676 = vmatprep.subr.mxu0 0.0
      %2677 = vmatpush1.msra.mxu0 0.0
      %2678 = vmatprep.subr.mxu0 0.0
      %2679 = vmatpush1.msra.mxu0 0.0
      %2680 = vmatprep.subr.mxu0 0.0
      %2681 = vmatpush1.msra.mxu0 0.0
      %2682 = vmatprep.subr.mxu0 0.0
      %2683 = vmatpush1.msra.mxu0 0.0
      %2684 = vmatprep.subr.mxu0 0.0
      %2685 = vmatpush1.msra.mxu0 0.0
      %2686 = vmatprep.subr.mxu0 0.0
      %2687 = vmatpush1.msra.mxu0 0.0
      %2688 = vmatprep.subr.mxu0 0.0
      %2689 = vmatpush1.msra.mxu0 0.0
      %2690 = vmatprep.mubr.f32.mxu0 0.0
      %2691 = vmatmul.mubr.f32.gmra.mrb[0].mxu0 %v2624
      %v2692 = vpop.f32.mrb[0].mxu0
      %v2693 = vadd.f32 %v948, %v2692
      %v2694 = vpop.f32.mrb[0].mxu0
      %2695 = vdwg.mxu0
      %vm2696 = vcmask 64512
      %v2697 = vsel %vm2696, %v1890, -inf
      %2698 = vmax.xlane.f32.xlu0 %v2697
      %v2699 = vpop.xlane.xlu0 %2698
      %v2700 = vsel %vm2696, %v1963, -inf
      %2701 = vmax.xlane.f32.xlu0 %v2700
      %v2702 = vpop.xlane.xlu0 %2701
      %v2703 = vsel %vm2696, %v2036, -inf
      %2704 = vmax.xlane.f32.xlu0 %v2703
      %v2705 = vpop.xlane.xlu0 %2704
      %v2706 = vsel %vm2696, %v2109, -inf
      %2707 = vmax.xlane.f32.xlu0 %v2706
      %v2708 = vpop.xlane.xlu0 %2707
      %v2709 = vsel %vm2696, %v2182, -inf
      %2710 = vmax.xlane.f32.xlu0 %v2709
      %v2711 = vpop.xlane.xlu0 %2710
      %v2712 = vsel %vm2696, %v2255, -inf
      %2713 = vmax.xlane.f32.xlu0 %v2712
      %v2714 = vpop.xlane.xlu0 %2713
      %v2715 = vsel %vm2696, %v2328, -inf
      %2716 = vmax.xlane.f32.xlu0 %v2715
      %v2717 = vpop.xlane.xlu0 %2716
      %v2718 = vsel %vm2696, %v2401, -inf
      %2719 = vmax.xlane.f32.xlu0 %v2718
      %v2720 = vpop.xlane.xlu0 %2719
      %v2721 = vsel %vm2696, %v2474, -inf
      %2722 = vmax.xlane.f32.xlu0 %v2721
      %v2723 = vpop.xlane.xlu0 %2722
      %v2724 = vsel %vm2696, %v2547, -inf
      %2725 = vmax.xlane.f32.xlu0 %v2724
      %v2726 = vpop.xlane.xlu0 %2725
      %v2727 = vsel %vm2696, %v2620, -inf
      %2728 = vmax.xlane.f32.xlu0 %v2727
      %v2729 = vpop.xlane.xlu0 %2728
      %v2730 = vsel %vm2696, %v2693, -inf
      %2731 = vmax.xlane.f32.xlu0 %v2730
      %v2732 = vpop.xlane.xlu0 %2731
      %v2733 = vsub.f32 %v1890, %v2699
      %v2734 = vsub.f32 %v1963, %v2702
      %v2735 = vsub.f32 %v2036, %v2705
      %v2736 = vsub.f32 %v2109, %v2708
      %v2737 = vsub.f32 %v2182, %v2711
      %v2738 = vsub.f32 %v2255, %v2714
      %v2739 = vsub.f32 %v2328, %v2717
      %v2740 = vsub.f32 %v2401, %v2720
      %v2741 = vsub.f32 %v2474, %v2723
      %v2742 = vsub.f32 %v2547, %v2726
      %v2743 = vsub.f32 %v2620, %v2729
      %v2744 = vsub.f32 %v2693, %v2732
      %v2745 = vmul.f32 %v2733, 1.442695
      %v2746 = vpow.pop %v2745
      %v2747 = vmul.f32 %v2734, 1.442695
      %v2748 = vpow.pop %v2747
      %v2749 = vmul.f32 %v2735, 1.442695
      %v2750 = vpow.pop %v2749
      %v2751 = vmul.f32 %v2736, 1.442695
      %v2752 = vpow.pop %v2751
      %v2753 = vmul.f32 %v2737, 1.442695
      %v2754 = vpow.pop %v2753
      %v2755 = vmul.f32 %v2738, 1.442695
      %v2756 = vpow.pop %v2755
      %v2757 = vmul.f32 %v2739, 1.442695
      %v2758 = vpow.pop %v2757
      %v2759 = vmul.f32 %v2740, 1.442695
      %v2760 = vpow.pop %v2759
      %v2761 = vmul.f32 %v2741, 1.442695
      %v2762 = vpow.pop %v2761
      %v2763 = vmul.f32 %v2742, 1.442695
      %v2764 = vpow.pop %v2763
      %v2765 = vmul.f32 %v2743, 1.442695
      %v2766 = vpow.pop %v2765
      %v2767 = vmul.f32 %v2744, 1.442695
      %v2768 = vpow.pop %v2767
      %v2769 = vsel %vm2696, %v2746, 0.0
      %2770 = vadd.xlane.f32.xlu0 %v2769
      %v2771 = vpop.xlane.xlu0 %2770
      %v2772 = vsel %vm2696, %v2748, 0.0
      %2773 = vadd.xlane.f32.xlu0 %v2772
      %v2774 = vpop.xlane.xlu0 %2773
      %v2775 = vsel %vm2696, %v2750, 0.0
      %2776 = vadd.xlane.f32.xlu0 %v2775
      %v2777 = vpop.xlane.xlu0 %2776
      %v2778 = vsel %vm2696, %v2752, 0.0
      %2779 = vadd.xlane.f32.xlu0 %v2778
      %v2780 = vpop.xlane.xlu0 %2779
      %v2781 = vsel %vm2696, %v2754, 0.0
      %2782 = vadd.xlane.f32.xlu0 %v2781
      %v2783 = vpop.xlane.xlu0 %2782
      %v2784 = vsel %vm2696, %v2756, 0.0
      %2785 = vadd.xlane.f32.xlu0 %v2784
      %v2786 = vpop.xlane.xlu0 %2785
      %v2787 = vsel %vm2696, %v2758, 0.0
      %2788 = vadd.xlane.f32.xlu0 %v2787
      %v2789 = vpop.xlane.xlu0 %2788
      %v2790 = vsel %vm2696, %v2760, 0.0
      %2791 = vadd.xlane.f32.xlu0 %v2790
      %v2792 = vpop.xlane.xlu0 %2791
      %v2793 = vsel %vm2696, %v2762, 0.0
      %2794 = vadd.xlane.f32.xlu0 %v2793
      %v2795 = vpop.xlane.xlu0 %2794
      %v2796 = vsel %vm2696, %v2764, 0.0
      %2797 = vadd.xlane.f32.xlu0 %v2796
      %v2798 = vpop.xlane.xlu0 %2797
      %v2799 = vsel %vm2696, %v2766, 0.0
      %2800 = vadd.xlane.f32.xlu0 %v2799
      %v2801 = vpop.xlane.xlu0 %2800
      %v2802 = vsel %vm2696, %v2768, 0.0
      %2803 = vadd.xlane.f32.xlu0 %v2802
      %v2804 = vpop.xlane.xlu0 %2803
      %v2805 = vrcp.pop %v2771
      %v2806 = vrcp.pop %v2774
      %v2807 = vrcp.pop %v2777
      %v2808 = vrcp.pop %v2780
      %v2809 = vrcp.pop %v2783
      %v2810 = vrcp.pop %v2786
      %v2811 = vrcp.pop %v2789
      %v2812 = vrcp.pop %v2792
      %v2813 = vrcp.pop %v2795
      %v2814 = vrcp.pop %v2798
      %v2815 = vrcp.pop %v2801
      %v2816 = vrcp.pop %v2804
      %v2817 = vmul.f32 %v2746, %v2805
      %v2818 = vmul.f32 %v2748, %v2806
      %v2819 = vmul.f32 %v2750, %v2807
      %v2820 = vmul.f32 %v2752, %v2808
      %v2821 = vmul.f32 %v2754, %v2809
      %v2822 = vmul.f32 %v2756, %v2810
      %v2823 = vmul.f32 %v2758, %v2811
      %v2824 = vmul.f32 %v2760, %v2812
      %v2825 = vmul.f32 %v2762, %v2813
      %v2826 = vmul.f32 %v2764, %v2814
      %v2827 = vmul.f32 %v2766, %v2815
      %v2828 = vmul.f32 %v2768, %v2816
      %v2830 = vsel %vm2696, %v2817, 0
      %v2833 = vsel %vm2696, %v1771, 0
      %v2836 = vsel %vm2696, %v1772, 0
      %2838 = vmatprep.subr.mxu0 0.0
      %2839 = vmatpush1.xpose.msra.mxu0 %v2833
      %2840 = vmatprep.subr.mxu0 0.0
      %2841 = vmatpush1.xpose.msra.mxu0 %v2836
      %2842 = vmatprep.subr.mxu0 0.0
      %2843 = vmatpush1.xpose.msra.mxu0 0.0
      %2844 = vmatprep.subr.mxu0 0.0
      %2845 = vmatpush1.xpose.msra.mxu0 0.0
      %2846 = vmatprep.subr.mxu0 0.0
      %2847 = vmatpush1.xpose.msra.mxu0 0.0
      %2848 = vmatprep.subr.mxu0 0.0
      %2849 = vmatpush1.xpose.msra.mxu0 0.0
      %2850 = vmatprep.subr.mxu0 0.0
      %2851 = vmatpush1.xpose.msra.mxu0 0.0
      %2852 = vmatprep.subr.mxu0 0.0
      %2853 = vmatpush1.xpose.msra.mxu0 0.0
      %2854 = vmatprep.subr.mxu0 0.0
      %2855 = vmatpush1.xpose.msra.mxu0 0.0
      %2856 = vmatprep.subr.mxu0 0.0
      %2857 = vmatpush1.xpose.msra.mxu0 0.0
      %2858 = vmatprep.subr.mxu0 0.0
      %2859 = vmatpush1.xpose.msra.mxu0 0.0
      %2860 = vmatprep.subr.mxu0 0.0
      %2861 = vmatpush1.xpose.msra.mxu0 0.0
      %2862 = vmatprep.subr.mxu0 0.0
      %2863 = vmatpush1.xpose.msra.mxu0 0.0
      %2864 = vmatprep.subr.mxu0 0.0
      %2865 = vmatpush1.xpose.msra.mxu0 0.0
      %2866 = vmatprep.subr.mxu0 0.0
      %2867 = vmatpush1.xpose.msra.mxu0 0.0
      %2868 = vmatprep.subr.mxu0 0.0
      %2869 = vmatpush1.xpose.msra.mxu0 0.0
      %2870 = vmatprep.subr.mxu0 0.0
      %2871 = vmatpush1.xpose.msra.mxu0 0.0
      %2872 = vmatprep.subr.mxu0 0.0
      %2873 = vmatpush1.xpose.msra.mxu0 0.0
      %2874 = vmatprep.subr.mxu0 0.0
      %2875 = vmatpush1.xpose.msra.mxu0 0.0
      %2876 = vmatprep.subr.mxu0 0.0
      %2877 = vmatpush1.xpose.msra.mxu0 0.0
      %2878 = vmatprep.subr.mxu0 0.0
      %2879 = vmatpush1.xpose.msra.mxu0 0.0
      %2880 = vmatprep.subr.mxu0 0.0
      %2881 = vmatpush1.xpose.msra.mxu0 0.0
      %2882 = vmatprep.subr.mxu0 0.0
      %2883 = vmatpush1.xpose.msra.mxu0 0.0
      %2884 = vmatprep.subr.mxu0 0.0
      %2885 = vmatpush1.xpose.msra.mxu0 0.0
      %2886 = vmatprep.subr.mxu0 0.0
      %2887 = vmatpush1.xpose.msra.mxu0 0.0
      %2888 = vmatprep.subr.mxu0 0.0
      %2889 = vmatpush1.xpose.msra.mxu0 0.0
      %2890 = vmatprep.subr.mxu0 0.0
      %2891 = vmatpush1.xpose.msra.mxu0 0.0
      %2892 = vmatprep.subr.mxu0 0.0
      %2893 = vmatpush1.xpose.msra.mxu0 0.0
      %2894 = vmatprep.subr.mxu0 0.0
      %2895 = vmatpush1.xpose.msra.mxu0 0.0
      %2896 = vmatprep.subr.mxu0 0.0
      %2897 = vmatpush1.xpose.msra.mxu0 0.0
      %2898 = vmatprep.subr.mxu0 0.0
      %2899 = vmatpush1.xpose.msra.mxu0 0.0
      %2900 = vmatprep.subr.mxu0 0.0
      %2901 = vmatpush1.xpose.msra.mxu0 0.0
      %2902 = vmatprep.mubr.f32.mxu0 0.0
      %2903 = vmatmul.mubr.f32.gmra.mrb[0].mxu0 %v2830
      %v2904 = vpop.f32.mrb[0].mxu0
      %v2905 = vadd.f32 0.0, %v2904
      %v2906 = vpop.f32.mrb[0].mxu0
      %2907 = vdwg.mxu0
      %v2909 = vsel %vm2696, %v2818, 0
      %v2912 = vsel %vm2696, %v1773, 0
      %v2915 = vsel %vm2696, %v1774, 0
      %2917 = vmatprep.subr.mxu0 0.0
      %2918 = vmatpush1.xpose.msra.mxu0 %v2912
      %2919 = vmatprep.subr.mxu0 0.0
      %2920 = vmatpush1.xpose.msra.mxu0 %v2915
      %2921 = vmatprep.subr.mxu0 0.0
      %2922 = vmatpush1.xpose.msra.mxu0 0.0
      %2923 = vmatprep.subr.mxu0 0.0
      %2924 = vmatpush1.xpose.msra.mxu0 0.0
      %2925 = vmatprep.subr.mxu0 0.0
      %2926 = vmatpush1.xpose.msra.mxu0 0.0
      %2927 = vmatprep.subr.mxu0 0.0
      %2928 = vmatpush1.xpose.msra.mxu0 0.0
      %2929 = vmatprep.subr.mxu0 0.0
      %2930 = vmatpush1.xpose.msra.mxu0 0.0
      %2931 = vmatprep.subr.mxu0 0.0
      %2932 = vmatpush1.xpose.msra.mxu0 0.0
      %2933 = vmatprep.subr.mxu0 0.0
      %2934 = vmatpush1.xpose.msra.mxu0 0.0
      %2935 = vmatprep.subr.mxu0 0.0
      %2936 = vmatpush1.xpose.msra.mxu0 0.0
      %2937 = vmatprep.subr.mxu0 0.0
      %2938 = vmatpush1.xpose.msra.mxu0 0.0
      %2939 = vmatprep.subr.mxu0 0.0
      %2940 = vmatpush1.xpose.msra.mxu0 0.0
      %2941 = vmatprep.subr.mxu0 0.0
      %2942 = vmatpush1.xpose.msra.mxu0 0.0
      %2943 = vmatprep.subr.mxu0 0.0
      %2944 = vmatpush1.xpose.msra.mxu0 0.0
      %2945 = vmatprep.subr.mxu0 0.0
      %2946 = vmatpush1.xpose.msra.mxu0 0.0
      %2947 = vmatprep.subr.mxu0 0.0
      %2948 = vmatpush1.xpose.msra.mxu0 0.0
      %2949 = vmatprep.subr.mxu0 0.0
      %2950 = vmatpush1.xpose.msra.mxu0 0.0
      %2951 = vmatprep.subr.mxu0 0.0
      %2952 = vmatpush1.xpose.msra.mxu0 0.0
      %2953 = vmatprep.subr.mxu0 0.0
      %2954 = vmatpush1.xpose.msra.mxu0 0.0
      %2955 = vmatprep.subr.mxu0 0.0
      %2956 = vmatpush1.xpose.msra.mxu0 0.0
      %2957 = vmatprep.subr.mxu0 0.0
      %2958 = vmatpush1.xpose.msra.mxu0 0.0
      %2959 = vmatprep.subr.mxu0 0.0
      %2960 = vmatpush1.xpose.msra.mxu0 0.0
      %2961 = vmatprep.subr.mxu0 0.0
      %2962 = vmatpush1.xpose.msra.mxu0 0.0
      %2963 = vmatprep.subr.mxu0 0.0
      %2964 = vmatpush1.xpose.msra.mxu0 0.0
      %2965 = vmatprep.subr.mxu0 0.0
      %2966 = vmatpush1.xpose.msra.mxu0 0.0
      %2967 = vmatprep.subr.mxu0 0.0
      %2968 = vmatpush1.xpose.msra.mxu0 0.0
      %2969 = vmatprep.subr.mxu0 0.0
      %2970 = vmatpush1.xpose.msra.mxu0 0.0
      %2971 = vmatprep.subr.mxu0 0.0
      %2972 = vmatpush1.xpose.msra.mxu0 0.0
      %2973 = vmatprep.subr.mxu0 0.0
      %2974 = vmatpush1.xpose.msra.mxu0 0.0
      %2975 = vmatprep.subr.mxu0 0.0
      %2976 = vmatpush1.xpose.msra.mxu0 0.0
      %2977 = vmatprep.subr.mxu0 0.0
      %2978 = vmatpush1.xpose.msra.mxu0 0.0
      %2979 = vmatprep.subr.mxu0 0.0
      %2980 = vmatpush1.xpose.msra.mxu0 0.0
      %2981 = vmatprep.mubr.f32.mxu0 0.0
      %2982 = vmatmul.mubr.f32.gmra.mrb[0].mxu0 %v2909
      %v2983 = vpop.f32.mrb[0].mxu0
      %v2984 = vadd.f32 0.0, %v2983
      %v2985 = vpop.f32.mrb[0].mxu0
      %2986 = vdwg.mxu0
      %v2988 = vsel %vm2696, %v2819, 0
      %v2991 = vsel %vm2696, %v1775, 0
      %v2994 = vsel %vm2696, %v1776, 0
      %2996 = vmatprep.subr.mxu0 0.0
      %2997 = vmatpush1.xpose.msra.mxu0 %v2991
      %2998 = vmatprep.subr.mxu0 0.0
      %2999 = vmatpush1.xpose.msra.mxu0 %v2994
      %3000 = vmatprep.subr.mxu0 0.0
      %3001 = vmatpush1.xpose.msra.mxu0 0.0
      %3002 = vmatprep.subr.mxu0 0.0
      %3003 = vmatpush1.xpose.msra.mxu0 0.0
      %3004 = vmatprep.subr.mxu0 0.0
      %3005 = vmatpush1.xpose.msra.mxu0 0.0
      %3006 = vmatprep.subr.mxu0 0.0
      %3007 = vmatpush1.xpose.msra.mxu0 0.0
      %3008 = vmatprep.subr.mxu0 0.0
      %3009 = vmatpush1.xpose.msra.mxu0 0.0
      %3010 = vmatprep.subr.mxu0 0.0
      %3011 = vmatpush1.xpose.msra.mxu0 0.0
      %3012 = vmatprep.subr.mxu0 0.0
      %3013 = vmatpush1.xpose.msra.mxu0 0.0
      %3014 = vmatprep.subr.mxu0 0.0
      %3015 = vmatpush1.xpose.msra.mxu0 0.0
      %3016 = vmatprep.subr.mxu0 0.0
      %3017 = vmatpush1.xpose.msra.mxu0 0.0
      %3018 = vmatprep.subr.mxu0 0.0
      %3019 = vmatpush1.xpose.msra.mxu0 0.0
      %3020 = vmatprep.subr.mxu0 0.0
      %3021 = vmatpush1.xpose.msra.mxu0 0.0
      %3022 = vmatprep.subr.mxu0 0.0
      %3023 = vmatpush1.xpose.msra.mxu0 0.0
      %3024 = vmatprep.subr.mxu0 0.0
      %3025 = vmatpush1.xpose.msra.mxu0 0.0
      %3026 = vmatprep.subr.mxu0 0.0
      %3027 = vmatpush1.xpose.msra.mxu0 0.0
      %3028 = vmatprep.subr.mxu0 0.0
      %3029 = vmatpush1.xpose.msra.mxu0 0.0
      %3030 = vmatprep.subr.mxu0 0.0
      %3031 = vmatpush1.xpose.msra.mxu0 0.0
      %3032 = vmatprep.subr.mxu0 0.0
      %3033 = vmatpush1.xpose.msra.mxu0 0.0
      %3034 = vmatprep.subr.mxu0 0.0
      %3035 = vmatpush1.xpose.msra.mxu0 0.0
      %3036 = vmatprep.subr.mxu0 0.0
      %3037 = vmatpush1.xpose.msra.mxu0 0.0
      %3038 = vmatprep.subr.mxu0 0.0
      %3039 = vmatpush1.xpose.msra.mxu0 0.0
      %3040 = vmatprep.subr.mxu0 0.0
      %3041 = vmatpush1.xpose.msra.mxu0 0.0
      %3042 = vmatprep.subr.mxu0 0.0
      %3043 = vmatpush1.xpose.msra.mxu0 0.0
      %3044 = vmatprep.subr.mxu0 0.0
      %3045 = vmatpush1.xpose.msra.mxu0 0.0
      %3046 = vmatprep.subr.mxu0 0.0
      %3047 = vmatpush1.xpose.msra.mxu0 0.0
      %3048 = vmatprep.subr.mxu0 0.0
      %3049 = vmatpush1.xpose.msra.mxu0 0.0
      %3050 = vmatprep.subr.mxu0 0.0
      %3051 = vmatpush1.xpose.msra.mxu0 0.0
      %3052 = vmatprep.subr.mxu0 0.0
      %3053 = vmatpush1.xpose.msra.mxu0 0.0
      %3054 = vmatprep.subr.mxu0 0.0
      %3055 = vmatpush1.xpose.msra.mxu0 0.0
      %3056 = vmatprep.subr.mxu0 0.0
      %3057 = vmatpush1.xpose.msra.mxu0 0.0
      %3058 = vmatprep.subr.mxu0 0.0
      %3059 = vmatpush1.xpose.msra.mxu0 0.0
      %3060 = vmatprep.mubr.f32.mxu0 0.0
      %3061 = vmatmul.mubr.f32.gmra.mrb[0].mxu0 %v2988
      %v3062 = vpop.f32.mrb[0].mxu0
      %v3063 = vadd.f32 0.0, %v3062
      %v3064 = vpop.f32.mrb[0].mxu0
      %3065 = vdwg.mxu0
      %v3067 = vsel %vm2696, %v2820, 0
      %v3070 = vsel %vm2696, %v1777, 0
      %v3073 = vsel %vm2696, %v1778, 0
      %3075 = vmatprep.subr.mxu0 0.0
      %3076 = vmatpush1.xpose.msra.mxu0 %v3070
      %3077 = vmatprep.subr.mxu0 0.0
      %3078 = vmatpush1.xpose.msra.mxu0 %v3073
      %3079 = vmatprep.subr.mxu0 0.0
      %3080 = vmatpush1.xpose.msra.mxu0 0.0
      %3081 = vmatprep.subr.mxu0 0.0
      %3082 = vmatpush1.xpose.msra.mxu0 0.0
      %3083 = vmatprep.subr.mxu0 0.0
      %3084 = vmatpush1.xpose.msra.mxu0 0.0
      %3085 = vmatprep.subr.mxu0 0.0
      %3086 = vmatpush1.xpose.msra.mxu0 0.0
      %3087 = vmatprep.subr.mxu0 0.0
      %3088 = vmatpush1.xpose.msra.mxu0 0.0
      %3089 = vmatprep.subr.mxu0 0.0
      %3090 = vmatpush1.xpose.msra.mxu0 0.0
      %3091 = vmatprep.subr.mxu0 0.0
      %3092 = vmatpush1.xpose.msra.mxu0 0.0
      %3093 = vmatprep.subr.mxu0 0.0
      %3094 = vmatpush1.xpose.msra.mxu0 0.0
      %3095 = vmatprep.subr.mxu0 0.0
      %3096 = vmatpush1.xpose.msra.mxu0 0.0
      %3097 = vmatprep.subr.mxu0 0.0
      %3098 = vmatpush1.xpose.msra.mxu0 0.0
      %3099 = vmatprep.subr.mxu0 0.0
      %3100 = vmatpush1.xpose.msra.mxu0 0.0
      %3101 = vmatprep.subr.mxu0 0.0
      %3102 = vmatpush1.xpose.msra.mxu0 0.0
      %3103 = vmatprep.subr.mxu0 0.0
      %3104 = vmatpush1.xpose.msra.mxu0 0.0
      %3105 = vmatprep.subr.mxu0 0.0
      %3106 = vmatpush1.xpose.msra.mxu0 0.0
      %3107 = vmatprep.subr.mxu0 0.0
      %3108 = vmatpush1.xpose.msra.mxu0 0.0
      %3109 = vmatprep.subr.mxu0 0.0
      %3110 = vmatpush1.xpose.msra.mxu0 0.0
      %3111 = vmatprep.subr.mxu0 0.0
      %3112 = vmatpush1.xpose.msra.mxu0 0.0
      %3113 = vmatprep.subr.mxu0 0.0
      %3114 = vmatpush1.xpose.msra.mxu0 0.0
      %3115 = vmatprep.subr.mxu0 0.0
      %3116 = vmatpush1.xpose.msra.mxu0 0.0
      %3117 = vmatprep.subr.mxu0 0.0
      %3118 = vmatpush1.xpose.msra.mxu0 0.0
      %3119 = vmatprep.subr.mxu0 0.0
      %3120 = vmatpush1.xpose.msra.mxu0 0.0
      %3121 = vmatprep.subr.mxu0 0.0
      %3122 = vmatpush1.xpose.msra.mxu0 0.0
      %3123 = vmatprep.subr.mxu0 0.0
      %3124 = vmatpush1.xpose.msra.mxu0 0.0
      %3125 = vmatprep.subr.mxu0 0.0
      %3126 = vmatpush1.xpose.msra.mxu0 0.0
      %3127 = vmatprep.subr.mxu0 0.0
      %3128 = vmatpush1.xpose.msra.mxu0 0.0
      %3129 = vmatprep.subr.mxu0 0.0
      %3130 = vmatpush1.xpose.msra.mxu0 0.0
      %3131 = vmatprep.subr.mxu0 0.0
      %3132 = vmatpush1.xpose.msra.mxu0 0.0
      %3133 = vmatprep.subr.mxu0 0.0
      %3134 = vmatpush1.xpose.msra.mxu0 0.0
      %3135 = vmatprep.subr.mxu0 0.0
      %3136 = vmatpush1.xpose.msra.mxu0 0.0
      %3137 = vmatprep.subr.mxu0 0.0
      %3138 = vmatpush1.xpose.msra.mxu0 0.0
      %3139 = vmatprep.mubr.f32.mxu0 0.0
      %3140 = vmatmul.mubr.f32.gmra.mrb[0].mxu0 %v3067
      %v3141 = vpop.f32.mrb[0].mxu0
      %v3142 = vadd.f32 0.0, %v3141
      %v3143 = vpop.f32.mrb[0].mxu0
      %3144 = vdwg.mxu0
      %v3146 = vsel %vm2696, %v2821, 0
      %v3149 = vsel %vm2696, %v1779, 0
      %v3152 = vsel %vm2696, %v1780, 0
      %3154 = vmatprep.subr.mxu0 0.0
      %3155 = vmatpush1.xpose.msra.mxu0 %v3149
      %3156 = vmatprep.subr.mxu0 0.0
      %3157 = vmatpush1.xpose.msra.mxu0 %v3152
      %3158 = vmatprep.subr.mxu0 0.0
      %3159 = vmatpush1.xpose.msra.mxu0 0.0
      %3160 = vmatprep.subr.mxu0 0.0
      %3161 = vmatpush1.xpose.msra.mxu0 0.0
      %3162 = vmatprep.subr.mxu0 0.0
      %3163 = vmatpush1.xpose.msra.mxu0 0.0
      %3164 = vmatprep.subr.mxu0 0.0
      %3165 = vmatpush1.xpose.msra.mxu0 0.0
      %3166 = vmatprep.subr.mxu0 0.0
      %3167 = vmatpush1.xpose.msra.mxu0 0.0
      %3168 = vmatprep.subr.mxu0 0.0
      %3169 = vmatpush1.xpose.msra.mxu0 0.0
      %3170 = vmatprep.subr.mxu0 0.0
      %3171 = vmatpush1.xpose.msra.mxu0 0.0
      %3172 = vmatprep.subr.mxu0 0.0
      %3173 = vmatpush1.xpose.msra.mxu0 0.0
      %3174 = vmatprep.subr.mxu0 0.0
      %3175 = vmatpush1.xpose.msra.mxu0 0.0
      %3176 = vmatprep.subr.mxu0 0.0
      %3177 = vmatpush1.xpose.msra.mxu0 0.0
      %3178 = vmatprep.subr.mxu0 0.0
      %3179 = vmatpush1.xpose.msra.mxu0 0.0
      %3180 = vmatprep.subr.mxu0 0.0
      %3181 = vmatpush1.xpose.msra.mxu0 0.0
      %3182 = vmatprep.subr.mxu0 0.0
      %3183 = vmatpush1.xpose.msra.mxu0 0.0
      %3184 = vmatprep.subr.mxu0 0.0
      %3185 = vmatpush1.xpose.msra.mxu0 0.0
      %3186 = vmatprep.subr.mxu0 0.0
      %3187 = vmatpush1.xpose.msra.mxu0 0.0
      %3188 = vmatprep.subr.mxu0 0.0
      %3189 = vmatpush1.xpose.msra.mxu0 0.0
      %3190 = vmatprep.subr.mxu0 0.0
      %3191 = vmatpush1.xpose.msra.mxu0 0.0
      %3192 = vmatprep.subr.mxu0 0.0
      %3193 = vmatpush1.xpose.msra.mxu0 0.0
      %3194 = vmatprep.subr.mxu0 0.0
      %3195 = vmatpush1.xpose.msra.mxu0 0.0
      %3196 = vmatprep.subr.mxu0 0.0
      %3197 = vmatpush1.xpose.msra.mxu0 0.0
      %3198 = vmatprep.subr.mxu0 0.0
      %3199 = vmatpush1.xpose.msra.mxu0 0.0
      %3200 = vmatprep.subr.mxu0 0.0
      %3201 = vmatpush1.xpose.msra.mxu0 0.0
      %3202 = vmatprep.subr.mxu0 0.0
      %3203 = vmatpush1.xpose.msra.mxu0 0.0
      %3204 = vmatprep.subr.mxu0 0.0
      %3205 = vmatpush1.xpose.msra.mxu0 0.0
      %3206 = vmatprep.subr.mxu0 0.0
      %3207 = vmatpush1.xpose.msra.mxu0 0.0
      %3208 = vmatprep.subr.mxu0 0.0
      %3209 = vmatpush1.xpose.msra.mxu0 0.0
      %3210 = vmatprep.subr.mxu0 0.0
      %3211 = vmatpush1.xpose.msra.mxu0 0.0
      %3212 = vmatprep.subr.mxu0 0.0
      %3213 = vmatpush1.xpose.msra.mxu0 0.0
      %3214 = vmatprep.subr.mxu0 0.0
      %3215 = vmatpush1.xpose.msra.mxu0 0.0
      %3216 = vmatprep.subr.mxu0 0.0
      %3217 = vmatpush1.xpose.msra.mxu0 0.0
      %3218 = vmatprep.mubr.f32.mxu0 0.0
      %3219 = vmatmul.mubr.f32.gmra.mrb[0].mxu0 %v3146
      %v3220 = vpop.f32.mrb[0].mxu0
      %v3221 = vadd.f32 0.0, %v3220
      %v3222 = vpop.f32.mrb[0].mxu0
      %3223 = vdwg.mxu0
      %v3225 = vsel %vm2696, %v2822, 0
      %v3228 = vsel %vm2696, %v1781, 0
      %v3231 = vsel %vm2696, %v1782, 0
      %3233 = vmatprep.subr.mxu0 0.0
      %3234 = vmatpush1.xpose.msra.mxu0 %v3228
      %3235 = vmatprep.subr.mxu0 0.0
      %3236 = vmatpush1.xpose.msra.mxu0 %v3231
      %3237 = vmatprep.subr.mxu0 0.0
      %3238 = vmatpush1.xpose.msra.mxu0 0.0
      %3239 = vmatprep.subr.mxu0 0.0
      %3240 = vmatpush1.xpose.msra.mxu0 0.0
      %3241 = vmatprep.subr.mxu0 0.0
      %3242 = vmatpush1.xpose.msra.mxu0 0.0
      %3243 = vmatprep.subr.mxu0 0.0
      %3244 = vmatpush1.xpose.msra.mxu0 0.0
      %3245 = vmatprep.subr.mxu0 0.0
      %3246 = vmatpush1.xpose.msra.mxu0 0.0
      %3247 = vmatprep.subr.mxu0 0.0
      %3248 = vmatpush1.xpose.msra.mxu0 0.0
      %3249 = vmatprep.subr.mxu0 0.0
      %3250 = vmatpush1.xpose.msra.mxu0 0.0
      %3251 = vmatprep.subr.mxu0 0.0
      %3252 = vmatpush1.xpose.msra.mxu0 0.0
      %3253 = vmatprep.subr.mxu0 0.0
      %3254 = vmatpush1.xpose.msra.mxu0 0.0
      %3255 = vmatprep.subr.mxu0 0.0
      %3256 = vmatpush1.xpose.msra.mxu0 0.0
      %3257 = vmatprep.subr.mxu0 0.0
      %3258 = vmatpush1.xpose.msra.mxu0 0.0
      %3259 = vmatprep.subr.mxu0 0.0
      %3260 = vmatpush1.xpose.msra.mxu0 0.0
      %3261 = vmatprep.subr.mxu0 0.0
      %3262 = vmatpush1.xpose.msra.mxu0 0.0
      %3263 = vmatprep.subr.mxu0 0.0
      %3264 = vmatpush1.xpose.msra.mxu0 0.0
      %3265 = vmatprep.subr.mxu0 0.0
      %3266 = vmatpush1.xpose.msra.mxu0 0.0
      %3267 = vmatprep.subr.mxu0 0.0
      %3268 = vmatpush1.xpose.msra.mxu0 0.0
      %3269 = vmatprep.subr.mxu0 0.0
      %3270 = vmatpush1.xpose.msra.mxu0 0.0
      %3271 = vmatprep.subr.mxu0 0.0
      %3272 = vmatpush1.xpose.msra.mxu0 0.0
      %3273 = vmatprep.subr.mxu0 0.0
      %3274 = vmatpush1.xpose.msra.mxu0 0.0
      %3275 = vmatprep.subr.mxu0 0.0
      %3276 = vmatpush1.xpose.msra.mxu0 0.0
      %3277 = vmatprep.subr.mxu0 0.0
      %3278 = vmatpush1.xpose.msra.mxu0 0.0
      %3279 = vmatprep.subr.mxu0 0.0
      %3280 = vmatpush1.xpose.msra.mxu0 0.0
      %3281 = vmatprep.subr.mxu0 0.0
      %3282 = vmatpush1.xpose.msra.mxu0 0.0
      %3283 = vmatprep.subr.mxu0 0.0
      %3284 = vmatpush1.xpose.msra.mxu0 0.0
      %3285 = vmatprep.subr.mxu0 0.0
      %3286 = vmatpush1.xpose.msra.mxu0 0.0
      %3287 = vmatprep.subr.mxu0 0.0
      %3288 = vmatpush1.xpose.msra.mxu0 0.0
      %3289 = vmatprep.subr.mxu0 0.0
      %3290 = vmatpush1.xpose.msra.mxu0 0.0
      %3291 = vmatprep.subr.mxu0 0.0
      %3292 = vmatpush1.xpose.msra.mxu0 0.0
      %3293 = vmatprep.subr.mxu0 0.0
      %3294 = vmatpush1.xpose.msra.mxu0 0.0
      %3295 = vmatprep.subr.mxu0 0.0
      %3296 = vmatpush1.xpose.msra.mxu0 0.0
      %3297 = vmatprep.mubr.f32.mxu0 0.0
      %3298 = vmatmul.mubr.f32.gmra.mrb[0].mxu0 %v3225
      %v3299 = vpop.f32.mrb[0].mxu0
      %v3300 = vadd.f32 0.0, %v3299
      %v3301 = vpop.f32.mrb[0].mxu0
      %3302 = vdwg.mxu0
      %v3304 = vsel %vm2696, %v2823, 0
      %v3307 = vsel %vm2696, %v1803, 0
      %v3310 = vsel %vm2696, %v1804, 0
      %3312 = vmatprep.subr.mxu0 0.0
      %3313 = vmatpush1.xpose.msra.mxu0 %v3307
      %3314 = vmatprep.subr.mxu0 0.0
      %3315 = vmatpush1.xpose.msra.mxu0 %v3310
      %3316 = vmatprep.subr.mxu0 0.0
      %3317 = vmatpush1.xpose.msra.mxu0 0.0
      %3318 = vmatprep.subr.mxu0 0.0
      %3319 = vmatpush1.xpose.msra.mxu0 0.0
      %3320 = vmatprep.subr.mxu0 0.0
      %3321 = vmatpush1.xpose.msra.mxu0 0.0
      %3322 = vmatprep.subr.mxu0 0.0
      %3323 = vmatpush1.xpose.msra.mxu0 0.0
      %3324 = vmatprep.subr.mxu0 0.0
      %3325 = vmatpush1.xpose.msra.mxu0 0.0
      %3326 = vmatprep.subr.mxu0 0.0
      %3327 = vmatpush1.xpose.msra.mxu0 0.0
      %3328 = vmatprep.subr.mxu0 0.0
      %3329 = vmatpush1.xpose.msra.mxu0 0.0
      %3330 = vmatprep.subr.mxu0 0.0
      %3331 = vmatpush1.xpose.msra.mxu0 0.0
      %3332 = vmatprep.subr.mxu0 0.0
      %3333 = vmatpush1.xpose.msra.mxu0 0.0
      %3334 = vmatprep.subr.mxu0 0.0
      %3335 = vmatpush1.xpose.msra.mxu0 0.0
      %3336 = vmatprep.subr.mxu0 0.0
      %3337 = vmatpush1.xpose.msra.mxu0 0.0
      %3338 = vmatprep.subr.mxu0 0.0
      %3339 = vmatpush1.xpose.msra.mxu0 0.0
      %3340 = vmatprep.subr.mxu0 0.0
      %3341 = vmatpush1.xpose.msra.mxu0 0.0
      %3342 = vmatprep.subr.mxu0 0.0
      %3343 = vmatpush1.xpose.msra.mxu0 0.0
      %3344 = vmatprep.subr.mxu0 0.0
      %3345 = vmatpush1.xpose.msra.mxu0 0.0
      %3346 = vmatprep.subr.mxu0 0.0
      %3347 = vmatpush1.xpose.msra.mxu0 0.0
      %3348 = vmatprep.subr.mxu0 0.0
      %3349 = vmatpush1.xpose.msra.mxu0 0.0
      %3350 = vmatprep.subr.mxu0 0.0
      %3351 = vmatpush1.xpose.msra.mxu0 0.0
      %3352 = vmatprep.subr.mxu0 0.0
      %3353 = vmatpush1.xpose.msra.mxu0 0.0
      %3354 = vmatprep.subr.mxu0 0.0
      %3355 = vmatpush1.xpose.msra.mxu0 0.0
      %3356 = vmatprep.subr.mxu0 0.0
      %3357 = vmatpush1.xpose.msra.mxu0 0.0
      %3358 = vmatprep.subr.mxu0 0.0
      %3359 = vmatpush1.xpose.msra.mxu0 0.0
      %3360 = vmatprep.subr.mxu0 0.0
      %3361 = vmatpush1.xpose.msra.mxu0 0.0
      %3362 = vmatprep.subr.mxu0 0.0
      %3363 = vmatpush1.xpose.msra.mxu0 0.0
      %3364 = vmatprep.subr.mxu0 0.0
      %3365 = vmatpush1.xpose.msra.mxu0 0.0
      %3366 = vmatprep.subr.mxu0 0.0
      %3367 = vmatpush1.xpose.msra.mxu0 0.0
      %3368 = vmatprep.subr.mxu0 0.0
      %3369 = vmatpush1.xpose.msra.mxu0 0.0
      %3370 = vmatprep.subr.mxu0 0.0
      %3371 = vmatpush1.xpose.msra.mxu0 0.0
      %3372 = vmatprep.subr.mxu0 0.0
      %3373 = vmatpush1.xpose.msra.mxu0 0.0
      %3374 = vmatprep.subr.mxu0 0.0
      %3375 = vmatpush1.xpose.msra.mxu0 0.0
      %3376 = vmatprep.mubr.f32.mxu0 0.0
      %3377 = vmatmul.mubr.f32.gmra.mrb[0].mxu0 %v3304
      %v3378 = vpop.f32.mrb[0].mxu0
      %v3379 = vadd.f32 0.0, %v3378
      %v3380 = vpop.f32.mrb[0].mxu0
      %3381 = vdwg.mxu0
      %v3383 = vsel %vm2696, %v2824, 0
      %v3386 = vsel %vm2696, %v1805, 0
      %v3389 = vsel %vm2696, %v1806, 0
      %3391 = vmatprep.subr.mxu0 0.0
      %3392 = vmatpush1.xpose.msra.mxu0 %v3386
      %3393 = vmatprep.subr.mxu0 0.0
      %3394 = vmatpush1.xpose.msra.mxu0 %v3389
      %3395 = vmatprep.subr.mxu0 0.0
      %3396 = vmatpush1.xpose.msra.mxu0 0.0
      %3397 = vmatprep.subr.mxu0 0.0
      %3398 = vmatpush1.xpose.msra.mxu0 0.0
      %3399 = vmatprep.subr.mxu0 0.0
      %3400 = vmatpush1.xpose.msra.mxu0 0.0
      %3401 = vmatprep.subr.mxu0 0.0
      %3402 = vmatpush1.xpose.msra.mxu0 0.0
      %3403 = vmatprep.subr.mxu0 0.0
      %3404 = vmatpush1.xpose.msra.mxu0 0.0
      %3405 = vmatprep.subr.mxu0 0.0
      %3406 = vmatpush1.xpose.msra.mxu0 0.0
      %3407 = vmatprep.subr.mxu0 0.0
      %3408 = vmatpush1.xpose.msra.mxu0 0.0
      %3409 = vmatprep.subr.mxu0 0.0
      %3410 = vmatpush1.xpose.msra.mxu0 0.0
      %3411 = vmatprep.subr.mxu0 0.0
      %3412 = vmatpush1.xpose.msra.mxu0 0.0
      %3413 = vmatprep.subr.mxu0 0.0
      %3414 = vmatpush1.xpose.msra.mxu0 0.0
      %3415 = vmatprep.subr.mxu0 0.0
      %3416 = vmatpush1.xpose.msra.mxu0 0.0
      %3417 = vmatprep.subr.mxu0 0.0
      %3418 = vmatpush1.xpose.msra.mxu0 0.0
      %3419 = vmatprep.subr.mxu0 0.0
      %3420 = vmatpush1.xpose.msra.mxu0 0.0
      %3421 = vmatprep.subr.mxu0 0.0
      %3422 = vmatpush1.xpose.msra.mxu0 0.0
      %3423 = vmatprep.subr.mxu0 0.0
      %3424 = vmatpush1.xpose.msra.mxu0 0.0
      %3425 = vmatprep.subr.mxu0 0.0
      %3426 = vmatpush1.xpose.msra.mxu0 0.0
      %3427 = vmatprep.subr.mxu0 0.0
      %3428 = vmatpush1.xpose.msra.mxu0 0.0
      %3429 = vmatprep.subr.mxu0 0.0
      %3430 = vmatpush1.xpose.msra.mxu0 0.0
      %3431 = vmatprep.subr.mxu0 0.0
      %3432 = vmatpush1.xpose.msra.mxu0 0.0
      %3433 = vmatprep.subr.mxu0 0.0
      %3434 = vmatpush1.xpose.msra.mxu0 0.0
      %3435 = vmatprep.subr.mxu0 0.0
      %3436 = vmatpush1.xpose.msra.mxu0 0.0
      %3437 = vmatprep.subr.mxu0 0.0
      %3438 = vmatpush1.xpose.msra.mxu0 0.0
      %3439 = vmatprep.subr.mxu0 0.0
      %3440 = vmatpush1.xpose.msra.mxu0 0.0
      %3441 = vmatprep.subr.mxu0 0.0
      %3442 = vmatpush1.xpose.msra.mxu0 0.0
      %3443 = vmatprep.subr.mxu0 0.0
      %3444 = vmatpush1.xpose.msra.mxu0 0.0
      %3445 = vmatprep.subr.mxu0 0.0
      %3446 = vmatpush1.xpose.msra.mxu0 0.0
      %3447 = vmatprep.subr.mxu0 0.0
      %3448 = vmatpush1.xpose.msra.mxu0 0.0
      %3449 = vmatprep.subr.mxu0 0.0
      %3450 = vmatpush1.xpose.msra.mxu0 0.0
      %3451 = vmatprep.subr.mxu0 0.0
      %3452 = vmatpush1.xpose.msra.mxu0 0.0
      %3453 = vmatprep.subr.mxu0 0.0
      %3454 = vmatpush1.xpose.msra.mxu0 0.0
      %3455 = vmatprep.mubr.f32.mxu0 0.0
      %3456 = vmatmul.mubr.f32.gmra.mrb[0].mxu0 %v3383
      %v3457 = vpop.f32.mrb[0].mxu0
      %v3458 = vadd.f32 0.0, %v3457
      %v3459 = vpop.f32.mrb[0].mxu0
      %3460 = vdwg.mxu0
      %v3462 = vsel %vm2696, %v2825, 0
      %v3465 = vsel %vm2696, %v1807, 0
      %v3468 = vsel %vm2696, %v1808, 0
      %3470 = vmatprep.subr.mxu0 0.0
      %3471 = vmatpush1.xpose.msra.mxu0 %v3465
      %3472 = vmatprep.subr.mxu0 0.0
      %3473 = vmatpush1.xpose.msra.mxu0 %v3468
      %3474 = vmatprep.subr.mxu0 0.0
      %3475 = vmatpush1.xpose.msra.mxu0 0.0
      %3476 = vmatprep.subr.mxu0 0.0
      %3477 = vmatpush1.xpose.msra.mxu0 0.0
      %3478 = vmatprep.subr.mxu0 0.0
      %3479 = vmatpush1.xpose.msra.mxu0 0.0
      %3480 = vmatprep.subr.mxu0 0.0
      %3481 = vmatpush1.xpose.msra.mxu0 0.0
      %3482 = vmatprep.subr.mxu0 0.0
      %3483 = vmatpush1.xpose.msra.mxu0 0.0
      %3484 = vmatprep.subr.mxu0 0.0
      %3485 = vmatpush1.xpose.msra.mxu0 0.0
      %3486 = vmatprep.subr.mxu0 0.0
      %3487 = vmatpush1.xpose.msra.mxu0 0.0
      %3488 = vmatprep.subr.mxu0 0.0
      %3489 = vmatpush1.xpose.msra.mxu0 0.0
      %3490 = vmatprep.subr.mxu0 0.0
      %3491 = vmatpush1.xpose.msra.mxu0 0.0
      %3492 = vmatprep.subr.mxu0 0.0
      %3493 = vmatpush1.xpose.msra.mxu0 0.0
      %3494 = vmatprep.subr.mxu0 0.0
      %3495 = vmatpush1.xpose.msra.mxu0 0.0
      %3496 = vmatprep.subr.mxu0 0.0
      %3497 = vmatpush1.xpose.msra.mxu0 0.0
      %3498 = vmatprep.subr.mxu0 0.0
      %3499 = vmatpush1.xpose.msra.mxu0 0.0
      %3500 = vmatprep.subr.mxu0 0.0
      %3501 = vmatpush1.xpose.msra.mxu0 0.0
      %3502 = vmatprep.subr.mxu0 0.0
      %3503 = vmatpush1.xpose.msra.mxu0 0.0
      %3504 = vmatprep.subr.mxu0 0.0
      %3505 = vmatpush1.xpose.msra.mxu0 0.0
      %3506 = vmatprep.subr.mxu0 0.0
      %3507 = vmatpush1.xpose.msra.mxu0 0.0
      %3508 = vmatprep.subr.mxu0 0.0
      %3509 = vmatpush1.xpose.msra.mxu0 0.0
      %3510 = vmatprep.subr.mxu0 0.0
      %3511 = vmatpush1.xpose.msra.mxu0 0.0
      %3512 = vmatprep.subr.mxu0 0.0
      %3513 = vmatpush1.xpose.msra.mxu0 0.0
      %3514 = vmatprep.subr.mxu0 0.0
      %3515 = vmatpush1.xpose.msra.mxu0 0.0
      %3516 = vmatprep.subr.mxu0 0.0
      %3517 = vmatpush1.xpose.msra.mxu0 0.0
      %3518 = vmatprep.subr.mxu0 0.0
      %3519 = vmatpush1.xpose.msra.mxu0 0.0
      %3520 = vmatprep.subr.mxu0 0.0
      %3521 = vmatpush1.xpose.msra.mxu0 0.0
      %3522 = vmatprep.subr.mxu0 0.0
      %3523 = vmatpush1.xpose.msra.mxu0 0.0
      %3524 = vmatprep.subr.mxu0 0.0
      %3525 = vmatpush1.xpose.msra.mxu0 0.0
      %3526 = vmatprep.subr.mxu0 0.0
      %3527 = vmatpush1.xpose.msra.mxu0 0.0
      %3528 = vmatprep.subr.mxu0 0.0
      %3529 = vmatpush1.xpose.msra.mxu0 0.0
      %3530 = vmatprep.subr.mxu0 0.0
      %3531 = vmatpush1.xpose.msra.mxu0 0.0
      %3532 = vmatprep.subr.mxu0 0.0
      %3533 = vmatpush1.xpose.msra.mxu0 0.0
      %3534 = vmatprep.mubr.f32.mxu0 0.0
      %3535 = vmatmul.mubr.f32.gmra.mrb[0].mxu0 %v3462
      %v3536 = vpop.f32.mrb[0].mxu0
      %v3537 = vadd.f32 0.0, %v3536
      %v3538 = vpop.f32.mrb[0].mxu0
      %3539 = vdwg.mxu0
      %v3541 = vsel %vm2696, %v2826, 0
      %v3544 = vsel %vm2696, %v1809, 0
      %v3547 = vsel %vm2696, %v1810, 0
      %3549 = vmatprep.subr.mxu0 0.0
      %3550 = vmatpush1.xpose.msra.mxu0 %v3544
      %3551 = vmatprep.subr.mxu0 0.0
      %3552 = vmatpush1.xpose.msra.mxu0 %v3547
      %3553 = vmatprep.subr.mxu0 0.0
      %3554 = vmatpush1.xpose.msra.mxu0 0.0
      %3555 = vmatprep.subr.mxu0 0.0
      %3556 = vmatpush1.xpose.msra.mxu0 0.0
      %3557 = vmatprep.subr.mxu0 0.0
      %3558 = vmatpush1.xpose.msra.mxu0 0.0
      %3559 = vmatprep.subr.mxu0 0.0
      %3560 = vmatpush1.xpose.msra.mxu0 0.0
      %3561 = vmatprep.subr.mxu0 0.0
      %3562 = vmatpush1.xpose.msra.mxu0 0.0
      %3563 = vmatprep.subr.mxu0 0.0
      %3564 = vmatpush1.xpose.msra.mxu0 0.0
      %3565 = vmatprep.subr.mxu0 0.0
      %3566 = vmatpush1.xpose.msra.mxu0 0.0
      %3567 = vmatprep.subr.mxu0 0.0
      %3568 = vmatpush1.xpose.msra.mxu0 0.0
      %3569 = vmatprep.subr.mxu0 0.0
      %3570 = vmatpush1.xpose.msra.mxu0 0.0
      %3571 = vmatprep.subr.mxu0 0.0
      %3572 = vmatpush1.xpose.msra.mxu0 0.0
      %3573 = vmatprep.subr.mxu0 0.0
      %3574 = vmatpush1.xpose.msra.mxu0 0.0
      %3575 = vmatprep.subr.mxu0 0.0
      %3576 = vmatpush1.xpose.msra.mxu0 0.0
      %3577 = vmatprep.subr.mxu0 0.0
      %3578 = vmatpush1.xpose.msra.mxu0 0.0
      %3579 = vmatprep.subr.mxu0 0.0
      %3580 = vmatpush1.xpose.msra.mxu0 0.0
      %3581 = vmatprep.subr.mxu0 0.0
      %3582 = vmatpush1.xpose.msra.mxu0 0.0
      %3583 = vmatprep.subr.mxu0 0.0
      %3584 = vmatpush1.xpose.msra.mxu0 0.0
      %3585 = vmatprep.subr.mxu0 0.0
      %3586 = vmatpush1.xpose.msra.mxu0 0.0
      %3587 = vmatprep.subr.mxu0 0.0
      %3588 = vmatpush1.xpose.msra.mxu0 0.0
      %3589 = vmatprep.subr.mxu0 0.0
      %3590 = vmatpush1.xpose.msra.mxu0 0.0
      %3591 = vmatprep.subr.mxu0 0.0
      %3592 = vmatpush1.xpose.msra.mxu0 0.0
      %3593 = vmatprep.subr.mxu0 0.0
      %3594 = vmatpush1.xpose.msra.mxu0 0.0
      %3595 = vmatprep.subr.mxu0 0.0
      %3596 = vmatpush1.xpose.msra.mxu0 0.0
      %3597 = vmatprep.subr.mxu0 0.0
      %3598 = vmatpush1.xpose.msra.mxu0 0.0
      %3599 = vmatprep.subr.mxu0 0.0
      %3600 = vmatpush1.xpose.msra.mxu0 0.0
      %3601 = vmatprep.subr.mxu0 0.0
      %3602 = vmatpush1.xpose.msra.mxu0 0.0
      %3603 = vmatprep.subr.mxu0 0.0
      %3604 = vmatpush1.xpose.msra.mxu0 0.0
      %3605 = vmatprep.subr.mxu0 0.0
      %3606 = vmatpush1.xpose.msra.mxu0 0.0
      %3607 = vmatprep.subr.mxu0 0.0
      %3608 = vmatpush1.xpose.msra.mxu0 0.0
      %3609 = vmatprep.subr.mxu0 0.0
      %3610 = vmatpush1.xpose.msra.mxu0 0.0
      %3611 = vmatprep.subr.mxu0 0.0
      %3612 = vmatpush1.xpose.msra.mxu0 0.0
      %3613 = vmatprep.mubr.f32.mxu0 0.0
      %3614 = vmatmul.mubr.f32.gmra.mrb[0].mxu0 %v3541
      %v3615 = vpop.f32.mrb[0].mxu0
      %v3616 = vadd.f32 0.0, %v3615
      %v3617 = vpop.f32.mrb[0].mxu0
      %3618 = vdwg.mxu0
      %v3620 = vsel %vm2696, %v2827, 0
      %v3623 = vsel %vm2696, %v1811, 0
      %v3626 = vsel %vm2696, %v1812, 0
      %3628 = vmatprep.subr.mxu0 0.0
      %3629 = vmatpush1.xpose.msra.mxu0 %v3623
      %3630 = vmatprep.subr.mxu0 0.0
      %3631 = vmatpush1.xpose.msra.mxu0 %v3626
      %3632 = vmatprep.subr.mxu0 0.0
      %3633 = vmatpush1.xpose.msra.mxu0 0.0
      %3634 = vmatprep.subr.mxu0 0.0
      %3635 = vmatpush1.xpose.msra.mxu0 0.0
      %3636 = vmatprep.subr.mxu0 0.0
      %3637 = vmatpush1.xpose.msra.mxu0 0.0
      %3638 = vmatprep.subr.mxu0 0.0
      %3639 = vmatpush1.xpose.msra.mxu0 0.0
      %3640 = vmatprep.subr.mxu0 0.0
      %3641 = vmatpush1.xpose.msra.mxu0 0.0
      %3642 = vmatprep.subr.mxu0 0.0
      %3643 = vmatpush1.xpose.msra.mxu0 0.0
      %3644 = vmatprep.subr.mxu0 0.0
      %3645 = vmatpush1.xpose.msra.mxu0 0.0
      %3646 = vmatprep.subr.mxu0 0.0
      %3647 = vmatpush1.xpose.msra.mxu0 0.0
      %3648 = vmatprep.subr.mxu0 0.0
      %3649 = vmatpush1.xpose.msra.mxu0 0.0
      %3650 = vmatprep.subr.mxu0 0.0
      %3651 = vmatpush1.xpose.msra.mxu0 0.0
      %3652 = vmatprep.subr.mxu0 0.0
      %3653 = vmatpush1.xpose.msra.mxu0 0.0
      %3654 = vmatprep.subr.mxu0 0.0
      %3655 = vmatpush1.xpose.msra.mxu0 0.0
      %3656 = vmatprep.subr.mxu0 0.0
      %3657 = vmatpush1.xpose.msra.mxu0 0.0
      %3658 = vmatprep.subr.mxu0 0.0
      %3659 = vmatpush1.xpose.msra.mxu0 0.0
      %3660 = vmatprep.subr.mxu0 0.0
      %3661 = vmatpush1.xpose.msra.mxu0 0.0
      %3662 = vmatprep.subr.mxu0 0.0
      %3663 = vmatpush1.xpose.msra.mxu0 0.0
      %3664 = vmatprep.subr.mxu0 0.0
      %3665 = vmatpush1.xpose.msra.mxu0 0.0
      %3666 = vmatprep.subr.mxu0 0.0
      %3667 = vmatpush1.xpose.msra.mxu0 0.0
      %3668 = vmatprep.subr.mxu0 0.0
      %3669 = vmatpush1.xpose.msra.mxu0 0.0
      %3670 = vmatprep.subr.mxu0 0.0
      %3671 = vmatpush1.xpose.msra.mxu0 0.0
      %3672 = vmatprep.subr.mxu0 0.0
      %3673 = vmatpush1.xpose.msra.mxu0 0.0
      %3674 = vmatprep.subr.mxu0 0.0
      %3675 = vmatpush1.xpose.msra.mxu0 0.0
      %3676 = vmatprep.subr.mxu0 0.0
      %3677 = vmatpush1.xpose.msra.mxu0 0.0
      %3678 = vmatprep.subr.mxu0 0.0
      %3679 = vmatpush1.xpose.msra.mxu0 0.0
      %3680 = vmatprep.subr.mxu0 0.0
      %3681 = vmatpush1.xpose.msra.mxu0 0.0
      %3682 = vmatprep.subr.mxu0 0.0
      %3683 = vmatpush1.xpose.msra.mxu0 0.0
      %3684 = vmatprep.subr.mxu0 0.0
      %3685 = vmatpush1.xpose.msra.mxu0 0.0
      %3686 = vmatprep.subr.mxu0 0.0
      %3687 = vmatpush1.xpose.msra.mxu0 0.0
      %3688 = vmatprep.subr.mxu0 0.0
      %3689 = vmatpush1.xpose.msra.mxu0 0.0
      %3690 = vmatprep.subr.mxu0 0.0
      %3691 = vmatpush1.xpose.msra.mxu0 0.0
      %3692 = vmatprep.mubr.f32.mxu0 0.0
      %3693 = vmatmul.mubr.f32.gmra.mrb[0].mxu0 %v3620
      %v3694 = vpop.f32.mrb[0].mxu0
      %v3695 = vadd.f32 0.0, %v3694
      %v3696 = vpop.f32.mrb[0].mxu0
      %3697 = vdwg.mxu0
      %v3699 = vsel %vm2696, %v2828, 0
      %v3702 = vsel %vm2696, %v1813, 0
      %v3705 = vsel %vm2696, %v1814, 0
      %3707 = vmatprep.subr.mxu0 0.0
      %3708 = vmatpush1.xpose.msra.mxu0 %v3702
      %3709 = vmatprep.subr.mxu0 0.0
      %3710 = vmatpush1.xpose.msra.mxu0 %v3705
      %3711 = vmatprep.subr.mxu0 0.0
      %3712 = vmatpush1.xpose.msra.mxu0 0.0
      %3713 = vmatprep.subr.mxu0 0.0
      %3714 = vmatpush1.xpose.msra.mxu0 0.0
      %3715 = vmatprep.subr.mxu0 0.0
      %3716 = vmatpush1.xpose.msra.mxu0 0.0
      %3717 = vmatprep.subr.mxu0 0.0
      %3718 = vmatpush1.xpose.msra.mxu0 0.0
      %3719 = vmatprep.subr.mxu0 0.0
      %3720 = vmatpush1.xpose.msra.mxu0 0.0
      %3721 = vmatprep.subr.mxu0 0.0
      %3722 = vmatpush1.xpose.msra.mxu0 0.0
      %3723 = vmatprep.subr.mxu0 0.0
      %3724 = vmatpush1.xpose.msra.mxu0 0.0
      %3725 = vmatprep.subr.mxu0 0.0
      %3726 = vmatpush1.xpose.msra.mxu0 0.0
      %3727 = vmatprep.subr.mxu0 0.0
      %3728 = vmatpush1.xpose.msra.mxu0 0.0
      %3729 = vmatprep.subr.mxu0 0.0
      %3730 = vmatpush1.xpose.msra.mxu0 0.0
      %3731 = vmatprep.subr.mxu0 0.0
      %3732 = vmatpush1.xpose.msra.mxu0 0.0
      %3733 = vmatprep.subr.mxu0 0.0
      %3734 = vmatpush1.xpose.msra.mxu0 0.0
      %3735 = vmatprep.subr.mxu0 0.0
      %3736 = vmatpush1.xpose.msra.mxu0 0.0
      %3737 = vmatprep.subr.mxu0 0.0
      %3738 = vmatpush1.xpose.msra.mxu0 0.0
      %3739 = vmatprep.subr.mxu0 0.0
      %3740 = vmatpush1.xpose.msra.mxu0 0.0
      %3741 = vmatprep.subr.mxu0 0.0
      %3742 = vmatpush1.xpose.msra.mxu0 0.0
      %3743 = vmatprep.subr.mxu0 0.0
      %3744 = vmatpush1.xpose.msra.mxu0 0.0
      %3745 = vmatprep.subr.mxu0 0.0
      %3746 = vmatpush1.xpose.msra.mxu0 0.0
      %3747 = vmatprep.subr.mxu0 0.0
      %3748 = vmatpush1.xpose.msra.mxu0 0.0
      %3749 = vmatprep.subr.mxu0 0.0
      %3750 = vmatpush1.xpose.msra.mxu0 0.0
      %3751 = vmatprep.subr.mxu0 0.0
      %3752 = vmatpush1.xpose.msra.mxu0 0.0
      %3753 = vmatprep.subr.mxu0 0.0
      %3754 = vmatpush1.xpose.msra.mxu0 0.0
      %3755 = vmatprep.subr.mxu0 0.0
      %3756 = vmatpush1.xpose.msra.mxu0 0.0
      %3757 = vmatprep.subr.mxu0 0.0
      %3758 = vmatpush1.xpose.msra.mxu0 0.0
      %3759 = vmatprep.subr.mxu0 0.0
      %3760 = vmatpush1.xpose.msra.mxu0 0.0
      %3761 = vmatprep.subr.mxu0 0.0
      %3762 = vmatpush1.xpose.msra.mxu0 0.0
      %3763 = vmatprep.subr.mxu0 0.0
      %3764 = vmatpush1.xpose.msra.mxu0 0.0
      %3765 = vmatprep.subr.mxu0 0.0
      %3766 = vmatpush1.xpose.msra.mxu0 0.0
      %3767 = vmatprep.subr.mxu0 0.0
      %3768 = vmatpush1.xpose.msra.mxu0 0.0
      %3769 = vmatprep.subr.mxu0 0.0
      %3770 = vmatpush1.xpose.msra.mxu0 0.0
      %3771 = vmatprep.mubr.f32.mxu0 0.0
      %3772 = vmatmul.mubr.f32.gmra.mrb[0].mxu0 %v3699
      %v3773 = vpop.f32.mrb[0].mxu0
      %v3774 = vadd.f32 0.0, %v3773
      %v3775 = vpop.f32.mrb[0].mxu0
      %3776 = vdwg.mxu0
      %3777 = vxpose.xlu0.b32.start [1/16] %v2905, 128
      %3778 = vxpose.xlu0.b32.cont [2/16] 0.0, 128
      %3779 = vxpose.xlu0.b32.cont [3/16] 0.0, 128
      %3780 = vxpose.xlu0.b32.cont [4/16] 0.0, 128
      %3781 = vxpose.xlu0.b32.cont [5/16] 0.0, 128
      %3782 = vxpose.xlu0.b32.cont [6/16] 0.0, 128
      %3783 = vxpose.xlu0.b32.cont [7/16] 0.0, 128
      %3784 = vxpose.xlu0.b32.cont [8/16] 0.0, 128
      %3785 = vxpose.xlu0.b32.cont [9/16] 0.0, 128
      %3786 = vxpose.xlu0.b32.cont [10/16] 0.0, 128
      %3787 = vxpose.xlu0.b32.cont [11/16] 0.0, 128
      %3788 = vxpose.xlu0.b32.cont [12/16] 0.0, 128
      %3789 = vxpose.xlu0.b32.cont [13/16] 0.0, 128
      %3790 = vxpose.xlu0.b32.cont [14/16] 0.0, 128
      %3791 = vxpose.xlu0.b32.cont [15/16] 0.0, 128
      %3792 = vxpose.xlu0.b32.end [16/16] 0.0, 128
      %v3793 = vpop.trf.xlu0
      %v3794 = vpop.trf.xlu0
      %v3795 = vpop.trf.xlu0
      %v3796 = vpop.trf.xlu0
      %v3797 = vpop.trf.xlu0
      %v3798 = vpop.trf.xlu0
      %v3799 = vpop.trf.xlu0
      %v3800 = vpop.trf.xlu0
      %v3801 = vpop.trf.xlu0
      %v3802 = vpop.trf.xlu0
      %v3803 = vpop.trf.xlu0
      %v3804 = vpop.trf.xlu0
      %v3805 = vpop.trf.xlu0
      %v3806 = vpop.trf.xlu0
      %v3807 = vpop.trf.xlu0
      %v3808 = vpop.trf.xlu0
      %3809 = vxpose.xlu0.b32.start [1/16] %v2984, 128
      %3810 = vxpose.xlu0.b32.cont [2/16] 0.0, 128
      %3811 = vxpose.xlu0.b32.cont [3/16] 0.0, 128
      %3812 = vxpose.xlu0.b32.cont [4/16] 0.0, 128
      %3813 = vxpose.xlu0.b32.cont [5/16] 0.0, 128
      %3814 = vxpose.xlu0.b32.cont [6/16] 0.0, 128
      %3815 = vxpose.xlu0.b32.cont [7/16] 0.0, 128
      %3816 = vxpose.xlu0.b32.cont [8/16] 0.0, 128
      %3817 = vxpose.xlu0.b32.cont [9/16] 0.0, 128
      %3818 = vxpose.xlu0.b32.cont [10/16] 0.0, 128
      %3819 = vxpose.xlu0.b32.cont [11/16] 0.0, 128
      %3820 = vxpose.xlu0.b32.cont [12/16] 0.0, 128
      %3821 = vxpose.xlu0.b32.cont [13/16] 0.0, 128
      %3822 = vxpose.xlu0.b32.cont [14/16] 0.0, 128
      %3823 = vxpose.xlu0.b32.cont [15/16] 0.0, 128
      %3824 = vxpose.xlu0.b32.end [16/16] 0.0, 128
      %v3825 = vpop.trf.xlu0
      %v3826 = vpop.trf.xlu0
      %v3827 = vpop.trf.xlu0
      %v3828 = vpop.trf.xlu0
      %v3829 = vpop.trf.xlu0
      %v3830 = vpop.trf.xlu0
      %v3831 = vpop.trf.xlu0
      %v3832 = vpop.trf.xlu0
      %v3833 = vpop.trf.xlu0
      %v3834 = vpop.trf.xlu0
      %v3835 = vpop.trf.xlu0
      %v3836 = vpop.trf.xlu0
      %v3837 = vpop.trf.xlu0
      %v3838 = vpop.trf.xlu0
      %v3839 = vpop.trf.xlu0
      %v3840 = vpop.trf.xlu0
      %3841 = vxpose.xlu0.b32.start [1/16] %v3063, 128
      %3842 = vxpose.xlu0.b32.cont [2/16] 0.0, 128
      %3843 = vxpose.xlu0.b32.cont [3/16] 0.0, 128
      %3844 = vxpose.xlu0.b32.cont [4/16] 0.0, 128
      %3845 = vxpose.xlu0.b32.cont [5/16] 0.0, 128
      %3846 = vxpose.xlu0.b32.cont [6/16] 0.0, 128
      %3847 = vxpose.xlu0.b32.cont [7/16] 0.0, 128
      %3848 = vxpose.xlu0.b32.cont [8/16] 0.0, 128
      %3849 = vxpose.xlu0.b32.cont [9/16] 0.0, 128
      %3850 = vxpose.xlu0.b32.cont [10/16] 0.0, 128
      %3851 = vxpose.xlu0.b32.cont [11/16] 0.0, 128
      %3852 = vxpose.xlu0.b32.cont [12/16] 0.0, 128
      %3853 = vxpose.xlu0.b32.cont [13/16] 0.0, 128
      %3854 = vxpose.xlu0.b32.cont [14/16] 0.0, 128
      %3855 = vxpose.xlu0.b32.cont [15/16] 0.0, 128
      %3856 = vxpose.xlu0.b32.end [16/16] 0.0, 128
      %v3857 = vpop.trf.xlu0
      %v3858 = vpop.trf.xlu0
      %v3859 = vpop.trf.xlu0
      %v3860 = vpop.trf.xlu0
      %v3861 = vpop.trf.xlu0
      %v3862 = vpop.trf.xlu0
      %v3863 = vpop.trf.xlu0
      %v3864 = vpop.trf.xlu0
      %v3865 = vpop.trf.xlu0
      %v3866 = vpop.trf.xlu0
      %v3867 = vpop.trf.xlu0
      %v3868 = vpop.trf.xlu0
      %v3869 = vpop.trf.xlu0
      %v3870 = vpop.trf.xlu0
      %v3871 = vpop.trf.xlu0
      %v3872 = vpop.trf.xlu0
      %3873 = vxpose.xlu0.b32.start [1/16] %v3142, 128
      %3874 = vxpose.xlu0.b32.cont [2/16] 0.0, 128
      %3875 = vxpose.xlu0.b32.cont [3/16] 0.0, 128
      %3876 = vxpose.xlu0.b32.cont [4/16] 0.0, 128
      %3877 = vxpose.xlu0.b32.cont [5/16] 0.0, 128
      %3878 = vxpose.xlu0.b32.cont [6/16] 0.0, 128
      %3879 = vxpose.xlu0.b32.cont [7/16] 0.0, 128
      %3880 = vxpose.xlu0.b32.cont [8/16] 0.0, 128
      %3881 = vxpose.xlu0.b32.cont [9/16] 0.0, 128
      %3882 = vxpose.xlu0.b32.cont [10/16] 0.0, 128
      %3883 = vxpose.xlu0.b32.cont [11/16] 0.0, 128
      %3884 = vxpose.xlu0.b32.cont [12/16] 0.0, 128
      %3885 = vxpose.xlu0.b32.cont [13/16] 0.0, 128
      %3886 = vxpose.xlu0.b32.cont [14/16] 0.0, 128
      %3887 = vxpose.xlu0.b32.cont [15/16] 0.0, 128
      %3888 = vxpose.xlu0.b32.end [16/16] 0.0, 128
      %v3889 = vpop.trf.xlu0
      %v3890 = vpop.trf.xlu0
      %v3891 = vpop.trf.xlu0
      %v3892 = vpop.trf.xlu0
      %v3893 = vpop.trf.xlu0
      %v3894 = vpop.trf.xlu0
      %v3895 = vpop.trf.xlu0
      %v3896 = vpop.trf.xlu0
      %v3897 = vpop.trf.xlu0
      %v3898 = vpop.trf.xlu0
      %v3899 = vpop.trf.xlu0
      %v3900 = vpop.trf.xlu0
      %v3901 = vpop.trf.xlu0
      %v3902 = vpop.trf.xlu0
      %v3903 = vpop.trf.xlu0
      %v3904 = vpop.trf.xlu0
      %3905 = vxpose.xlu0.b32.start [1/16] %v3221, 128
      %3906 = vxpose.xlu0.b32.cont [2/16] 0.0, 128
      %3907 = vxpose.xlu0.b32.cont [3/16] 0.0, 128
      %3908 = vxpose.xlu0.b32.cont [4/16] 0.0, 128
      %3909 = vxpose.xlu0.b32.cont [5/16] 0.0, 128
      %3910 = vxpose.xlu0.b32.cont [6/16] 0.0, 128
      %3911 = vxpose.xlu0.b32.cont [7/16] 0.0, 128
      %3912 = vxpose.xlu0.b32.cont [8/16] 0.0, 128
      %3913 = vxpose.xlu0.b32.cont [9/16] 0.0, 128
      %3914 = vxpose.xlu0.b32.cont [10/16] 0.0, 128
      %3915 = vxpose.xlu0.b32.cont [11/16] 0.0, 128
      %3916 = vxpose.xlu0.b32.cont [12/16] 0.0, 128
      %3917 = vxpose.xlu0.b32.cont [13/16] 0.0, 128
      %3918 = vxpose.xlu0.b32.cont [14/16] 0.0, 128
      %3919 = vxpose.xlu0.b32.cont [15/16] 0.0, 128
      %3920 = vxpose.xlu0.b32.end [16/16] 0.0, 128
      %v3921 = vpop.trf.xlu0
      %v3922 = vpop.trf.xlu0
      %v3923 = vpop.trf.xlu0
      %v3924 = vpop.trf.xlu0
      %v3925 = vpop.trf.xlu0
      %v3926 = vpop.trf.xlu0
      %v3927 = vpop.trf.xlu0
      %v3928 = vpop.trf.xlu0
      %v3929 = vpop.trf.xlu0
      %v3930 = vpop.trf.xlu0
      %v3931 = vpop.trf.xlu0
      %v3932 = vpop.trf.xlu0
      %v3933 = vpop.trf.xlu0
      %v3934 = vpop.trf.xlu0
      %v3935 = vpop.trf.xlu0
      %v3936 = vpop.trf.xlu0
      %3937 = vxpose.xlu0.b32.start [1/16] %v3300, 128
      %3938 = vxpose.xlu0.b32.cont [2/16] 0.0, 128
      %3939 = vxpose.xlu0.b32.cont [3/16] 0.0, 128
      %3940 = vxpose.xlu0.b32.cont [4/16] 0.0, 128
      %3941 = vxpose.xlu0.b32.cont [5/16] 0.0, 128
      %3942 = vxpose.xlu0.b32.cont [6/16] 0.0, 128
      %3943 = vxpose.xlu0.b32.cont [7/16] 0.0, 128
      %3944 = vxpose.xlu0.b32.cont [8/16] 0.0, 128
      %3945 = vxpose.xlu0.b32.cont [9/16] 0.0, 128
      %3946 = vxpose.xlu0.b32.cont [10/16] 0.0, 128
      %3947 = vxpose.xlu0.b32.cont [11/16] 0.0, 128
      %3948 = vxpose.xlu0.b32.cont [12/16] 0.0, 128
      %3949 = vxpose.xlu0.b32.cont [13/16] 0.0, 128
      %3950 = vxpose.xlu0.b32.cont [14/16] 0.0, 128
      %3951 = vxpose.xlu0.b32.cont [15/16] 0.0, 128
      %3952 = vxpose.xlu0.b32.end [16/16] 0.0, 128
      %v3953 = vpop.trf.xlu0
      %v3954 = vpop.trf.xlu0
      %v3955 = vpop.trf.xlu0
      %v3956 = vpop.trf.xlu0
      %v3957 = vpop.trf.xlu0
      %v3958 = vpop.trf.xlu0
      %v3959 = vpop.trf.xlu0
      %v3960 = vpop.trf.xlu0
      %v3961 = vpop.trf.xlu0
      %v3962 = vpop.trf.xlu0
      %v3963 = vpop.trf.xlu0
      %v3964 = vpop.trf.xlu0
      %v3965 = vpop.trf.xlu0
      %v3966 = vpop.trf.xlu0
      %v3967 = vpop.trf.xlu0
      %v3968 = vpop.trf.xlu0
      %3969 = vxpose.xlu0.b32.start [1/16] %v3379, 128
      %3970 = vxpose.xlu0.b32.cont [2/16] 0.0, 128
      %3971 = vxpose.xlu0.b32.cont [3/16] 0.0, 128
      %3972 = vxpose.xlu0.b32.cont [4/16] 0.0, 128
      %3973 = vxpose.xlu0.b32.cont [5/16] 0.0, 128
      %3974 = vxpose.xlu0.b32.cont [6/16] 0.0, 128
      %3975 = vxpose.xlu0.b32.cont [7/16] 0.0, 128
      %3976 = vxpose.xlu0.b32.cont [8/16] 0.0, 128
      %3977 = vxpose.xlu0.b32.cont [9/16] 0.0, 128
      %3978 = vxpose.xlu0.b32.cont [10/16] 0.0, 128
      %3979 = vxpose.xlu0.b32.cont [11/16] 0.0, 128
      %3980 = vxpose.xlu0.b32.cont [12/16] 0.0, 128
      %3981 = vxpose.xlu0.b32.cont [13/16] 0.0, 128
      %3982 = vxpose.xlu0.b32.cont [14/16] 0.0, 128
      %3983 = vxpose.xlu0.b32.cont [15/16] 0.0, 128
      %3984 = vxpose.xlu0.b32.end [16/16] 0.0, 128
      %v3985 = vpop.trf.xlu0
      %v3986 = vpop.trf.xlu0
      %v3987 = vpop.trf.xlu0
      %v3988 = vpop.trf.xlu0
      %v3989 = vpop.trf.xlu0
      %v3990 = vpop.trf.xlu0
      %v3991 = vpop.trf.xlu0
      %v3992 = vpop.trf.xlu0
      %v3993 = vpop.trf.xlu0
      %v3994 = vpop.trf.xlu0
      %v3995 = vpop.trf.xlu0
      %v3996 = vpop.trf.xlu0
      %v3997 = vpop.trf.xlu0
      %v3998 = vpop.trf.xlu0
      %v3999 = vpop.trf.xlu0
      %v4000 = vpop.trf.xlu0
      %4001 = vxpose.xlu0.b32.start [1/16] %v3458, 128
      %4002 = vxpose.xlu0.b32.cont [2/16] 0.0, 128
      %4003 = vxpose.xlu0.b32.cont [3/16] 0.0, 128
      %4004 = vxpose.xlu0.b32.cont [4/16] 0.0, 128
      %4005 = vxpose.xlu0.b32.cont [5/16] 0.0, 128
      %4006 = vxpose.xlu0.b32.cont [6/16] 0.0, 128
      %4007 = vxpose.xlu0.b32.cont [7/16] 0.0, 128
      %4008 = vxpose.xlu0.b32.cont [8/16] 0.0, 128
      %4009 = vxpose.xlu0.b32.cont [9/16] 0.0, 128
      %4010 = vxpose.xlu0.b32.cont [10/16] 0.0, 128
      %4011 = vxpose.xlu0.b32.cont [11/16] 0.0, 128
      %4012 = vxpose.xlu0.b32.cont [12/16] 0.0, 128
      %4013 = vxpose.xlu0.b32.cont [13/16] 0.0, 128
      %4014 = vxpose.xlu0.b32.cont [14/16] 0.0, 128
      %4015 = vxpose.xlu0.b32.cont [15/16] 0.0, 128
      %4016 = vxpose.xlu0.b32.end [16/16] 0.0, 128
      %v4017 = vpop.trf.xlu0
      %v4018 = vpop.trf.xlu0
      %v4019 = vpop.trf.xlu0
      %v4020 = vpop.trf.xlu0
      %v4021 = vpop.trf.xlu0
      %v4022 = vpop.trf.xlu0
      %v4023 = vpop.trf.xlu0
      %v4024 = vpop.trf.xlu0
      %v4025 = vpop.trf.xlu0
      %v4026 = vpop.trf.xlu0
      %v4027 = vpop.trf.xlu0
      %v4028 = vpop.trf.xlu0
      %v4029 = vpop.trf.xlu0
      %v4030 = vpop.trf.xlu0
      %v4031 = vpop.trf.xlu0
      %v4032 = vpop.trf.xlu0
      %4033 = vxpose.xlu0.b32.start [1/16] %v3537, 128
      %4034 = vxpose.xlu0.b32.cont [2/16] 0.0, 128
      %4035 = vxpose.xlu0.b32.cont [3/16] 0.0, 128
      %4036 = vxpose.xlu0.b32.cont [4/16] 0.0, 128
      %4037 = vxpose.xlu0.b32.cont [5/16] 0.0, 128
      %4038 = vxpose.xlu0.b32.cont [6/16] 0.0, 128
      %4039 = vxpose.xlu0.b32.cont [7/16] 0.0, 128
      %4040 = vxpose.xlu0.b32.cont [8/16] 0.0, 128
      %4041 = vxpose.xlu0.b32.cont [9/16] 0.0, 128
      %4042 = vxpose.xlu0.b32.cont [10/16] 0.0, 128
      %4043 = vxpose.xlu0.b32.cont [11/16] 0.0, 128
      %4044 = vxpose.xlu0.b32.cont [12/16] 0.0, 128
      %4045 = vxpose.xlu0.b32.cont [13/16] 0.0, 128
      %4046 = vxpose.xlu0.b32.cont [14/16] 0.0, 128
      %4047 = vxpose.xlu0.b32.cont [15/16] 0.0, 128
      %4048 = vxpose.xlu0.b32.end [16/16] 0.0, 128
      %v4049 = vpop.trf.xlu0
      %v4050 = vpop.trf.xlu0
      %v4051 = vpop.trf.xlu0
      %v4052 = vpop.trf.xlu0
      %v4053 = vpop.trf.xlu0
      %v4054 = vpop.trf.xlu0
      %v4055 = vpop.trf.xlu0
      %v4056 = vpop.trf.xlu0
      %v4057 = vpop.trf.xlu0
      %v4058 = vpop.trf.xlu0
      %v4059 = vpop.trf.xlu0
      %v4060 = vpop.trf.xlu0
      %v4061 = vpop.trf.xlu0
      %v4062 = vpop.trf.xlu0
      %v4063 = vpop.trf.xlu0
      %v4064 = vpop.trf.xlu0
      %4065 = vxpose.xlu0.b32.start [1/16] %v3616, 128
      %4066 = vxpose.xlu0.b32.cont [2/16] 0.0, 128
      %4067 = vxpose.xlu0.b32.cont [3/16] 0.0, 128
      %4068 = vxpose.xlu0.b32.cont [4/16] 0.0, 128
      %4069 = vxpose.xlu0.b32.cont [5/16] 0.0, 128
      %4070 = vxpose.xlu0.b32.cont [6/16] 0.0, 128
      %4071 = vxpose.xlu0.b32.cont [7/16] 0.0, 128
      %4072 = vxpose.xlu0.b32.cont [8/16] 0.0, 128
      %4073 = vxpose.xlu0.b32.cont [9/16] 0.0, 128
      %4074 = vxpose.xlu0.b32.cont [10/16] 0.0, 128
      %4075 = vxpose.xlu0.b32.cont [11/16] 0.0, 128
      %4076 = vxpose.xlu0.b32.cont [12/16] 0.0, 128
      %4077 = vxpose.xlu0.b32.cont [13/16] 0.0, 128
      %4078 = vxpose.xlu0.b32.cont [14/16] 0.0, 128
      %4079 = vxpose.xlu0.b32.cont [15/16] 0.0, 128
      %4080 = vxpose.xlu0.b32.end [16/16] 0.0, 128
      %v4081 = vpop.trf.xlu0
      %v4082 = vpop.trf.xlu0
      %v4083 = vpop.trf.xlu0
      %v4084 = vpop.trf.xlu0
      %v4085 = vpop.trf.xlu0
      %v4086 = vpop.trf.xlu0
      %v4087 = vpop.trf.xlu0
      %v4088 = vpop.trf.xlu0
      %v4089 = vpop.trf.xlu0
      %v4090 = vpop.trf.xlu0
      %v4091 = vpop.trf.xlu0
      %v4092 = vpop.trf.xlu0
      %v4093 = vpop.trf.xlu0
      %v4094 = vpop.trf.xlu0
      %v4095 = vpop.trf.xlu0
      %v4096 = vpop.trf.xlu0
      %4097 = vxpose.xlu0.b32.start [1/16] %v3695, 128
      %4098 = vxpose.xlu0.b32.cont [2/16] 0.0, 128
      %4099 = vxpose.xlu0.b32.cont [3/16] 0.0, 128
      %4100 = vxpose.xlu0.b32.cont [4/16] 0.0, 128
      %4101 = vxpose.xlu0.b32.cont [5/16] 0.0, 128
      %4102 = vxpose.xlu0.b32.cont [6/16] 0.0, 128
      %4103 = vxpose.xlu0.b32.cont [7/16] 0.0, 128
      %4104 = vxpose.xlu0.b32.cont [8/16] 0.0, 128
      %4105 = vxpose.xlu0.b32.cont [9/16] 0.0, 128
      %4106 = vxpose.xlu0.b32.cont [10/16] 0.0, 128
      %4107 = vxpose.xlu0.b32.cont [11/16] 0.0, 128
      %4108 = vxpose.xlu0.b32.cont [12/16] 0.0, 128
      %4109 = vxpose.xlu0.b32.cont [13/16] 0.0, 128
      %4110 = vxpose.xlu0.b32.cont [14/16] 0.0, 128
      %4111 = vxpose.xlu0.b32.cont [15/16] 0.0, 128
      %4112 = vxpose.xlu0.b32.end [16/16] 0.0, 128
      %v4113 = vpop.trf.xlu0
      %v4114 = vpop.trf.xlu0
      %v4115 = vpop.trf.xlu0
      %v4116 = vpop.trf.xlu0
      %v4117 = vpop.trf.xlu0
      %v4118 = vpop.trf.xlu0
      %v4119 = vpop.trf.xlu0
      %v4120 = vpop.trf.xlu0
      %v4121 = vpop.trf.xlu0
      %v4122 = vpop.trf.xlu0
      %v4123 = vpop.trf.xlu0
      %v4124 = vpop.trf.xlu0
      %v4125 = vpop.trf.xlu0
      %v4126 = vpop.trf.xlu0
      %v4127 = vpop.trf.xlu0
      %v4128 = vpop.trf.xlu0
      %4129 = vxpose.xlu0.b32.start [1/16] %v3774, 128
      %4130 = vxpose.xlu0.b32.cont [2/16] 0.0, 128
      %4131 = vxpose.xlu0.b32.cont [3/16] 0.0, 128
      %4132 = vxpose.xlu0.b32.cont [4/16] 0.0, 128
      %4133 = vxpose.xlu0.b32.cont [5/16] 0.0, 128
      %4134 = vxpose.xlu0.b32.cont [6/16] 0.0, 128
      %4135 = vxpose.xlu0.b32.cont [7/16] 0.0, 128
      %4136 = vxpose.xlu0.b32.cont [8/16] 0.0, 128
      %4137 = vxpose.xlu0.b32.cont [9/16] 0.0, 128
      %4138 = vxpose.xlu0.b32.cont [10/16] 0.0, 128
      %4139 = vxpose.xlu0.b32.cont [11/16] 0.0, 128
      %4140 = vxpose.xlu0.b32.cont [12/16] 0.0, 128
      %4141 = vxpose.xlu0.b32.cont [13/16] 0.0, 128
      %4142 = vxpose.xlu0.b32.cont [14/16] 0.0, 128
      %4143 = vxpose.xlu0.b32.cont [15/16] 0.0, 128
      %4144 = vxpose.xlu0.b32.end [16/16] 0.0, 128
      %v4145 = vpop.trf.xlu0
      %v4146 = vpop.trf.xlu0
      %v4147 = vpop.trf.xlu0
      %v4148 = vpop.trf.xlu0
      %v4149 = vpop.trf.xlu0
      %v4150 = vpop.trf.xlu0
      %v4151 = vpop.trf.xlu0
      %v4152 = vpop.trf.xlu0
      %v4153 = vpop.trf.xlu0
      %v4154 = vpop.trf.xlu0
      %v4155 = vpop.trf.xlu0
      %v4156 = vpop.trf.xlu0
      %v4157 = vpop.trf.xlu0
      %v4158 = vpop.trf.xlu0
      %v4159 = vpop.trf.xlu0
      %v4160 = vpop.trf.xlu0
      %4161 = vxpose.xlu0.b32.start [1/16] %v3793, 128
      %4162 = vxpose.xlu0.b32.cont [2/16] %v3794, 128
      %4163 = vxpose.xlu0.b32.cont [3/16] %v3825, 128
      %4164 = vxpose.xlu0.b32.cont [4/16] %v3826, 128
      %4165 = vxpose.xlu0.b32.cont [5/16] %v3857, 128
      %4166 = vxpose.xlu0.b32.cont [6/16] %v3858, 128
      %4167 = vxpose.xlu0.b32.cont [7/16] %v3889, 128
      %4168 = vxpose.xlu0.b32.cont [8/16] %v3890, 128
      %4169 = vxpose.xlu0.b32.cont [9/16] %v3921, 128
      %4170 = vxpose.xlu0.b32.cont [10/16] %v3922, 128
      %4171 = vxpose.xlu0.b32.cont [11/16] %v3953, 128
      %4172 = vxpose.xlu0.b32.cont [12/16] %v3954, 128
      %4173 = vxpose.xlu0.b32.cont [13/16] 0.0, 128
      %4174 = vxpose.xlu0.b32.cont [14/16] 0.0, 128
      %4175 = vxpose.xlu0.b32.cont [15/16] 0.0, 128
      %4176 = vxpose.xlu0.b32.end [16/16] 0.0, 128
      %v4177 = vpop.trf.xlu0
      %v4178 = vpop.trf.xlu0
      %v4179 = vpop.trf.xlu0
      %v4180 = vpop.trf.xlu0
      %v4181 = vpop.trf.xlu0
      %v4182 = vpop.trf.xlu0
      %v4183 = vpop.trf.xlu0
      %v4184 = vpop.trf.xlu0
      %v4185 = vpop.trf.xlu0
      %v4186 = vpop.trf.xlu0
      %v4187 = vpop.trf.xlu0
      %v4188 = vpop.trf.xlu0
      %v4189 = vpop.trf.xlu0
      %v4190 = vpop.trf.xlu0
      %v4191 = vpop.trf.xlu0
      %v4192 = vpop.trf.xlu0
      %4193 = vxpose.xlu0.b32.start [1/16] %v3985, 128
      %4194 = vxpose.xlu0.b32.cont [2/16] %v3986, 128
      %4195 = vxpose.xlu0.b32.cont [3/16] %v4017, 128
      %4196 = vxpose.xlu0.b32.cont [4/16] %v4018, 128
      %4197 = vxpose.xlu0.b32.cont [5/16] %v4049, 128
      %4198 = vxpose.xlu0.b32.cont [6/16] %v4050, 128
      %4199 = vxpose.xlu0.b32.cont [7/16] %v4081, 128
      %4200 = vxpose.xlu0.b32.cont [8/16] %v4082, 128
      %4201 = vxpose.xlu0.b32.cont [9/16] %v4113, 128
      %4202 = vxpose.xlu0.b32.cont [10/16] %v4114, 128
      %4203 = vxpose.xlu0.b32.cont [11/16] %v4145, 128
      %4204 = vxpose.xlu0.b32.cont [12/16] %v4146, 128
      %4205 = vxpose.xlu0.b32.cont [13/16] 0.0, 128
      %4206 = vxpose.xlu0.b32.cont [14/16] 0.0, 128
      %4207 = vxpose.xlu0.b32.cont [15/16] 0.0, 128
      %4208 = vxpose.xlu0.b32.end [16/16] 0.0, 128
      %v4209 = vpop.trf.xlu0
      %v4210 = vpop.trf.xlu0
      %v4211 = vpop.trf.xlu0
      %v4212 = vpop.trf.xlu0
      %v4213 = vpop.trf.xlu0
      %v4214 = vpop.trf.xlu0
      %v4215 = vpop.trf.xlu0
      %v4216 = vpop.trf.xlu0
      %v4217 = vpop.trf.xlu0
      %v4218 = vpop.trf.xlu0
      %v4219 = vpop.trf.xlu0
      %v4220 = vpop.trf.xlu0
      %v4221 = vpop.trf.xlu0
      %v4222 = vpop.trf.xlu0
      %v4223 = vpop.trf.xlu0
      %v4224 = vpop.trf.xlu0
      %v4225 = vld [vmem:[%s776] sm:$0xf]
      %v4226 = vld [vmem:[%s776 + $0x4] sm:$0xf]
      %v4227 = vld [vmem:[%s776 + $0x8] sm:$0xf]
      %v4228 = vld [vmem:[%s776 + $0xc] sm:$0xf]
      %v4229 = vld [vmem:[%s776 + $0x10] sm:$0xf]
      %v4230 = vld [vmem:[%s776 + $0x14] sm:$0xf]
      %v4231 = vld [vmem:[%s776 + $0x18] sm:$0xf]
      %v4232 = vld [vmem:[%s776 + $0x1c] sm:$0xf]
      %v4233 = vld [vmem:[%s776 + $0x20] sm:$0xf]
      %v4234 = vld [vmem:[%s776 + $0x24] sm:$0xf]
      %v4235 = vld [vmem:[%s776 + $0x28] sm:$0xf]
      %v4236 = vld [vmem:[%s776 + $0x2c] sm:$0xf]
      %v4249 = vunpack.c.l.b16 %v4225
      %v4250 = vunpack.c.l.b16 %v4226
      %v4251 = vunpack.c.l.b16 %v4227
      %v4252 = vunpack.c.l.b16 %v4228
      %v4253 = vunpack.c.l.b16 %v4229
      %v4254 = vunpack.c.l.b16 %v4230
      %v4255 = vunpack.c.l.b16 %v4231
      %v4256 = vunpack.c.l.b16 %v4232
      %v4257 = vunpack.c.l.b16 %v4233
      %v4258 = vunpack.c.l.b16 %v4234
      %v4259 = vunpack.c.l.b16 %v4235
      %v4260 = vunpack.c.l.b16 %v4236
      %v4261 = vpack.c.b16 %v4250, %v4249
      %v4262 = vpack.c.b16 %v4252, %v4251
      %v4263 = vpack.c.b16 %v4254, %v4253
      %v4264 = vpack.c.b16 %v4256, %v4255
      %v4265 = vpack.c.b16 %v4258, %v4257
      %v4266 = vpack.c.b16 %v4260, %v4259
      %v4274 = vsel %vm953, %v4177, 0
      %v4277 = vsel %vm953, %v4209, 0
      %4279 = vmatprep.subr.bf16.mxu0 0
      %4280 = vmatpush1.bf16.msra.mxu0 %v4261
      %4281 = vmatprep.subr.bf16.mxu0 0
      %4282 = vmatpush1.bf16.msra.mxu0 %v4262
      %4283 = vmatprep.subr.bf16.mxu0 0
      %4284 = vmatpush1.bf16.msra.mxu0 %v4263
      %4285 = vmatprep.subr.bf16.mxu0 0
      %4286 = vmatpush1.bf16.msra.mxu0 %v4264
      %4287 = vmatprep.subr.bf16.mxu0 0
      %4288 = vmatpush1.bf16.msra.mxu0 %v4265
      %4289 = vmatprep.subr.bf16.mxu0 0
      %4290 = vmatpush1.bf16.msra.mxu0 %v4266
      %4291 = vmatprep.subr.bf16.mxu0 0
      %4292 = vmatpush1.bf16.msra.mxu0 0
      %4293 = vmatprep.subr.bf16.mxu0 0
      %4294 = vmatpush1.bf16.msra.mxu0 0
      %4295 = vmatprep.subr.bf16.mxu0 0
      %4296 = vmatpush1.bf16.msra.mxu0 0
      %4297 = vmatprep.subr.bf16.mxu0 0
      %4298 = vmatpush1.bf16.msra.mxu0 0
      %4299 = vmatprep.subr.bf16.mxu0 0
      %4300 = vmatpush1.bf16.msra.mxu0 0
      %4301 = vmatprep.subr.bf16.mxu0 0
      %4302 = vmatpush1.bf16.msra.mxu0 0
      %4303 = vmatprep.subr.bf16.mxu0 0
      %4304 = vmatpush1.bf16.msra.mxu0 0
      %4305 = vmatprep.subr.bf16.mxu0 0
      %4306 = vmatpush1.bf16.msra.mxu0 0
      %4307 = vmatprep.subr.bf16.mxu0 0
      %4308 = vmatpush1.bf16.msra.mxu0 0
      %4309 = vmatprep.subr.bf16.mxu0 0
      %4310 = vmatpush1.bf16.msra.mxu0 0
      %4311 = vmatprep.mubr.f32.mxu0 0.0
      %4312 = vmatmul.mubr.f32.gmra.mrb[0].mxu0 %v4274
      %v4313 = vpop.f32.mrb[0].mxu0
      %v4314 = vadd.f32 0.0, %v4313
      %v4315 = vpop.f32.mrb[0].mxu0
      %4316 = vmatprep.mubr.f32.mxu0 0.0
      %4317 = vmatmul.mubr.f32.gmra.mrb[0].mxu0 %v4277
      %v4318 = vpop.f32.mrb[0].mxu0
      %v4319 = vadd.f32 0.0, %v4318
      %v4320 = vpop.f32.mrb[0].mxu0
      %4321 = vdwg.mxu0
      %v4322 = vadd.f32 %v949, %v4314
      %v4323 = vadd.f32 %v950, %v4319
      %v4324 = vld [vmem:[%s779] sm:$0x1]
      %v4326 = vlaneseq
      %v4327 = vshrl.u32 %v4326, 7
      %v4328 = vsub.s32 0, %v4327
      %v4329 = vrot.slane %v4324, %v4328
      %v4331 = vadd.f32 %v4322, %v4329
      %v4332 = vadd.f32 %v4323, %v4329
      %v4333 = vld [vmem:[%s782] sm:$0x1]
      %v4334 = vld [vmem:[%s785] sm:$0x1]
      %v4335 = vsel %vm953, %v4331, 0.0
      %4336 = vadd.xlane.f32.xlu0 %v4335
      %v4337 = vpop.xlane.xlu0 %4336
      %v4338 = vsel %vm953, %v4332, 0.0
      %4339 = vadd.xlane.f32.xlu0 %v4338
      %v4340 = vpop.xlane.xlu0 %4339
      %v4341 = vmul.f32 %v4337, %v960
      %v4342 = vmul.f32 %v4340, %v960
      %v4343 = vsub.f32 %v4331, %v4341
      %v4344 = vsub.f32 %v4332, %v4342
      %v4345 = vmul.f32 %v4343, %v4343
      %v4346 = vmul.f32 %v4344, %v4344
      %v4347 = vsel %vm953, %v4345, 0.0
      %4348 = vadd.xlane.f32.xlu0 %v4347
      %v4349 = vpop.xlane.xlu0 %4348
      %v4350 = vsel %vm953, %v4346, 0.0
      %4351 = vadd.xlane.f32.xlu0 %v4350
      %v4352 = vpop.xlane.xlu0 %4351
      %v4353 = vmul.f32 %v4349, %v960
      %v4354 = vmul.f32 %v4352, %v960
      %v4355 = vadd.f32 %v4353, 1e-05
      %v4356 = vadd.f32 %v4354, 1e-05
      %v4357 = vrsqrt.pop %v4355
      %v4358 = vrsqrt.pop %v4356
      %v4359 = vmul.f32 %v4343, %v4357
      %v4360 = vmul.f32 %v4344, %v4358
      %v4362 = vlaneseq
      %v4363 = vshrl.u32 %v4362, 7
      %v4364 = vsub.s32 0, %v4363
      %v4365 = vrot.slane %v4333, %v4364
      %v4367 = vmul.f32 %v4359, %v4365
      %v4368 = vmul.f32 %v4360, %v4365
      %v4370 = vlaneseq
      %v4371 = vshrl.u32 %v4370, 7
      %v4372 = vsub.s32 0, %v4371
      %v4373 = vrot.slane %v4334, %v4372
      %v4375 = vadd.f32 %v4367, %v4373
      %v4376 = vadd.f32 %v4368, %v4373
      %v4377 = vld [vmem:[%s790] sm:$0xff]
      %v4378 = vld [vmem:[%s790 + $0x8] sm:$0xf]
      %v4379 = vld [vmem:[%s790 + $0xc] sm:$0xff]
      %v4380 = vld [vmem:[%s790 + $0x14] sm:$0xf]
      %v4381 = vld [vmem:[%s790 + $0x18] sm:$0xff]
      %v4382 = vld [vmem:[%s790 + $0x20] sm:$0xf]
      %v4383 = vld [vmem:[%s790 + $0x24] sm:$0xff]
      %v4384 = vld [vmem:[%s790 + $0x2c] sm:$0xf]
      %v4385 = vld [vmem:[%s790 + $0x30] sm:$0xff]
      %v4386 = vld [vmem:[%s790 + $0x38] sm:$0xf]
      %v4387 = vld [vmem:[%s790 + $0x3c] sm:$0xff]
      %v4388 = vld [vmem:[%s790 + $0x44] sm:$0xf]
      %v4389 = vld [vmem:[%s790 + $0x48] sm:$0xff]
      %v4390 = vld [vmem:[%s790 + $0x50] sm:$0xf]
      %v4391 = vld [vmem:[%s790 + $0x54] sm:$0xff]
      %v4392 = vld [vmem:[%s790 + $0x5c] sm:$0xf]
      %v4393 = vld [vmem:[%s790 + $0x60] sm:$0xff]
      %v4394 = vld [vmem:[%s790 + $0x68] sm:$0xf]
      %v4395 = vld [vmem:[%s790 + $0x6c] sm:$0xff]
      %v4396 = vld [vmem:[%s790 + $0x74] sm:$0xf]
      %v4397 = vld [vmem:[%s790 + $0x78] sm:$0xff]
      %v4398 = vld [vmem:[%s790 + $0x80] sm:$0xf]
      %v4399 = vld [vmem:[%s790 + $0x84] sm:$0xff]
      %v4400 = vld [vmem:[%s790 + $0x8c] sm:$0xf]
      %v4401 = vld [vmem:[%s794] sm:$0x7]
      %v4403 = vlaneseq
      %v4404 = vshrl.u32 %v4403, 7
      %v4405 = vsub.s32 0, %v4404
      %v4406 = vrot.slane %v4401, %v4405
      %v4407 = vlaneseq
      %v4408 = vshrl.u32 %v4407, 7
      %v4409 = vsub.s32 1, %v4408
      %v4410 = vrot.slane %v4401, %v4409
      %v4411 = vlaneseq
      %v4412 = vshrl.u32 %v4411, 7
      %v4413 = vsub.s32 2, %v4412
      %v4414 = vrot.slane %v4401, %v4413
      %v4442 = vunpack.c.l.b16 %v4377
      %v4443 = vunpack.c.h.b16 %v4377
      %v4444 = vunpack.c.l.b16 %v4378
      %v4445 = vunpack.c.l.b16 %v4379
      %v4446 = vunpack.c.h.b16 %v4379
      %v4447 = vunpack.c.l.b16 %v4380
      %v4448 = vunpack.c.l.b16 %v4381
      %v4449 = vunpack.c.h.b16 %v4381
      %v4450 = vunpack.c.l.b16 %v4382
      %v4451 = vunpack.c.l.b16 %v4383
      %v4452 = vunpack.c.h.b16 %v4383
      %v4453 = vunpack.c.l.b16 %v4384
      %v4454 = vunpack.c.l.b16 %v4385
      %v4455 = vunpack.c.h.b16 %v4385
      %v4456 = vunpack.c.l.b16 %v4386
      %v4457 = vunpack.c.l.b16 %v4387
      %v4458 = vunpack.c.h.b16 %v4387
      %v4459 = vunpack.c.l.b16 %v4388
      %v4460 = vunpack.c.l.b16 %v4389
      %v4461 = vunpack.c.h.b16 %v4389
      %v4462 = vunpack.c.l.b16 %v4390
      %v4463 = vunpack.c.l.b16 %v4391
      %v4464 = vunpack.c.h.b16 %v4391
      %v4465 = vunpack.c.l.b16 %v4392
      %v4466 = vunpack.c.l.b16 %v4393
      %v4467 = vunpack.c.h.b16 %v4393
      %v4468 = vunpack.c.l.b16 %v4394
      %v4469 = vunpack.c.l.b16 %v4395
      %v4470 = vunpack.c.h.b16 %v4395
      %v4471 = vunpack.c.l.b16 %v4396
      %v4472 = vunpack.c.l.b16 %v4397
      %v4473 = vunpack.c.h.b16 %v4397
      %v4474 = vunpack.c.l.b16 %v4398
      %v4475 = vunpack.c.l.b16 %v4399
      %v4476 = vunpack.c.h.b16 %v4399
      %v4477 = vunpack.c.l.b16 %v4400
      %v4478 = vpack.c.b16 %v4445, %v4442
      %v4479 = vpack.c.b16 %v4446, %v4443
      %v4480 = vpack.c.b16 %v4447, %v4444
      %v4481 = vpack.c.b16 %v4451, %v4448
      %v4482 = vpack.c.b16 %v4452, %v4449
      %v4483 = vpack.c.b16 %v4453, %v4450
      %v4484 = vpack.c.b16 %v4457, %v4454
      %v4485 = vpack.c.b16 %v4458, %v4455
      %v4486 = vpack.c.b16 %v4459, %v4456
      %v4487 = vpack.c.b16 %v4463, %v4460
      %v4488 = vpack.c.b16 %v4464, %v4461
      %v4489 = vpack.c.b16 %v4465, %v4462
      %v4490 = vpack.c.b16 %v4469, %v4466
      %v4491 = vpack.c.b16 %v4470, %v4467
      %v4492 = vpack.c.b16 %v4471, %v4468
      %v4493 = vpack.c.b16 %v4475, %v4472
      %v4494 = vpack.c.b16 %v4476, %v4473
      %v4495 = vpack.c.b16 %v4477, %v4474
      %v4515 = vsel %vm953, %v4375, 0
      %v4518 = vsel %vm953, %v4376, 0
      %4520 = vmatprep.subr.bf16.mxu0 %v4479
      %4521 = vmatpush1.bf16.msra.mxu0 %v4478
      %4522 = vmatprep.subr.bf16.mxu0 %v4482
      %4523 = vmatpush1.bf16.msra.mxu0 %v4481
      %4524 = vmatprep.subr.bf16.mxu0 %v4485
      %4525 = vmatpush1.bf16.msra.mxu0 %v4484
      %4526 = vmatprep.subr.bf16.mxu0 %v4488
      %4527 = vmatpush1.bf16.msra.mxu0 %v4487
      %4528 = vmatprep.subr.bf16.mxu0 %v4491
      %4529 = vmatpush1.bf16.msra.mxu0 %v4490
      %4530 = vmatprep.subr.bf16.mxu0 %v4494
      %4531 = vmatpush1.bf16.msra.mxu0 %v4493
      %4532 = vmatprep.subr.bf16.mxu0 0
      %4533 = vmatpush1.bf16.msra.mxu0 0
      %4534 = vmatprep.subr.bf16.mxu0 0
      %4535 = vmatpush1.bf16.msra.mxu0 0
      %4536 = vmatprep.subr.bf16.mxu0 0
      %4537 = vmatpush1.bf16.msra.mxu0 0
      %4538 = vmatprep.subr.bf16.mxu0 0
      %4539 = vmatpush1.bf16.msra.mxu0 0
      %4540 = vmatprep.subr.bf16.mxu0 0
      %4541 = vmatpush1.bf16.msra.mxu0 0
      %4542 = vmatprep.subr.bf16.mxu0 0
      %4543 = vmatpush1.bf16.msra.mxu0 0
      %4544 = vmatprep.subr.bf16.mxu0 0
      %4545 = vmatpush1.bf16.msra.mxu0 0
      %4546 = vmatprep.subr.bf16.mxu0 0
      %4547 = vmatpush1.bf16.msra.mxu0 0
      %4548 = vmatprep.subr.bf16.mxu0 0
      %4549 = vmatpush1.bf16.msra.mxu0 0
      %4550 = vmatprep.subr.bf16.mxu0 0
      %4551 = vmatpush1.bf16.msra.mxu0 0
      %4552 = vmatprep.mubr.f32.mxu0 0.0
      %4553 = vmatmul.mubr.f32.gmra.mrb[0].mxu0 %v4515
      %v4554 = vpop.f32.mrb[0].mxu0
      %v4555 = vadd.f32 %v4406, %v4554
      %v4556 = vpop.f32.mrb[0].mxu0
      %v4557 = vadd.f32 %v4410, %v4556
      %4558 = vmatprep.mubr.f32.mxu0 0.0
      %4559 = vmatmul.mubr.f32.gmra.mrb[0].mxu0 %v4518
      %v4560 = vpop.f32.mrb[0].mxu0
      %v4561 = vadd.f32 %v4406, %v4560
      %v4562 = vpop.f32.mrb[0].mxu0
      %v4563 = vadd.f32 %v4410, %v4562
      %4564 = vdwg.mxu0
      %4565 = vmatprep.subr.bf16.mxu0 0
      %4566 = vmatpush1.bf16.msra.mxu0 %v4480
      %4567 = vmatprep.subr.bf16.mxu0 0
      %4568 = vmatpush1.bf16.msra.mxu0 %v4483
      %4569 = vmatprep.subr.bf16.mxu0 0
      %4570 = vmatpush1.bf16.msra.mxu0 %v4486
      %4571 = vmatprep.subr.bf16.mxu0 0
      %4572 = vmatpush1.bf16.msra.mxu0 %v4489
      %4573 = vmatprep.subr.bf16.mxu0 0
      %4574 = vmatpush1.bf16.msra.mxu0 %v4492
      %4575 = vmatprep.subr.bf16.mxu0 0
      %4576 = vmatpush1.bf16.msra.mxu0 %v4495
      %4577 = vmatprep.subr.bf16.mxu0 0
      %4578 = vmatpush1.bf16.msra.mxu0 0
      %4579 = vmatprep.subr.bf16.mxu0 0
      %4580 = vmatpush1.bf16.msra.mxu0 0
      %4581 = vmatprep.subr.bf16.mxu0 0
      %4582 = vmatpush1.bf16.msra.mxu0 0
      %4583 = vmatprep.subr.bf16.mxu0 0
      %4584 = vmatpush1.bf16.msra.mxu0 0
      %4585 = vmatprep.subr.bf16.mxu0 0
      %4586 = vmatpush1.bf16.msra.mxu0 0
      %4587 = vmatprep.subr.bf16.mxu0 0
      %4588 = vmatpush1.bf16.msra.mxu0 0
      %4589 = vmatprep.subr.bf16.mxu0 0
      %4590 = vmatpush1.bf16.msra.mxu0 0
      %4591 = vmatprep.subr.bf16.mxu0 0
      %4592 = vmatpush1.bf16.msra.mxu0 0
      %4593 = vmatprep.subr.bf16.mxu0 0
      %4594 = vmatpush1.bf16.msra.mxu0 0
      %4595 = vmatprep.subr.bf16.mxu0 0
      %4596 = vmatpush1.bf16.msra.mxu0 0
      %4597 = vmatprep.mubr.f32.mxu0 0.0
      %4598 = vmatmul.mubr.f32.gmra.mrb[0].mxu0 %v4515
      %v4599 = vpop.f32.mrb[0].mxu0
      %v4600 = vadd.f32 %v4414, %v4599
      %v4601 = vpop.f32.mrb[0].mxu0
      %4602 = vmatprep.mubr.f32.mxu0 0.0
      %4603 = vmatmul.mubr.f32.gmra.mrb[0].mxu0 %v4518
      %v4604 = vpop.f32.mrb[0].mxu0
      %v4605 = vadd.f32 %v4414, %v4604
      %v4606 = vpop.f32.mrb[0].mxu0
      %4607 = vdwg.mxu0
      %v4608 = vmax.f32 %v4555, 0.0
      %v4609 = vmax.f32 %v4557, 0.0
      %v4610 = vmax.f32 %v4600, 0.0
      %v4611 = vmax.f32 %v4561, 0.0
      %v4612 = vmax.f32 %v4563, 0.0
      %v4613 = vmax.f32 %v4605, 0.0
      %v4614 = vld [vmem:[%s799] sm:$0xf]
      %v4615 = vld [vmem:[%s799 + $0x4] sm:$0xf]
      %v4616 = vld [vmem:[%s799 + $0x8] sm:$0xf]
      %v4617 = vld [vmem:[%s799 + $0xc] sm:$0xf]
      %v4618 = vld [vmem:[%s799 + $0x10] sm:$0xf]
      %v4619 = vld [vmem:[%s799 + $0x14] sm:$0xf]
      %v4620 = vld [vmem:[%s799 + $0x18] sm:$0xf]
      %v4621 = vld [vmem:[%s799 + $0x1c] sm:$0xf]
      %v4622 = vld [vmem:[%s799 + $0x20] sm:$0xf]
      %v4623 = vld [vmem:[%s799 + $0x24] sm:$0xf]
      %v4624 = vld [vmem:[%s799 + $0x28] sm:$0xf]
      %v4625 = vld [vmem:[%s799 + $0x2c] sm:$0xf]
      %v4626 = vld [vmem:[%s799 + $0x30] sm:$0xf]
      %v4627 = vld [vmem:[%s799 + $0x34] sm:$0xf]
      %v4628 = vld [vmem:[%s799 + $0x38] sm:$0xf]
      %v4629 = vld [vmem:[%s799 + $0x3c] sm:$0xf]
      %v4630 = vld [vmem:[%s799 + $0x40] sm:$0xf]
      %v4631 = vld [vmem:[%s799 + $0x44] sm:$0xf]
      %v4632 = vld [vmem:[%s799 + $0x48] sm:$0xf]
      %v4633 = vld [vmem:[%s799 + $0x4c] sm:$0xf]
      %v4634 = vld [vmem:[%s799 + $0x50] sm:$0xf]
      %v4635 = vld [vmem:[%s799 + $0x54] sm:$0xf]
      %v4636 = vld [vmem:[%s799 + $0x58] sm:$0xf]
      %v4637 = vld [vmem:[%s799 + $0x5c] sm:$0xf]
      %v4638 = vld [vmem:[%s799 + $0x60] sm:$0xf]
      %v4639 = vld [vmem:[%s799 + $0x64] sm:$0xf]
      %v4640 = vld [vmem:[%s799 + $0x68] sm:$0xf]
      %v4641 = vld [vmem:[%s799 + $0x6c] sm:$0xf]
      %v4642 = vld [vmem:[%s799 + $0x70] sm:$0xf]
      %v4643 = vld [vmem:[%s799 + $0x74] sm:$0xf]
      %v4644 = vld [vmem:[%s799 + $0x78] sm:$0xf]
      %v4645 = vld [vmem:[%s799 + $0x7c] sm:$0xf]
      %v4646 = vld [vmem:[%s799 + $0x80] sm:$0xf]
      %v4647 = vld [vmem:[%s799 + $0x84] sm:$0xf]
      %v4648 = vld [vmem:[%s799 + $0x88] sm:$0xf]
      %v4649 = vld [vmem:[%s799 + $0x8c] sm:$0xf]
      %v4650 = vld [vmem:[%s799 + $0x90] sm:$0xf]
      %v4651 = vld [vmem:[%s799 + $0x94] sm:$0xf]
      %v4652 = vld [vmem:[%s799 + $0x98] sm:$0xf]
      %v4653 = vld [vmem:[%s799 + $0x9c] sm:$0xf]
      %v4654 = vld [vmem:[%s799 + $0xa0] sm:$0xf]
      %v4655 = vld [vmem:[%s799 + $0xa4] sm:$0xf]
      %v4656 = vld [vmem:[%s799 + $0xa8] sm:$0xf]
      %v4657 = vld [vmem:[%s799 + $0xac] sm:$0xf]
      %v4658 = vld [vmem:[%s799 + $0xb0] sm:$0xf]
      %v4659 = vld [vmem:[%s799 + $0xb4] sm:$0xf]
      %v4660 = vld [vmem:[%s799 + $0xb8] sm:$0xf]
      %v4661 = vld [vmem:[%s799 + $0xbc] sm:$0xf]
      %v4710 = vunpack.c.l.b16 %v4614
      %v4711 = vunpack.c.l.b16 %v4615
      %v4712 = vunpack.c.l.b16 %v4616
      %v4713 = vunpack.c.l.b16 %v4617
      %v4714 = vunpack.c.l.b16 %v4618
      %v4715 = vunpack.c.l.b16 %v4619
      %v4716 = vunpack.c.l.b16 %v4620
      %v4717 = vunpack.c.l.b16 %v4621
      %v4718 = vunpack.c.l.b16 %v4622
      %v4719 = vunpack.c.l.b16 %v4623
      %v4720 = vunpack.c.l.b16 %v4624
      %v4721 = vunpack.c.l.b16 %v4625
      %v4722 = vunpack.c.l.b16 %v4626
      %v4723 = vunpack.c.l.b16 %v4627
      %v4724 = vunpack.c.l.b16 %v4628
      %v4725 = vunpack.c.l.b16 %v4629
      %v4726 = vunpack.c.l.b16 %v4630
      %v4727 = vunpack.c.l.b16 %v4631
      %v4728 = vunpack.c.l.b16 %v4632
      %v4729 = vunpack.c.l.b16 %v4633
      %v4730 = vunpack.c.l.b16 %v4634
      %v4731 = vunpack.c.l.b16 %v4635
      %v4732 = vunpack.c.l.b16 %v4636
      %v4733 = vunpack.c.l.b16 %v4637
      %v4734 = vunpack.c.l.b16 %v4638
      %v4735 = vunpack.c.l.b16 %v4639
      %v4736 = vunpack.c.l.b16 %v4640
      %v4737 = vunpack.c.l.b16 %v4641
      %v4738 = vunpack.c.l.b16 %v4642
      %v4739 = vunpack.c.l.b16 %v4643
      %v4740 = vunpack.c.l.b16 %v4644
      %v4741 = vunpack.c.l.b16 %v4645
      %v4742 = vunpack.c.l.b16 %v4646
      %v4743 = vunpack.c.l.b16 %v4647
      %v4744 = vunpack.c.l.b16 %v4648
      %v4745 = vunpack.c.l.b16 %v4649
      %v4746 = vunpack.c.l.b16 %v4650
      %v4747 = vunpack.c.l.b16 %v4651
      %v4748 = vunpack.c.l.b16 %v4652
      %v4749 = vunpack.c.l.b16 %v4653
      %v4750 = vunpack.c.l.b16 %v4654
      %v4751 = vunpack.c.l.b16 %v4655
      %v4752 = vunpack.c.l.b16 %v4656
      %v4753 = vunpack.c.l.b16 %v4657
      %v4754 = vunpack.c.l.b16 %v4658
      %v4755 = vunpack.c.l.b16 %v4659
      %v4756 = vunpack.c.l.b16 %v4660
      %v4757 = vunpack.c.l.b16 %v4661
      %v4758 = vpack.c.b16 %v4711, %v4710
      %v4759 = vpack.c.b16 %v4713, %v4712
      %v4760 = vpack.c.b16 %v4715, %v4714
      %v4761 = vpack.c.b16 %v4717, %v4716
      %v4762 = vpack.c.b16 %v4719, %v4718
      %v4763 = vpack.c.b16 %v4721, %v4720
      %v4764 = vpack.c.b16 %v4723, %v4722
      %v4765 = vpack.c.b16 %v4725, %v4724
      %v4766 = vpack.c.b16 %v4727, %v4726
      %v4767 = vpack.c.b16 %v4729, %v4728
      %v4768 = vpack.c.b16 %v4731, %v4730
      %v4769 = vpack.c.b16 %v4733, %v4732
      %v4770 = vpack.c.b16 %v4735, %v4734
      %v4771 = vpack.c.b16 %v4737, %v4736
      %v4772 = vpack.c.b16 %v4739, %v4738
      %v4773 = vpack.c.b16 %v4741, %v4740
      %v4774 = vpack.c.b16 %v4743, %v4742
      %v4775 = vpack.c.b16 %v4745, %v4744
      %v4776 = vpack.c.b16 %v4747, %v4746
      %v4777 = vpack.c.b16 %v4749, %v4748
      %v4778 = vpack.c.b16 %v4751, %v4750
      %v4779 = vpack.c.b16 %v4753, %v4752
      %v4780 = vpack.c.b16 %v4755, %v4754
      %v4781 = vpack.c.b16 %v4757, %v4756
      %4806 = vmatprep.subr.bf16.mxu0 0
      %4807 = vmatpush1.bf16.msra.mxu0 %v4758
      %4808 = vmatprep.subr.bf16.mxu0 0
      %4809 = vmatpush1.bf16.msra.mxu0 %v4759
      %4810 = vmatprep.subr.bf16.mxu0 0
      %4811 = vmatpush1.bf16.msra.mxu0 %v4760
      %4812 = vmatprep.subr.bf16.mxu0 0
      %4813 = vmatpush1.bf16.msra.mxu0 %v4761
      %4814 = vmatprep.subr.bf16.mxu0 0
      %4815 = vmatpush1.bf16.msra.mxu0 %v4762
      %4816 = vmatprep.subr.bf16.mxu0 0
      %4817 = vmatpush1.bf16.msra.mxu0 %v4763
      %4818 = vmatprep.subr.bf16.mxu0 0
      %4819 = vmatpush1.bf16.msra.mxu0 %v4764
      %4820 = vmatprep.subr.bf16.mxu0 0
      %4821 = vmatpush1.bf16.msra.mxu0 %v4765
      %4822 = vmatprep.subr.bf16.mxu0 0
      %4823 = vmatpush1.bf16.msra.mxu0 %v4766
      %4824 = vmatprep.subr.bf16.mxu0 0
      %4825 = vmatpush1.bf16.msra.mxu0 %v4767
      %4826 = vmatprep.subr.bf16.mxu0 0
      %4827 = vmatpush1.bf16.msra.mxu0 %v4768
      %4828 = vmatprep.subr.bf16.mxu0 0
      %4829 = vmatpush1.bf16.msra.mxu0 %v4769
      %4830 = vmatprep.subr.bf16.mxu0 0
      %4831 = vmatpush1.bf16.msra.mxu0 %v4770
      %4832 = vmatprep.subr.bf16.mxu0 0
      %4833 = vmatpush1.bf16.msra.mxu0 %v4771
      %4834 = vmatprep.subr.bf16.mxu0 0
      %4835 = vmatpush1.bf16.msra.mxu0 %v4772
      %4836 = vmatprep.subr.bf16.mxu0 0
      %4837 = vmatpush1.bf16.msra.mxu0 %v4773
      %4838 = vmatprep.mubr.f32.mxu0 %v4609
      %4839 = vmatmul.mubr.f32.gmra.mrb[0].mxu0 %v4608
      %v4840 = vpop.f32.mrb[0].mxu0
      %v4841 = vadd.f32 0.0, %v4840
      %v4842 = vpop.f32.mrb[0].mxu0
      %4843 = vmatprep.mubr.f32.mxu0 %v4612
      %4844 = vmatmul.mubr.f32.gmra.mrb[0].mxu0 %v4611
      %v4845 = vpop.f32.mrb[0].mxu0
      %v4846 = vadd.f32 0.0, %v4845
      %v4847 = vpop.f32.mrb[0].mxu0
      %4848 = vdwg.mxu0
      %4849 = vmatprep.subr.bf16.mxu0 0
      %4850 = vmatpush1.bf16.msra.mxu0 %v4774
      %4851 = vmatprep.subr.bf16.mxu0 0
      %4852 = vmatpush1.bf16.msra.mxu0 %v4775
      %4853 = vmatprep.subr.bf16.mxu0 0
      %4854 = vmatpush1.bf16.msra.mxu0 %v4776
      %4855 = vmatprep.subr.bf16.mxu0 0
      %4856 = vmatpush1.bf16.msra.mxu0 %v4777
      %4857 = vmatprep.subr.bf16.mxu0 0
      %4858 = vmatpush1.bf16.msra.mxu0 %v4778
      %4859 = vmatprep.subr.bf16.mxu0 0
      %4860 = vmatpush1.bf16.msra.mxu0 %v4779
      %4861 = vmatprep.subr.bf16.mxu0 0
      %4862 = vmatpush1.bf16.msra.mxu0 %v4780
      %4863 = vmatprep.subr.bf16.mxu0 0
      %4864 = vmatpush1.bf16.msra.mxu0 %v4781
      %4865 = vmatprep.subr.bf16.mxu0 0
      %4866 = vmatpush1.bf16.msra.mxu0 0
      %4867 = vmatprep.subr.bf16.mxu0 0
      %4868 = vmatpush1.bf16.msra.mxu0 0
      %4869 = vmatprep.subr.bf16.mxu0 0
      %4870 = vmatpush1.bf16.msra.mxu0 0
      %4871 = vmatprep.subr.bf16.mxu0 0
      %4872 = vmatpush1.bf16.msra.mxu0 0
      %4873 = vmatprep.subr.bf16.mxu0 0
      %4874 = vmatpush1.bf16.msra.mxu0 0
      %4875 = vmatprep.subr.bf16.mxu0 0
      %4876 = vmatpush1.bf16.msra.mxu0 0
      %4877 = vmatprep.subr.bf16.mxu0 0
      %4878 = vmatpush1.bf16.msra.mxu0 0
      %4879 = vmatprep.subr.bf16.mxu0 0
      %4880 = vmatpush1.bf16.msra.mxu0 0
      %4881 = vmatprep.mubr.f32.mxu0 0.0
      %4882 = vmatmul.mubr.f32.gmra.mrb[0].mxu0 %v4610
      %v4883 = vpop.f32.mrb[0].mxu0
      %v4884 = vadd.f32 %v4841, %v4883
      %v4885 = vpop.f32.mrb[0].mxu0
      %4886 = vmatprep.mubr.f32.mxu0 0.0
      %4887 = vmatmul.mubr.f32.gmra.mrb[0].mxu0 %v4613
      %v4888 = vpop.f32.mrb[0].mxu0
      %v4889 = vadd.f32 %v4846, %v4888
      %v4890 = vpop.f32.mrb[0].mxu0
      %4891 = vdwg.mxu0
      %v4892 = vadd.f32 %v4331, %v4884
      %v4893 = vadd.f32 %v4332, %v4889
      %v4894 = vld [vmem:[%s802] sm:$0x1]
      %v4896 = vlaneseq
      %v4897 = vshrl.u32 %v4896, 7
      %v4898 = vsub.s32 0, %v4897
      %v4899 = vrot.slane %v4894, %v4898
      %v4901 = vadd.f32 %v4892, %v4899
      %v4902 = vadd.f32 %v4893, %v4899
      %4903 = vst.msk [vmem:[#allocation2] sm:$0xff] %vm953, %v4901
      %4904 = vst.msk [vmem:[#allocation2 + $0x8] sm:$0xff] %vm953, %v4902
      %p4905 = scmp.eq.s32.totalorder %s32, 5
      // Predicated region
      $region109: #{tpu_custom_call.1} parent=103 // pred_check
        %p4906 = pneg %p4905
      $region110: #{tpu_custom_call.1} parent=103 // pred_check_branch
        %4908 = sbr.rel (%p4906) target = $region112
      $region111: #{tpu_custom_call.1} parent=103 // pred_region
        %v4909 = vld [vmem:[#allocation2] sm:$0xff]
        %v4910 = vld [vmem:[#allocation2 + $0x8] sm:$0xff]
        %v4911 = vld [vmem:[%s17] sm:$0x1]
        %v4912 = vld [vmem:[%s18] sm:$0x1]
        %v4913 = vsel %vm953, %v4909, 0.0
        %4914 = vadd.xlane.f32.xlu0 %v4913
        %v4915 = vpop.xlane.xlu0 %4914
        %v4916 = vsel %vm953, %v4910, 0.0
        %4917 = vadd.xlane.f32.xlu0 %v4916
        %v4918 = vpop.xlane.xlu0 %4917
        %v4919 = vmul.f32 %v4915, %v960
        %v4920 = vmul.f32 %v4918, %v960
        %v4921 = vsub.f32 %v4909, %v4919
        %v4922 = vsub.f32 %v4910, %v4920
        %v4923 = vmul.f32 %v4921, %v4921
        %v4924 = vmul.f32 %v4922, %v4922
        %v4925 = vsel %vm953, %v4923, 0.0
        %4926 = vadd.xlane.f32.xlu0 %v4925
        %v4927 = vpop.xlane.xlu0 %4926
        %v4928 = vsel %vm953, %v4924, 0.0
        %4929 = vadd.xlane.f32.xlu0 %v4928
        %v4930 = vpop.xlane.xlu0 %4929
        %v4931 = vmul.f32 %v4927, %v960
        %v4932 = vmul.f32 %v4930, %v960
        %v4933 = vadd.f32 %v4931, 1e-05
        %v4934 = vadd.f32 %v4932, 1e-05
        %v4935 = vrsqrt.pop %v4933
        %v4936 = vrsqrt.pop %v4934
        %v4937 = vmul.f32 %v4921, %v4935
        %v4938 = vmul.f32 %v4922, %v4936
        %v4940 = vlaneseq
        %v4941 = vshrl.u32 %v4940, 7
        %v4942 = vsub.s32 0, %v4941
        %v4943 = vrot.slane %v4911, %v4942
        %v4945 = vmul.f32 %v4937, %v4943
        %v4946 = vmul.f32 %v4938, %v4943
        %v4948 = vlaneseq
        %v4949 = vshrl.u32 %v4948, 7
        %v4950 = vsub.s32 0, %v4949
        %v4951 = vrot.slane %v4912, %v4950
        %v4953 = vadd.f32 %v4945, %v4951
        %v4954 = vadd.f32 %v4946, %v4951
        %v4955 = vld [vmem:[%s19] sm:$0xf]
        %v4956 = vld [vmem:[%s19 + $0x4] sm:$0xf]
        %v4957 = vld [vmem:[%s19 + $0x8] sm:$0xf]
        %v4958 = vld [vmem:[%s19 + $0xc] sm:$0xf]
        %v4959 = vld [vmem:[%s19 + $0x10] sm:$0xf]
        %v4960 = vld [vmem:[%s19 + $0x14] sm:$0xf]
        %v4961 = vld [vmem:[%s19 + $0x18] sm:$0xf]
        %v4962 = vld [vmem:[%s19 + $0x1c] sm:$0xf]
        %v4963 = vld [vmem:[%s19 + $0x20] sm:$0xf]
        %v4964 = vld [vmem:[%s19 + $0x24] sm:$0xf]
        %v4965 = vld [vmem:[%s19 + $0x28] sm:$0xf]
        %v4966 = vld [vmem:[%s19 + $0x2c] sm:$0xf]
        %v4967 = vld [vmem:[%s20] sm:$0x1]
        %v4969 = vlaneseq
        %v4970 = vshrl.u32 %v4969, 7
        %v4971 = vsub.s32 0, %v4970
        %v4972 = vrot.slane %v4967, %v4971
        %v4986 = vunpack.c.l.b16 %v4955
        %v4987 = vunpack.c.l.b16 %v4956
        %v4988 = vunpack.c.l.b16 %v4957
        %v4989 = vunpack.c.l.b16 %v4958
        %v4990 = vunpack.c.l.b16 %v4959
        %v4991 = vunpack.c.l.b16 %v4960
        %v4992 = vunpack.c.l.b16 %v4961
        %v4993 = vunpack.c.l.b16 %v4962
        %v4994 = vunpack.c.l.b16 %v4963
        %v4995 = vunpack.c.l.b16 %v4964
        %v4996 = vunpack.c.l.b16 %v4965
        %v4997 = vunpack.c.l.b16 %v4966
        %v4998 = vpack.c.b16 %v4987, %v4986
        %v4999 = vpack.c.b16 %v4989, %v4988
        %v5000 = vpack.c.b16 %v4991, %v4990
        %v5001 = vpack.c.b16 %v4993, %v4992
        %v5002 = vpack.c.b16 %v4995, %v4994
        %v5003 = vpack.c.b16 %v4997, %v4996
        %v5011 = vsel %vm953, %v4953, 0
        %v5014 = vsel %vm953, %v4954, 0
        %5016 = vmatprep.subr.bf16.mxu0 0
        %5017 = vmatpush1.bf16.msra.mxu0 %v4998
        %5018 = vmatprep.subr.bf16.mxu0 0
        %5019 = vmatpush1.bf16.msra.mxu0 %v4999
        %5020 = vmatprep.subr.bf16.mxu0 0
        %5021 = vmatpush1.bf16.msra.mxu0 %v5000
        %5022 = vmatprep.subr.bf16.mxu0 0
        %5023 = vmatpush1.bf16.msra.mxu0 %v5001
        %5024 = vmatprep.subr.bf16.mxu0 0
        %5025 = vmatpush1.bf16.msra.mxu0 %v5002
        %5026 = vmatprep.subr.bf16.mxu0 0
        %5027 = vmatpush1.bf16.msra.mxu0 %v5003
        %5028 = vmatprep.subr.bf16.mxu0 0
        %5029 = vmatpush1.bf16.msra.mxu0 0
        %5030 = vmatprep.subr.bf16.mxu0 0
        %5031 = vmatpush1.bf16.msra.mxu0 0
        %5032 = vmatprep.subr.bf16.mxu0 0
        %5033 = vmatpush1.bf16.msra.mxu0 0
        %5034 = vmatprep.subr.bf16.mxu0 0
        %5035 = vmatpush1.bf16.msra.mxu0 0
        %5036 = vmatprep.subr.bf16.mxu0 0
        %5037 = vmatpush1.bf16.msra.mxu0 0
        %5038 = vmatprep.subr.bf16.mxu0 0
        %5039 = vmatpush1.bf16.msra.mxu0 0
        %5040 = vmatprep.subr.bf16.mxu0 0
        %5041 = vmatpush1.bf16.msra.mxu0 0
        %5042 = vmatprep.subr.bf16.mxu0 0
        %5043 = vmatpush1.bf16.msra.mxu0 0
        %5044 = vmatprep.subr.bf16.mxu0 0
        %5045 = vmatpush1.bf16.msra.mxu0 0
        %5046 = vmatprep.subr.bf16.mxu0 0
        %5047 = vmatpush1.bf16.msra.mxu0 0
        %5048 = vmatprep.mubr.f32.mxu0 0.0
        %5049 = vmatmul.mubr.f32.gmra.mrb[0].mxu0 %v5011
        %v5050 = vpop.f32.mrb[0].mxu0
        %v5051 = vadd.f32 %v4972, %v5050
        %v5052 = vpop.f32.mrb[0].mxu0
        %5053 = vmatprep.mubr.f32.mxu0 0.0
        %5054 = vmatmul.mubr.f32.gmra.mrb[0].mxu0 %v5014
        %v5055 = vpop.f32.mrb[0].mxu0
        %v5056 = vadd.f32 %v4972, %v5055
        %v5057 = vpop.f32.mrb[0].mxu0
        %5058 = vdwg.mxu0
        %vm5059 = vcmask 23552
        %5060 = vst.msk [vmem:[%s21] sm:$0xff] %vm5059, %v5051
        %5061 = vst.msk [vmem:[%s21 + $0x8] sm:$0xff] %vm5059, %v5056
      $region112: #{tpu_custom_call.1} parent=103 // pred_fallthru
        _
      // Predicated region
      $region113: #{tpu_custom_call.1} parent=103 // pred_check
        %p5062 = pneg %p541
      $region114: #{tpu_custom_call.1} parent=103 // pred_check_branch
        %5064 = sbr.rel (%p5062) target = $region116
      $region115: #{tpu_custom_call.1} parent=103 // pred_region
        _
      $region116: #{tpu_custom_call.1} parent=103 // pred_fallthru
        _
      // Predicated region
      $region117: #{tpu_custom_call.1} parent=103 // pred_check
        %p5065 = pneg %p541
      $region118: #{tpu_custom_call.1} parent=103 // pred_check_branch
        %5067 = sbr.rel (%p5065) target = $region120
      $region119: #{tpu_custom_call.1} parent=103 // pred_region
        _
      $region120: #{tpu_custom_call.1} parent=103 // pred_fallthru
        _
    $region104: #{tpu_custom_call.1} parent=5 // pred_fallthru
      _
    %p5068 = scmp.le.s32.totalorder 2, %s27
    // Predicated region
    $region121: #{tpu_custom_call.1} parent=5 // pred_check
      %p5069 = pneg %p5068
    $region122: #{tpu_custom_call.1} parent=5 // pred_check_branch
      %5071 = sbr.rel (%p5069) target = $region124
    $region123: #{tpu_custom_call.1} parent=5 // pred_region
      %s5072 = ssub.s32 %s27, 2
    $region124: #{tpu_custom_call.1} parent=5 // pred_fallthru
      _
  $region6: #{tpu_custom_call.1} parent=0 // loop_footer
    %s31 = sadd.s32 1, %s27
  $region7: #{tpu_custom_call.1} parent=0 // loop_footer_branch
    %26 = sbr.rel target = $region3
  $region8: #{tpu_custom_call.1} parent=0 // loop_exit
    _

</llo_original>
